<compile_context>
chip_gen: v5e
topology: v5e:2x2
jax: 0.10.0
libtpu: 0.0.40
codegen_flags: <defaults>
</compile_context>

<pallas_src>
import functools

import jax
import jax.numpy as jnp
from jax import lax
from jax.experimental import pallas as pl
from jax.experimental.pallas import tpu as pltpu


def encoder_gru_kernel(x_ref, wih0_ref, wihR_ref, whh_ref, bih_ref, bhh_ref,
                       out_ref, hid_ref, *, num_layers, seq_len, batch_pad):
    """Whole stacked-GRU forward, all buffers resident in VMEM.

    x_ref    : (S*Bp, D)        input sequence, pre-flattened, batch padded to Bp
    wih0_ref : (3, D, H)        layer-0 input weights, per gate, pre-transposed
    wihR_ref : (max(1,L-1), 3, H, H)  layer>=1 input weights, per gate
    whh_ref  : (L, 3, H, H)     hidden weights, per gate, pre-transposed
    bih_ref  : (L, 3, 1, H)     input biases, per gate
    bhh_ref  : (L, 3, 1, H)     hidden biases, per gate
    out_ref  : (S*Bp, H)        output; also the inter-layer sequence buffer
    hid_ref  : (L, Bp, H)       final hidden state per layer
    """
    S = seq_len
    Bp = batch_pad
    H = whh_ref.shape[-1]

    for layer in range(num_layers):              # static Python loop over layers
        # ---- hoisted per-gate input matmuls over the WHOLE sequence --------
        if layer == 0:
            seq = x_ref[...]                     # (S*Bp, D)
            w_in = wih0_ref[...]                 # (3, D, H)
        else:
            seq = out_ref[...]                   # (S*Bp, H) = previous layer's output
            w_in = wihR_ref[layer - 1]           # (3, H, H)

        b_in = bih_ref[layer]                    # (3, 1, H)
        gi_r = jnp.dot(seq, w_in[0], preferred_element_type=jnp.float32) + b_in[0]
        gi_z = jnp.dot(seq, w_in[1], preferred_element_type=jnp.float32) + b_in[1]
        gi_n = jnp.dot(seq, w_in[2], preferred_element_type=jnp.float32) + b_in[2]

        # ---- pin per-layer hidden weights / biases (loaded once) -----------
        w_hh = whh_ref[layer]                    # (3, H, H)
        b_hh = bhh_ref[layer]                    # (3, 1, H)
        whr, whz, whn = w_hh[0], w_hh[1], w_hh[2]
        bhr, bhz, bhn = b_hh[0], b_hh[1], b_hh[2]

        # ---- fully-unrolled serial recurrence (S is small & static) --------
        h = jnp.zeros((Bp, H), jnp.float32)
        hs = []
        for t in range(S):                       # full unroll: LLO sees every step
            lo = t * Bp                          # Bp is a multiple of 8 -> sublane aligned
            xr = gi_r[lo:lo + Bp]
            xz = gi_z[lo:lo + Bp]
            xn = gi_n[lo:lo + Bp]
            r = jax.nn.sigmoid(
                xr + jnp.dot(h, whr, preferred_element_type=jnp.float32) + bhr)
            z = jax.nn.sigmoid(
                xz + jnp.dot(h, whz, preferred_element_type=jnp.float32) + bhz)
            n = jnp.tanh(
                xn + r * (jnp.dot(h, whn, preferred_element_type=jnp.float32) + bhn))
            h = (1.0 - z) * n + z * h
            hs.append(h)

        # One dense store of the whole layer output; also feeds the next layer.
        out_ref[...] = jnp.concatenate(hs, axis=0)      # (S*Bp, H)
        hid_ref[layer] = h                              # (Bp, H)


def encoder_rnn_forward(x, wih, whh, bih, bhh, *, num_layers,
                        vmem_limit_bytes=48 * 1024 * 1024):
    """Wrapper: PyTorch-layout params -> gate-split/transposed layout + pallas_call.

    x   : (S, B, D)
    wih : list of L arrays; wih[0] (3H, D), wih[k>=1] (3H, H)   (weight_ih_l{k})
    whh : list of L arrays; (3H, H)                              (weight_hh_l{k})
    bih : list of L arrays; (3H,)                                (bias_ih_l{k})
    bhh : list of L arrays; (3H,)                                (bias_hh_l{k})
    returns (out, hidden) like nn.GRU: (S, B, H), (L, B, H)
    """
    S, B, D = x.shape
    H = whh[0].shape[1]
    L = num_layers
    Bp = ((B + 7) // 8) * 8                     # sublane-pad the batch

    def split_gates_t(w):                       # (3H, In) -> (3, In, H), per-gate transposed
        return jnp.stack([w[g * H:(g + 1) * H, :].T for g in range(3)], axis=0)

    wih0_t = split_gates_t(wih[0])                                          # (3, D, H)
    if L > 1:
        wihR_t = jnp.stack([split_gates_t(wih[k]) for k in range(1, L)], 0)  # (L-1, 3, H, H)
    else:
        wihR_t = jnp.zeros((1, 3, H, H), jnp.float32)                        # unused dummy
    whh_t = jnp.stack([split_gates_t(whh[k]) for k in range(L)], axis=0)     # (L, 3, H, H)
    bih_s = jnp.stack([bih[k].reshape(3, 1, H) for k in range(L)], axis=0)   # (L, 3, 1, H)
    bhh_s = jnp.stack([bhh[k].reshape(3, 1, H) for k in range(L)], axis=0)   # (L, 3, 1, H)

    # Pad batch with zero rows and pre-flatten to (S*Bp, D) in the wrapper
    # (padded rows produce garbage hidden states that are sliced off below).
    x_pad = jnp.zeros((S, Bp, D), jnp.float32).at[:, :B, :].set(x).reshape(S * Bp, D)

    # Cheap all-resident VMEM guard (v7x has 64 MiB VMEM; v5e/v6e have 128 MiB).
    resident_bytes = 4 * (S * Bp * D + S * Bp * H + 3 * D * H
                          + max(1, L - 1) * 3 * H * H + L * 3 * H * H
                          + 2 * L * 3 * H + L * Bp * H)
    assert resident_bytes < vmem_limit_bytes, (
        f"all-resident design exceeds VMEM budget: {resident_bytes} bytes")

    kernel = functools.partial(encoder_gru_kernel, num_layers=L, seq_len=S,
                               batch_pad=Bp)
    out_flat, hid_pad = pl.pallas_call(
        kernel,
        out_shape=(jax.ShapeDtypeStruct((S * Bp, H), jnp.float32),
                   jax.ShapeDtypeStruct((L, Bp, H), jnp.float32)),
        in_specs=[pl.BlockSpec(memory_space=pltpu.MemorySpace.VMEM)] * 6,
        out_specs=(pl.BlockSpec(memory_space=pltpu.MemorySpace.VMEM),
                   pl.BlockSpec(memory_space=pltpu.MemorySpace.VMEM)),
        compiler_params=pltpu.CompilerParams(vmem_limit_bytes=vmem_limit_bytes),
    )(x_pad, wih0_t, wihR_t, whh_t, bih_s, bhh_s)

    out = out_flat.reshape(S, Bp, H)[:, :B, :]
    hidden = hid_pad[:, :B, :]
    return out, hidden


def encoder_rnn_reference(x, wih, whh, bih, bhh, *, num_layers):
    """Pure-JAX reference replicating PyTorch nn.GRU forward (h0 = zeros)."""
    H = whh[0].shape[1]
    seq = x
    finals = []
    for k in range(num_layers):
        w_ih, w_hh, b_ih, b_hh = wih[k], whh[k], bih[k], bhh[k]

        def step(h, x_t):
            gi = x_t @ w_ih.T + b_ih
            gh = h @ w_hh.T + b_hh
            r = jax.nn.sigmoid(gi[:, :H] + gh[:, :H])
            z = jax.nn.sigmoid(gi[:, H:2 * H] + gh[:, H:2 * H])
            n = jnp.tanh(gi[:, 2 * H:] + r * gh[:, 2 * H:])
            h_new = (1.0 - z) * n + z * h
            return h_new, h_new

        h0 = jnp.zeros((x.shape[1], H), jnp.float32)
        h_final, seq = lax.scan(step, h0, seq)
        finals.append(h_final)
    return seq, jnp.stack(finals, axis=0)


if __name__ == "__main__":
    # Small, self-consistent shapes (EncoderRNN(input_dim, latent_dim, num_layers)).
    input_dim = 48     # D
    latent_dim = 32    # H
    num_layers = 2
    seq_len = 8
    batch = 4

    key = jax.random.PRNGKey(0)
    ks = jax.random.split(key, 1 + 4 * num_layers)
    scale = 0.1

    x = jax.random.normal(ks[0], (seq_len, batch, input_dim), jnp.float32)

    # Deterministic synthetic GRU parameters with PyTorch shapes.
    wih, whh, bih, bhh = [], [], [], []
    for layer in range(num_layers):
        in_dim = input_dim if layer == 0 else latent_dim
        k0, k1, k2, k3 = jax.random.split(ks[1 + layer], 4)
        wih.append(scale * jax.random.normal(k0, (3 * latent_dim, in_dim), jnp.float32))
        whh.append(scale * jax.random.normal(k1, (3 * latent_dim, latent_dim), jnp.float32))
        bih.append(scale * jax.random.normal(k2, (3 * latent_dim,), jnp.float32))
        bhh.append(scale * jax.random.normal(k3, (3 * latent_dim,), jnp.float32))

    out, hidden = encoder_rnn_forward(x, wih, whh, bih, bhh, num_layers=num_layers)
    out = jax.block_until_ready(out)
    hidden = jax.block_until_ready(hidden)

    out_ref, hid_ref = encoder_rnn_reference(x, wih, whh, bih, bhh, num_layers=num_layers)
    out_ref = jax.block_until_ready(out_ref)
    hid_ref = jax.block_until_ready(hid_ref)

    assert out.shape == (seq_len, batch, latent_dim)
    assert hidden.shape == (num_layers, batch, latent_dim)
    assert jnp.allclose(out, out_ref, atol=1e-4, rtol=1e-4), \
        float(jnp.max(jnp.abs(out - out_ref)))
    assert jnp.allclose(hidden, hid_ref, atol=1e-4, rtol=1e-4), \
        float(jnp.max(jnp.abs(hidden - hid_ref)))

    print("KERNEL_OK")
</pallas_src>

<mosaic_0001>
module attributes {stable_mosaic.version = 11 : i64} {
  func.func @encoder_gru_kernel(%arg0: memref<64x48xf32, #tpu.memory_space<vmem>>, %arg1: memref<3x48x32xf32, #tpu.memory_space<vmem>>, %arg2: memref<1x3x32x32xf32, #tpu.memory_space<vmem>>, %arg3: memref<2x3x32x32xf32, #tpu.memory_space<vmem>>, %arg4: memref<2x3x1x32xf32, #tpu.memory_space<vmem>>, %arg5: memref<2x3x1x32xf32, #tpu.memory_space<vmem>>, %arg6: memref<64x32xf32, #tpu.memory_space<vmem>>, %arg7: memref<2x8x32xf32, #tpu.memory_space<vmem>>) attributes {dimension_semantics = [], scalar_prefetch = 0 : i64, scratch_operands = 0 : i64, tpu.core_type = #tpu.core_type<tc>} {
    %c0 = arith.constant 0 : index
    %c0_0 = arith.constant 0 : index
    %0 = vector.load %arg0[%c0, %c0_0] : memref<64x48xf32, #tpu.memory_space<vmem>>, vector<64x48xf32>
    %c0_1 = arith.constant 0 : index
    %c0_2 = arith.constant 0 : index
    %c0_3 = arith.constant 0 : index
    %1 = vector.load %arg1[%c0_1, %c0_2, %c0_3] : memref<3x48x32xf32, #tpu.memory_space<vmem>>, vector<3x48x32xf32>
    %c0_4 = arith.constant 0 : index
    %c0_5 = arith.constant 0 : index
    %c0_6 = arith.constant 0 : index
    %c0_7 = arith.constant 0 : index
    %2 = vector.load %arg4[%c0_4, %c0_5, %c0_6, %c0_7] : memref<2x3x1x32xf32, #tpu.memory_space<vmem>>, vector<1x3x1x32xf32>
    %3 = vector.shape_cast %2 : vector<1x3x1x32xf32> to vector<3x1x32xf32>
    %4 = vector.extract_strided_slice %1 {offsets = [0, 0, 0], sizes = [1, 48, 32], strides = [1, 1, 1]} : vector<3x48x32xf32> to vector<1x48x32xf32>
    %5 = vector.shape_cast %4 : vector<1x48x32xf32> to vector<48x32xf32>
    %cst = arith.constant dense<0.000000e+00> : vector<64x32xf32>
    %6 = tpu.matmul %0, %5, %cst {dimension_numbers = #tpu.dot_dimension_numbers<[1], [0], [0], [1], [0, 0, 1, 1], [], []>} : vector<64x48xf32>, vector<48x32xf32>, vector<64x32xf32> -> vector<64x32xf32>
    %7 = vector.extract_strided_slice %3 {offsets = [0, 0, 0], sizes = [1, 1, 32], strides = [1, 1, 1]} : vector<3x1x32xf32> to vector<1x1x32xf32>
    %8 = vector.shape_cast %7 : vector<1x1x32xf32> to vector<1x32xf32>
    %9 = vector.broadcast %8 : vector<1x32xf32> to vector<64x32xf32>
    %10 = arith.addf %6, %9 : vector<64x32xf32>
    %11 = vector.extract_strided_slice %1 {offsets = [1, 0, 0], sizes = [1, 48, 32], strides = [1, 1, 1]} : vector<3x48x32xf32> to vector<1x48x32xf32>
    %12 = vector.shape_cast %11 : vector<1x48x32xf32> to vector<48x32xf32>
    %cst_8 = arith.constant dense<0.000000e+00> : vector<64x32xf32>
    %13 = tpu.matmul %0, %12, %cst_8 {dimension_numbers = #tpu.dot_dimension_numbers<[1], [0], [0], [1], [0, 0, 1, 1], [], []>} : vector<64x48xf32>, vector<48x32xf32>, vector<64x32xf32> -> vector<64x32xf32>
    %14 = vector.extract_strided_slice %3 {offsets = [1, 0, 0], sizes = [1, 1, 32], strides = [1, 1, 1]} : vector<3x1x32xf32> to vector<1x1x32xf32>
    %15 = vector.shape_cast %14 : vector<1x1x32xf32> to vector<1x32xf32>
    %16 = vector.broadcast %15 : vector<1x32xf32> to vector<64x32xf32>
    %17 = arith.addf %13, %16 : vector<64x32xf32>
    %18 = vector.extract_strided_slice %1 {offsets = [2, 0, 0], sizes = [1, 48, 32], strides = [1, 1, 1]} : vector<3x48x32xf32> to vector<1x48x32xf32>
    %19 = vector.shape_cast %18 : vector<1x48x32xf32> to vector<48x32xf32>
    %cst_9 = arith.constant dense<0.000000e+00> : vector<64x32xf32>
    %20 = tpu.matmul %0, %19, %cst_9 {dimension_numbers = #tpu.dot_dimension_numbers<[1], [0], [0], [1], [0, 0, 1, 1], [], []>} : vector<64x48xf32>, vector<48x32xf32>, vector<64x32xf32> -> vector<64x32xf32>
    %21 = vector.extract_strided_slice %3 {offsets = [2, 0, 0], sizes = [1, 1, 32], strides = [1, 1, 1]} : vector<3x1x32xf32> to vector<1x1x32xf32>
    %22 = vector.shape_cast %21 : vector<1x1x32xf32> to vector<1x32xf32>
    %23 = vector.broadcast %22 : vector<1x32xf32> to vector<64x32xf32>
    %24 = arith.addf %20, %23 : vector<64x32xf32>
    %c0_10 = arith.constant 0 : index
    %c0_11 = arith.constant 0 : index
    %c0_12 = arith.constant 0 : index
    %c0_13 = arith.constant 0 : index
    %25 = vector.load %arg3[%c0_10, %c0_11, %c0_12, %c0_13] : memref<2x3x32x32xf32, #tpu.memory_space<vmem>>, vector<1x3x32x32xf32>
    %26 = vector.shape_cast %25 : vector<1x3x32x32xf32> to vector<3x32x32xf32>
    %c0_14 = arith.constant 0 : index
    %c0_15 = arith.constant 0 : index
    %c0_16 = arith.constant 0 : index
    %c0_17 = arith.constant 0 : index
    %27 = vector.load %arg5[%c0_14, %c0_15, %c0_16, %c0_17] : memref<2x3x1x32xf32, #tpu.memory_space<vmem>>, vector<1x3x1x32xf32>
    %28 = vector.shape_cast %27 : vector<1x3x1x32xf32> to vector<3x1x32xf32>
    %29 = vector.extract_strided_slice %26 {offsets = [0, 0, 0], sizes = [1, 32, 32], strides = [1, 1, 1]} : vector<3x32x32xf32> to vector<1x32x32xf32>
    %30 = vector.shape_cast %29 : vector<1x32x32xf32> to vector<32x32xf32>
    %31 = vector.extract_strided_slice %26 {offsets = [1, 0, 0], sizes = [1, 32, 32], strides = [1, 1, 1]} : vector<3x32x32xf32> to vector<1x32x32xf32>
    %32 = vector.shape_cast %31 : vector<1x32x32xf32> to vector<32x32xf32>
    %33 = vector.extract_strided_slice %26 {offsets = [2, 0, 0], sizes = [1, 32, 32], strides = [1, 1, 1]} : vector<3x32x32xf32> to vector<1x32x32xf32>
    %34 = vector.shape_cast %33 : vector<1x32x32xf32> to vector<32x32xf32>
    %35 = vector.extract_strided_slice %28 {offsets = [0, 0, 0], sizes = [1, 1, 32], strides = [1, 1, 1]} : vector<3x1x32xf32> to vector<1x1x32xf32>
    %36 = vector.shape_cast %35 : vector<1x1x32xf32> to vector<1x32xf32>
    %37 = vector.extract_strided_slice %28 {offsets = [1, 0, 0], sizes = [1, 1, 32], strides = [1, 1, 1]} : vector<3x1x32xf32> to vector<1x1x32xf32>
    %38 = vector.shape_cast %37 : vector<1x1x32xf32> to vector<1x32xf32>
    %39 = vector.extract_strided_slice %28 {offsets = [2, 0, 0], sizes = [1, 1, 32], strides = [1, 1, 1]} : vector<3x1x32xf32> to vector<1x1x32xf32>
    %40 = vector.shape_cast %39 : vector<1x1x32xf32> to vector<1x32xf32>
    %cst_18 = arith.constant 0.000000e+00 : f32
    %41 = vector.broadcast %cst_18 : f32 to vector<8x32xf32>
    %42 = vector.extract_strided_slice %10 {offsets = [0, 0], sizes = [8, 32], strides = [1, 1]} : vector<64x32xf32> to vector<8x32xf32>
    %43 = vector.extract_strided_slice %17 {offsets = [0, 0], sizes = [8, 32], strides = [1, 1]} : vector<64x32xf32> to vector<8x32xf32>
    %44 = vector.extract_strided_slice %24 {offsets = [0, 0], sizes = [8, 32], strides = [1, 1]} : vector<64x32xf32> to vector<8x32xf32>
    %cst_19 = arith.constant dense<0.000000e+00> : vector<8x32xf32>
    %45 = tpu.matmul %41, %30, %cst_19 {dimension_numbers = #tpu.dot_dimension_numbers<[1], [0], [0], [1], [0, 0, 1, 1], [], []>} : vector<8x32xf32>, vector<32x32xf32>, vector<8x32xf32> -> vector<8x32xf32>
    %46 = arith.addf %42, %45 : vector<8x32xf32>
    %47 = vector.broadcast %36 : vector<1x32xf32> to vector<8x32xf32>
    %48 = arith.addf %46, %47 : vector<8x32xf32>
    %49 = arith.negf %48 : vector<8x32xf32>
    %50 = math.exp %49 : vector<8x32xf32>
    %cst_20 = arith.constant 1.000000e+00 : f32
    %51 = vector.broadcast %cst_20 : f32 to vector<8x32xf32>
    %52 = arith.addf %51, %50 : vector<8x32xf32>
    %53 = arith.divf %51, %52 : vector<8x32xf32>
    %cst_21 = arith.constant dense<0.000000e+00> : vector<8x32xf32>
    %54 = tpu.matmul %41, %32, %cst_21 {dimension_numbers = #tpu.dot_dimension_numbers<[1], [0], [0], [1], [0, 0, 1, 1], [], []>} : vector<8x32xf32>, vector<32x32xf32>, vector<8x32xf32> -> vector<8x32xf32>
    %55 = arith.addf %43, %54 : vector<8x32xf32>
    %56 = vector.broadcast %38 : vector<1x32xf32> to vector<8x32xf32>
    %57 = arith.addf %55, %56 : vector<8x32xf32>
    %58 = arith.negf %57 : vector<8x32xf32>
    %59 = math.exp %58 : vector<8x32xf32>
    %cst_22 = arith.constant 1.000000e+00 : f32
    %60 = vector.broadcast %cst_22 : f32 to vector<8x32xf32>
    %61 = arith.addf %60, %59 : vector<8x32xf32>
    %62 = arith.divf %60, %61 : vector<8x32xf32>
    %cst_23 = arith.constant dense<0.000000e+00> : vector<8x32xf32>
    %63 = tpu.matmul %41, %34, %cst_23 {dimension_numbers = #tpu.dot_dimension_numbers<[1], [0], [0], [1], [0, 0, 1, 1], [], []>} : vector<8x32xf32>, vector<32x32xf32>, vector<8x32xf32> -> vector<8x32xf32>
    %64 = vector.broadcast %40 : vector<1x32xf32> to vector<8x32xf32>
    %65 = arith.addf %63, %64 : vector<8x32xf32>
    %66 = arith.mulf %53, %65 : vector<8x32xf32>
    %67 = arith.addf %44, %66 : vector<8x32xf32>
    %68 = math.tanh %67 : vector<8x32xf32>
    %cst_24 = arith.constant 1.000000e+00 : f32
    %69 = vector.broadcast %cst_24 : f32 to vector<8x32xf32>
    %70 = arith.subf %69, %62 : vector<8x32xf32>
    %71 = arith.mulf %70, %68 : vector<8x32xf32>
    %72 = arith.mulf %62, %41 : vector<8x32xf32>
    %73 = arith.addf %71, %72 : vector<8x32xf32>
    %74 = vector.extract_strided_slice %10 {offsets = [8, 0], sizes = [8, 32], strides = [1, 1]} : vector<64x32xf32> to vector<8x32xf32>
    %75 = vector.extract_strided_slice %17 {offsets = [8, 0], sizes = [8, 32], strides = [1, 1]} : vector<64x32xf32> to vector<8x32xf32>
    %76 = vector.extract_strided_slice %24 {offsets = [8, 0], sizes = [8, 32], strides = [1, 1]} : vector<64x32xf32> to vector<8x32xf32>
    %cst_25 = arith.constant dense<0.000000e+00> : vector<8x32xf32>
    %77 = tpu.matmul %73, %30, %cst_25 {dimension_numbers = #tpu.dot_dimension_numbers<[1], [0], [0], [1], [0, 0, 1, 1], [], []>} : vector<8x32xf32>, vector<32x32xf32>, vector<8x32xf32> -> vector<8x32xf32>
    %78 = arith.addf %74, %77 : vector<8x32xf32>
    %79 = vector.broadcast %36 : vector<1x32xf32> to vector<8x32xf32>
    %80 = arith.addf %78, %79 : vector<8x32xf32>
    %81 = arith.negf %80 : vector<8x32xf32>
    %82 = math.exp %81 : vector<8x32xf32>
    %cst_26 = arith.constant 1.000000e+00 : f32
    %83 = vector.broadcast %cst_26 : f32 to vector<8x32xf32>
    %84 = arith.addf %83, %82 : vector<8x32xf32>
    %85 = arith.divf %83, %84 : vector<8x32xf32>
    %cst_27 = arith.constant dense<0.000000e+00> : vector<8x32xf32>
    %86 = tpu.matmul %73, %32, %cst_27 {dimension_numbers = #tpu.dot_dimension_numbers<[1], [0], [0], [1], [0, 0, 1, 1], [], []>} : vector<8x32xf32>, vector<32x32xf32>, vector<8x32xf32> -> vector<8x32xf32>
    %87 = arith.addf %75, %86 : vector<8x32xf32>
    %88 = vector.broadcast %38 : vector<1x32xf32> to vector<8x32xf32>
    %89 = arith.addf %87, %88 : vector<8x32xf32>
    %90 = arith.negf %89 : vector<8x32xf32>
    %91 = math.exp %90 : vector<8x32xf32>
    %cst_28 = arith.constant 1.000000e+00 : f32
    %92 = vector.broadcast %cst_28 : f32 to vector<8x32xf32>
    %93 = arith.addf %92, %91 : vector<8x32xf32>
    %94 = arith.divf %92, %93 : vector<8x32xf32>
    %cst_29 = arith.constant dense<0.000000e+00> : vector<8x32xf32>
    %95 = tpu.matmul %73, %34, %cst_29 {dimension_numbers = #tpu.dot_dimension_numbers<[1], [0], [0], [1], [0, 0, 1, 1], [], []>} : vector<8x32xf32>, vector<32x32xf32>, vector<8x32xf32> -> vector<8x32xf32>
    %96 = vector.broadcast %40 : vector<1x32xf32> to vector<8x32xf32>
    %97 = arith.addf %95, %96 : vector<8x32xf32>
    %98 = arith.mulf %85, %97 : vector<8x32xf32>
    %99 = arith.addf %76, %98 : vector<8x32xf32>
    %100 = math.tanh %99 : vector<8x32xf32>
    %cst_30 = arith.constant 1.000000e+00 : f32
    %101 = vector.broadcast %cst_30 : f32 to vector<8x32xf32>
    %102 = arith.subf %101, %94 : vector<8x32xf32>
    %103 = arith.mulf %102, %100 : vector<8x32xf32>
    %104 = arith.mulf %94, %73 : vector<8x32xf32>
    %105 = arith.addf %103, %104 : vector<8x32xf32>
    %106 = vector.extract_strided_slice %10 {offsets = [16, 0], sizes = [8, 32], strides = [1, 1]} : vector<64x32xf32> to vector<8x32xf32>
    %107 = vector.extract_strided_slice %17 {offsets = [16, 0], sizes = [8, 32], strides = [1, 1]} : vector<64x32xf32> to vector<8x32xf32>
    %108 = vector.extract_strided_slice %24 {offsets = [16, 0], sizes = [8, 32], strides = [1, 1]} : vector<64x32xf32> to vector<8x32xf32>
    %cst_31 = arith.constant dense<0.000000e+00> : vector<8x32xf32>
    %109 = tpu.matmul %105, %30, %cst_31 {dimension_numbers = #tpu.dot_dimension_numbers<[1], [0], [0], [1], [0, 0, 1, 1], [], []>} : vector<8x32xf32>, vector<32x32xf32>, vector<8x32xf32> -> vector<8x32xf32>
    %110 = arith.addf %106, %109 : vector<8x32xf32>
    %111 = vector.broadcast %36 : vector<1x32xf32> to vector<8x32xf32>
    %112 = arith.addf %110, %111 : vector<8x32xf32>
    %113 = arith.negf %112 : vector<8x32xf32>
    %114 = math.exp %113 : vector<8x32xf32>
    %cst_32 = arith.constant 1.000000e+00 : f32
    %115 = vector.broadcast %cst_32 : f32 to vector<8x32xf32>
    %116 = arith.addf %115, %114 : vector<8x32xf32>
    %117 = arith.divf %115, %116 : vector<8x32xf32>
    %cst_33 = arith.constant dense<0.000000e+00> : vector<8x32xf32>
    %118 = tpu.matmul %105, %32, %cst_33 {dimension_numbers = #tpu.dot_dimension_numbers<[1], [0], [0], [1], [0, 0, 1, 1], [], []>} : vector<8x32xf32>, vector<32x32xf32>, vector<8x32xf32> -> vector<8x32xf32>
    %119 = arith.addf %107, %118 : vector<8x32xf32>
    %120 = vector.broadcast %38 : vector<1x32xf32> to vector<8x32xf32>
    %121 = arith.addf %119, %120 : vector<8x32xf32>
    %122 = arith.negf %121 : vector<8x32xf32>
    %123 = math.exp %122 : vector<8x32xf32>
    %cst_34 = arith.constant 1.000000e+00 : f32
    %124 = vector.broadcast %cst_34 : f32 to vector<8x32xf32>
    %125 = arith.addf %124, %123 : vector<8x32xf32>
    %126 = arith.divf %124, %125 : vector<8x32xf32>
    %cst_35 = arith.constant dense<0.000000e+00> : vector<8x32xf32>
    %127 = tpu.matmul %105, %34, %cst_35 {dimension_numbers = #tpu.dot_dimension_numbers<[1], [0], [0], [1], [0, 0, 1, 1], [], []>} : vector<8x32xf32>, vector<32x32xf32>, vector<8x32xf32> -> vector<8x32xf32>
    %128 = vector.broadcast %40 : vector<1x32xf32> to vector<8x32xf32>
    %129 = arith.addf %127, %128 : vector<8x32xf32>
    %130 = arith.mulf %117, %129 : vector<8x32xf32>
    %131 = arith.addf %108, %130 : vector<8x32xf32>
    %132 = math.tanh %131 : vector<8x32xf32>
    %cst_36 = arith.constant 1.000000e+00 : f32
    %133 = vector.broadcast %cst_36 : f32 to vector<8x32xf32>
    %134 = arith.subf %133, %126 : vector<8x32xf32>
    %135 = arith.mulf %134, %132 : vector<8x32xf32>
    %136 = arith.mulf %126, %105 : vector<8x32xf32>
    %137 = arith.addf %135, %136 : vector<8x32xf32>
    %138 = vector.extract_strided_slice %10 {offsets = [24, 0], sizes = [8, 32], strides = [1, 1]} : vector<64x32xf32> to vector<8x32xf32>
    %139 = vector.extract_strided_slice %17 {offsets = [24, 0], sizes = [8, 32], strides = [1, 1]} : vector<64x32xf32> to vector<8x32xf32>
    %140 = vector.extract_strided_slice %24 {offsets = [24, 0], sizes = [8, 32], strides = [1, 1]} : vector<64x32xf32> to vector<8x32xf32>
    %cst_37 = arith.constant dense<0.000000e+00> : vector<8x32xf32>
    %141 = tpu.matmul %137, %30, %cst_37 {dimension_numbers = #tpu.dot_dimension_numbers<[1], [0], [0], [1], [0, 0, 1, 1], [], []>} : vector<8x32xf32>, vector<32x32xf32>, vector<8x32xf32> -> vector<8x32xf32>
    %142 = arith.addf %138, %141 : vector<8x32xf32>
    %143 = vector.broadcast %36 : vector<1x32xf32> to vector<8x32xf32>
    %144 = arith.addf %142, %143 : vector<8x32xf32>
    %145 = arith.negf %144 : vector<8x32xf32>
    %146 = math.exp %145 : vector<8x32xf32>
    %cst_38 = arith.constant 1.000000e+00 : f32
    %147 = vector.broadcast %cst_38 : f32 to vector<8x32xf32>
    %148 = arith.addf %147, %146 : vector<8x32xf32>
    %149 = arith.divf %147, %148 : vector<8x32xf32>
    %cst_39 = arith.constant dense<0.000000e+00> : vector<8x32xf32>
    %150 = tpu.matmul %137, %32, %cst_39 {dimension_numbers = #tpu.dot_dimension_numbers<[1], [0], [0], [1], [0, 0, 1, 1], [], []>} : vector<8x32xf32>, vector<32x32xf32>, vector<8x32xf32> -> vector<8x32xf32>
    %151 = arith.addf %139, %150 : vector<8x32xf32>
    %152 = vector.broadcast %38 : vector<1x32xf32> to vector<8x32xf32>
    %153 = arith.addf %151, %152 : vector<8x32xf32>
    %154 = arith.negf %153 : vector<8x32xf32>
    %155 = math.exp %154 : vector<8x32xf32>
    %cst_40 = arith.constant 1.000000e+00 : f32
    %156 = vector.broadcast %cst_40 : f32 to vector<8x32xf32>
    %157 = arith.addf %156, %155 : vector<8x32xf32>
    %158 = arith.divf %156, %157 : vector<8x32xf32>
    %cst_41 = arith.constant dense<0.000000e+00> : vector<8x32xf32>
    %159 = tpu.matmul %137, %34, %cst_41 {dimension_numbers = #tpu.dot_dimension_numbers<[1], [0], [0], [1], [0, 0, 1, 1], [], []>} : vector<8x32xf32>, vector<32x32xf32>, vector<8x32xf32> -> vector<8x32xf32>
    %160 = vector.broadcast %40 : vector<1x32xf32> to vector<8x32xf32>
    %161 = arith.addf %159, %160 : vector<8x32xf32>
    %162 = arith.mulf %149, %161 : vector<8x32xf32>
    %163 = arith.addf %140, %162 : vector<8x32xf32>
    %164 = math.tanh %163 : vector<8x32xf32>
    %cst_42 = arith.constant 1.000000e+00 : f32
    %165 = vector.broadcast %cst_42 : f32 to vector<8x32xf32>
    %166 = arith.subf %165, %158 : vector<8x32xf32>
    %167 = arith.mulf %166, %164 : vector<8x32xf32>
    %168 = arith.mulf %158, %137 : vector<8x32xf32>
    %169 = arith.addf %167, %168 : vector<8x32xf32>
    %170 = vector.extract_strided_slice %10 {offsets = [32, 0], sizes = [8, 32], strides = [1, 1]} : vector<64x32xf32> to vector<8x32xf32>
    %171 = vector.extract_strided_slice %17 {offsets = [32, 0], sizes = [8, 32], strides = [1, 1]} : vector<64x32xf32> to vector<8x32xf32>
    %172 = vector.extract_strided_slice %24 {offsets = [32, 0], sizes = [8, 32], strides = [1, 1]} : vector<64x32xf32> to vector<8x32xf32>
    %cst_43 = arith.constant dense<0.000000e+00> : vector<8x32xf32>
    %173 = tpu.matmul %169, %30, %cst_43 {dimension_numbers = #tpu.dot_dimension_numbers<[1], [0], [0], [1], [0, 0, 1, 1], [], []>} : vector<8x32xf32>, vector<32x32xf32>, vector<8x32xf32> -> vector<8x32xf32>
    %174 = arith.addf %170, %173 : vector<8x32xf32>
    %175 = vector.broadcast %36 : vector<1x32xf32> to vector<8x32xf32>
    %176 = arith.addf %174, %175 : vector<8x32xf32>
    %177 = arith.negf %176 : vector<8x32xf32>
    %178 = math.exp %177 : vector<8x32xf32>
    %cst_44 = arith.constant 1.000000e+00 : f32
    %179 = vector.broadcast %cst_44 : f32 to vector<8x32xf32>
    %180 = arith.addf %179, %178 : vector<8x32xf32>
    %181 = arith.divf %179, %180 : vector<8x32xf32>
    %cst_45 = arith.constant dense<0.000000e+00> : vector<8x32xf32>
    %182 = tpu.matmul %169, %32, %cst_45 {dimension_numbers = #tpu.dot_dimension_numbers<[1], [0], [0], [1], [0, 0, 1, 1], [], []>} : vector<8x32xf32>, vector<32x32xf32>, vector<8x32xf32> -> vector<8x32xf32>
    %183 = arith.addf %171, %182 : vector<8x32xf32>
    %184 = vector.broadcast %38 : vector<1x32xf32> to vector<8x32xf32>
    %185 = arith.addf %183, %184 : vector<8x32xf32>
    %186 = arith.negf %185 : vector<8x32xf32>
    %187 = math.exp %186 : vector<8x32xf32>
    %cst_46 = arith.constant 1.000000e+00 : f32
    %188 = vector.broadcast %cst_46 : f32 to vector<8x32xf32>
    %189 = arith.addf %188, %187 : vector<8x32xf32>
    %190 = arith.divf %188, %189 : vector<8x32xf32>
    %cst_47 = arith.constant dense<0.000000e+00> : vector<8x32xf32>
    %191 = tpu.matmul %169, %34, %cst_47 {dimension_numbers = #tpu.dot_dimension_numbers<[1], [0], [0], [1], [0, 0, 1, 1], [], []>} : vector<8x32xf32>, vector<32x32xf32>, vector<8x32xf32> -> vector<8x32xf32>
    %192 = vector.broadcast %40 : vector<1x32xf32> to vector<8x32xf32>
    %193 = arith.addf %191, %192 : vector<8x32xf32>
    %194 = arith.mulf %181, %193 : vector<8x32xf32>
    %195 = arith.addf %172, %194 : vector<8x32xf32>
    %196 = math.tanh %195 : vector<8x32xf32>
    %cst_48 = arith.constant 1.000000e+00 : f32
    %197 = vector.broadcast %cst_48 : f32 to vector<8x32xf32>
    %198 = arith.subf %197, %190 : vector<8x32xf32>
    %199 = arith.mulf %198, %196 : vector<8x32xf32>
    %200 = arith.mulf %190, %169 : vector<8x32xf32>
    %201 = arith.addf %199, %200 : vector<8x32xf32>
    %202 = vector.extract_strided_slice %10 {offsets = [40, 0], sizes = [8, 32], strides = [1, 1]} : vector<64x32xf32> to vector<8x32xf32>
    %203 = vector.extract_strided_slice %17 {offsets = [40, 0], sizes = [8, 32], strides = [1, 1]} : vector<64x32xf32> to vector<8x32xf32>
    %204 = vector.extract_strided_slice %24 {offsets = [40, 0], sizes = [8, 32], strides = [1, 1]} : vector<64x32xf32> to vector<8x32xf32>
    %cst_49 = arith.constant dense<0.000000e+00> : vector<8x32xf32>
    %205 = tpu.matmul %201, %30, %cst_49 {dimension_numbers = #tpu.dot_dimension_numbers<[1], [0], [0], [1], [0, 0, 1, 1], [], []>} : vector<8x32xf32>, vector<32x32xf32>, vector<8x32xf32> -> vector<8x32xf32>
    %206 = arith.addf %202, %205 : vector<8x32xf32>
    %207 = vector.broadcast %36 : vector<1x32xf32> to vector<8x32xf32>
    %208 = arith.addf %206, %207 : vector<8x32xf32>
    %209 = arith.negf %208 : vector<8x32xf32>
    %210 = math.exp %209 : vector<8x32xf32>
    %cst_50 = arith.constant 1.000000e+00 : f32
    %211 = vector.broadcast %cst_50 : f32 to vector<8x32xf32>
    %212 = arith.addf %211, %210 : vector<8x32xf32>
    %213 = arith.divf %211, %212 : vector<8x32xf32>
    %cst_51 = arith.constant dense<0.000000e+00> : vector<8x32xf32>
    %214 = tpu.matmul %201, %32, %cst_51 {dimension_numbers = #tpu.dot_dimension_numbers<[1], [0], [0], [1], [0, 0, 1, 1], [], []>} : vector<8x32xf32>, vector<32x32xf32>, vector<8x32xf32> -> vector<8x32xf32>
    %215 = arith.addf %203, %214 : vector<8x32xf32>
    %216 = vector.broadcast %38 : vector<1x32xf32> to vector<8x32xf32>
    %217 = arith.addf %215, %216 : vector<8x32xf32>
    %218 = arith.negf %217 : vector<8x32xf32>
    %219 = math.exp %218 : vector<8x32xf32>
    %cst_52 = arith.constant 1.000000e+00 : f32
    %220 = vector.broadcast %cst_52 : f32 to vector<8x32xf32>
    %221 = arith.addf %220, %219 : vector<8x32xf32>
    %222 = arith.divf %220, %221 : vector<8x32xf32>
    %cst_53 = arith.constant dense<0.000000e+00> : vector<8x32xf32>
    %223 = tpu.matmul %201, %34, %cst_53 {dimension_numbers = #tpu.dot_dimension_numbers<[1], [0], [0], [1], [0, 0, 1, 1], [], []>} : vector<8x32xf32>, vector<32x32xf32>, vector<8x32xf32> -> vector<8x32xf32>
    %224 = vector.broadcast %40 : vector<1x32xf32> to vector<8x32xf32>
    %225 = arith.addf %223, %224 : vector<8x32xf32>
    %226 = arith.mulf %213, %225 : vector<8x32xf32>
    %227 = arith.addf %204, %226 : vector<8x32xf32>
    %228 = math.tanh %227 : vector<8x32xf32>
    %cst_54 = arith.constant 1.000000e+00 : f32
    %229 = vector.broadcast %cst_54 : f32 to vector<8x32xf32>
    %230 = arith.subf %229, %222 : vector<8x32xf32>
    %231 = arith.mulf %230, %228 : vector<8x32xf32>
    %232 = arith.mulf %222, %201 : vector<8x32xf32>
    %233 = arith.addf %231, %232 : vector<8x32xf32>
    %234 = vector.extract_strided_slice %10 {offsets = [48, 0], sizes = [8, 32], strides = [1, 1]} : vector<64x32xf32> to vector<8x32xf32>
    %235 = vector.extract_strided_slice %17 {offsets = [48, 0], sizes = [8, 32], strides = [1, 1]} : vector<64x32xf32> to vector<8x32xf32>
    %236 = vector.extract_strided_slice %24 {offsets = [48, 0], sizes = [8, 32], strides = [1, 1]} : vector<64x32xf32> to vector<8x32xf32>
    %cst_55 = arith.constant dense<0.000000e+00> : vector<8x32xf32>
    %237 = tpu.matmul %233, %30, %cst_55 {dimension_numbers = #tpu.dot_dimension_numbers<[1], [0], [0], [1], [0, 0, 1, 1], [], []>} : vector<8x32xf32>, vector<32x32xf32>, vector<8x32xf32> -> vector<8x32xf32>
    %238 = arith.addf %234, %237 : vector<8x32xf32>
    %239 = vector.broadcast %36 : vector<1x32xf32> to vector<8x32xf32>
    %240 = arith.addf %238, %239 : vector<8x32xf32>
    %241 = arith.negf %240 : vector<8x32xf32>
    %242 = math.exp %241 : vector<8x32xf32>
    %cst_56 = arith.constant 1.000000e+00 : f32
    %243 = vector.broadcast %cst_56 : f32 to vector<8x32xf32>
    %244 = arith.addf %243, %242 : vector<8x32xf32>
    %245 = arith.divf %243, %244 : vector<8x32xf32>
    %cst_57 = arith.constant dense<0.000000e+00> : vector<8x32xf32>
    %246 = tpu.matmul %233, %32, %cst_57 {dimension_numbers = #tpu.dot_dimension_numbers<[1], [0], [0], [1], [0, 0, 1, 1], [], []>} : vector<8x32xf32>, vector<32x32xf32>, vector<8x32xf32> -> vector<8x32xf32>
    %247 = arith.addf %235, %246 : vector<8x32xf32>
    %248 = vector.broadcast %38 : vector<1x32xf32> to vector<8x32xf32>
    %249 = arith.addf %247, %248 : vector<8x32xf32>
    %250 = arith.negf %249 : vector<8x32xf32>
    %251 = math.exp %250 : vector<8x32xf32>
    %cst_58 = arith.constant 1.000000e+00 : f32
    %252 = vector.broadcast %cst_58 : f32 to vector<8x32xf32>
    %253 = arith.addf %252, %251 : vector<8x32xf32>
    %254 = arith.divf %252, %253 : vector<8x32xf32>
    %cst_59 = arith.constant dense<0.000000e+00> : vector<8x32xf32>
    %255 = tpu.matmul %233, %34, %cst_59 {dimension_numbers = #tpu.dot_dimension_numbers<[1], [0], [0], [1], [0, 0, 1, 1], [], []>} : vector<8x32xf32>, vector<32x32xf32>, vector<8x32xf32> -> vector<8x32xf32>
    %256 = vector.broadcast %40 : vector<1x32xf32> to vector<8x32xf32>
    %257 = arith.addf %255, %256 : vector<8x32xf32>
    %258 = arith.mulf %245, %257 : vector<8x32xf32>
    %259 = arith.addf %236, %258 : vector<8x32xf32>
    %260 = math.tanh %259 : vector<8x32xf32>
    %cst_60 = arith.constant 1.000000e+00 : f32
    %261 = vector.broadcast %cst_60 : f32 to vector<8x32xf32>
    %262 = arith.subf %261, %254 : vector<8x32xf32>
    %263 = arith.mulf %262, %260 : vector<8x32xf32>
    %264 = arith.mulf %254, %233 : vector<8x32xf32>
    %265 = arith.addf %263, %264 : vector<8x32xf32>
    %266 = vector.extract_strided_slice %10 {offsets = [56, 0], sizes = [8, 32], strides = [1, 1]} : vector<64x32xf32> to vector<8x32xf32>
    %267 = vector.extract_strided_slice %17 {offsets = [56, 0], sizes = [8, 32], strides = [1, 1]} : vector<64x32xf32> to vector<8x32xf32>
    %268 = vector.extract_strided_slice %24 {offsets = [56, 0], sizes = [8, 32], strides = [1, 1]} : vector<64x32xf32> to vector<8x32xf32>
    %cst_61 = arith.constant dense<0.000000e+00> : vector<8x32xf32>
    %269 = tpu.matmul %265, %30, %cst_61 {dimension_numbers = #tpu.dot_dimension_numbers<[1], [0], [0], [1], [0, 0, 1, 1], [], []>} : vector<8x32xf32>, vector<32x32xf32>, vector<8x32xf32> -> vector<8x32xf32>
    %270 = arith.addf %266, %269 : vector<8x32xf32>
    %271 = vector.broadcast %36 : vector<1x32xf32> to vector<8x32xf32>
    %272 = arith.addf %270, %271 : vector<8x32xf32>
    %273 = arith.negf %272 : vector<8x32xf32>
    %274 = math.exp %273 : vector<8x32xf32>
    %cst_62 = arith.constant 1.000000e+00 : f32
    %275 = vector.broadcast %cst_62 : f32 to vector<8x32xf32>
    %276 = arith.addf %275, %274 : vector<8x32xf32>
    %277 = arith.divf %275, %276 : vector<8x32xf32>
    %cst_63 = arith.constant dense<0.000000e+00> : vector<8x32xf32>
    %278 = tpu.matmul %265, %32, %cst_63 {dimension_numbers = #tpu.dot_dimension_numbers<[1], [0], [0], [1], [0, 0, 1, 1], [], []>} : vector<8x32xf32>, vector<32x32xf32>, vector<8x32xf32> -> vector<8x32xf32>
    %279 = arith.addf %267, %278 : vector<8x32xf32>
    %280 = vector.broadcast %38 : vector<1x32xf32> to vector<8x32xf32>
    %281 = arith.addf %279, %280 : vector<8x32xf32>
    %282 = arith.negf %281 : vector<8x32xf32>
    %283 = math.exp %282 : vector<8x32xf32>
    %cst_64 = arith.constant 1.000000e+00 : f32
    %284 = vector.broadcast %cst_64 : f32 to vector<8x32xf32>
    %285 = arith.addf %284, %283 : vector<8x32xf32>
    %286 = arith.divf %284, %285 : vector<8x32xf32>
    %cst_65 = arith.constant dense<0.000000e+00> : vector<8x32xf32>
    %287 = tpu.matmul %265, %34, %cst_65 {dimension_numbers = #tpu.dot_dimension_numbers<[1], [0], [0], [1], [0, 0, 1, 1], [], []>} : vector<8x32xf32>, vector<32x32xf32>, vector<8x32xf32> -> vector<8x32xf32>
    %288 = vector.broadcast %40 : vector<1x32xf32> to vector<8x32xf32>
    %289 = arith.addf %287, %288 : vector<8x32xf32>
    %290 = arith.mulf %277, %289 : vector<8x32xf32>
    %291 = arith.addf %268, %290 : vector<8x32xf32>
    %292 = math.tanh %291 : vector<8x32xf32>
    %cst_66 = arith.constant 1.000000e+00 : f32
    %293 = vector.broadcast %cst_66 : f32 to vector<8x32xf32>
    %294 = arith.subf %293, %286 : vector<8x32xf32>
    %295 = arith.mulf %294, %292 : vector<8x32xf32>
    %296 = arith.mulf %286, %265 : vector<8x32xf32>
    %297 = arith.addf %295, %296 : vector<8x32xf32>
    %298 = tpu.concatenate %73, %105, %137, %169, %201, %233, %265, %297 in 0 : vector<8x32xf32>, vector<8x32xf32>, vector<8x32xf32>, vector<8x32xf32>, vector<8x32xf32>, vector<8x32xf32>, vector<8x32xf32>, vector<8x32xf32> -> vector<64x32xf32>
    %c0_67 = arith.constant 0 : index
    %c0_68 = arith.constant 0 : index
    %299 = vector.load %arg6[%c0_67, %c0_68] : memref<64x32xf32, #tpu.memory_space<vmem>>, vector<64x32xf32>
    tpu.vector_store %arg6[%c0_67, %c0_68], %298 {strides = array<i32>} : memref<64x32xf32, #tpu.memory_space<vmem>>, vector<64x32xf32>,
    %c0_69 = arith.constant 0 : index
    %c0_70 = arith.constant 0 : index
    %c0_71 = arith.constant 0 : index
    %300 = vector.load %arg7[%c0_69, %c0_70, %c0_71] : memref<2x8x32xf32, #tpu.memory_space<vmem>>, vector<1x8x32xf32>
    %301 = vector.shape_cast %300 : vector<1x8x32xf32> to vector<8x32xf32>
    %302 = vector.shape_cast %297 : vector<8x32xf32> to vector<1x8x32xf32>
    tpu.vector_store %arg7[%c0_69, %c0_70, %c0_71], %302 {strides = array<i32>} : memref<2x8x32xf32, #tpu.memory_space<vmem>>, vector<1x8x32xf32>,
    %c0_72 = arith.constant 0 : index
    %c0_73 = arith.constant 0 : index
    %303 = vector.load %arg6[%c0_72, %c0_73] : memref<64x32xf32, #tpu.memory_space<vmem>>, vector<64x32xf32>
    %c0_74 = arith.constant 0 : index
    %c0_75 = arith.constant 0 : index
    %c0_76 = arith.constant 0 : index
    %c0_77 = arith.constant 0 : index
    %304 = vector.load %arg2[%c0_74, %c0_75, %c0_76, %c0_77] : memref<1x3x32x32xf32, #tpu.memory_space<vmem>>, vector<1x3x32x32xf32>
    %305 = vector.shape_cast %304 : vector<1x3x32x32xf32> to vector<3x32x32xf32>
    %c1 = arith.constant 1 : index
    %c0_78 = arith.constant 0 : index
    %c0_79 = arith.constant 0 : index
    %c0_80 = arith.constant 0 : index
    %306 = vector.load %arg4[%c1, %c0_78, %c0_79, %c0_80] : memref<2x3x1x32xf32, #tpu.memory_space<vmem>>, vector<1x3x1x32xf32>
    %307 = vector.shape_cast %306 : vector<1x3x1x32xf32> to vector<3x1x32xf32>
    %308 = vector.extract_strided_slice %305 {offsets = [0, 0, 0], sizes = [1, 32, 32], strides = [1, 1, 1]} : vector<3x32x32xf32> to vector<1x32x32xf32>
    %309 = vector.shape_cast %308 : vector<1x32x32xf32> to vector<32x32xf32>
    %cst_81 = arith.constant dense<0.000000e+00> : vector<64x32xf32>
    %310 = tpu.matmul %303, %309, %cst_81 {dimension_numbers = #tpu.dot_dimension_numbers<[1], [0], [0], [1], [0, 0, 1, 1], [], []>} : vector<64x32xf32>, vector<32x32xf32>, vector<64x32xf32> -> vector<64x32xf32>
    %311 = vector.extract_strided_slice %307 {offsets = [0, 0, 0], sizes = [1, 1, 32], strides = [1, 1, 1]} : vector<3x1x32xf32> to vector<1x1x32xf32>
    %312 = vector.shape_cast %311 : vector<1x1x32xf32> to vector<1x32xf32>
    %313 = vector.broadcast %312 : vector<1x32xf32> to vector<64x32xf32>
    %314 = arith.addf %310, %313 : vector<64x32xf32>
    %315 = vector.extract_strided_slice %305 {offsets = [1, 0, 0], sizes = [1, 32, 32], strides = [1, 1, 1]} : vector<3x32x32xf32> to vector<1x32x32xf32>
    %316 = vector.shape_cast %315 : vector<1x32x32xf32> to vector<32x32xf32>
    %cst_82 = arith.constant dense<0.000000e+00> : vector<64x32xf32>
    %317 = tpu.matmul %303, %316, %cst_82 {dimension_numbers = #tpu.dot_dimension_numbers<[1], [0], [0], [1], [0, 0, 1, 1], [], []>} : vector<64x32xf32>, vector<32x32xf32>, vector<64x32xf32> -> vector<64x32xf32>
    %318 = vector.extract_strided_slice %307 {offsets = [1, 0, 0], sizes = [1, 1, 32], strides = [1, 1, 1]} : vector<3x1x32xf32> to vector<1x1x32xf32>
    %319 = vector.shape_cast %318 : vector<1x1x32xf32> to vector<1x32xf32>
    %320 = vector.broadcast %319 : vector<1x32xf32> to vector<64x32xf32>
    %321 = arith.addf %317, %320 : vector<64x32xf32>
    %322 = vector.extract_strided_slice %305 {offsets = [2, 0, 0], sizes = [1, 32, 32], strides = [1, 1, 1]} : vector<3x32x32xf32> to vector<1x32x32xf32>
    %323 = vector.shape_cast %322 : vector<1x32x32xf32> to vector<32x32xf32>
    %cst_83 = arith.constant dense<0.000000e+00> : vector<64x32xf32>
    %324 = tpu.matmul %303, %323, %cst_83 {dimension_numbers = #tpu.dot_dimension_numbers<[1], [0], [0], [1], [0, 0, 1, 1], [], []>} : vector<64x32xf32>, vector<32x32xf32>, vector<64x32xf32> -> vector<64x32xf32>
    %325 = vector.extract_strided_slice %307 {offsets = [2, 0, 0], sizes = [1, 1, 32], strides = [1, 1, 1]} : vector<3x1x32xf32> to vector<1x1x32xf32>
    %326 = vector.shape_cast %325 : vector<1x1x32xf32> to vector<1x32xf32>
    %327 = vector.broadcast %326 : vector<1x32xf32> to vector<64x32xf32>
    %328 = arith.addf %324, %327 : vector<64x32xf32>
    %c1_84 = arith.constant 1 : index
    %c0_85 = arith.constant 0 : index
    %c0_86 = arith.constant 0 : index
    %c0_87 = arith.constant 0 : index
    %329 = vector.load %arg3[%c1_84, %c0_85, %c0_86, %c0_87] : memref<2x3x32x32xf32, #tpu.memory_space<vmem>>, vector<1x3x32x32xf32>
    %330 = vector.shape_cast %329 : vector<1x3x32x32xf32> to vector<3x32x32xf32>
    %c1_88 = arith.constant 1 : index
    %c0_89 = arith.constant 0 : index
    %c0_90 = arith.constant 0 : index
    %c0_91 = arith.constant 0 : index
    %331 = vector.load %arg5[%c1_88, %c0_89, %c0_90, %c0_91] : memref<2x3x1x32xf32, #tpu.memory_space<vmem>>, vector<1x3x1x32xf32>
    %332 = vector.shape_cast %331 : vector<1x3x1x32xf32> to vector<3x1x32xf32>
    %333 = vector.extract_strided_slice %330 {offsets = [0, 0, 0], sizes = [1, 32, 32], strides = [1, 1, 1]} : vector<3x32x32xf32> to vector<1x32x32xf32>
    %334 = vector.shape_cast %333 : vector<1x32x32xf32> to vector<32x32xf32>
    %335 = vector.extract_strided_slice %330 {offsets = [1, 0, 0], sizes = [1, 32, 32], strides = [1, 1, 1]} : vector<3x32x32xf32> to vector<1x32x32xf32>
    %336 = vector.shape_cast %335 : vector<1x32x32xf32> to vector<32x32xf32>
    %337 = vector.extract_strided_slice %330 {offsets = [2, 0, 0], sizes = [1, 32, 32], strides = [1, 1, 1]} : vector<3x32x32xf32> to vector<1x32x32xf32>
    %338 = vector.shape_cast %337 : vector<1x32x32xf32> to vector<32x32xf32>
    %339 = vector.extract_strided_slice %332 {offsets = [0, 0, 0], sizes = [1, 1, 32], strides = [1, 1, 1]} : vector<3x1x32xf32> to vector<1x1x32xf32>
    %340 = vector.shape_cast %339 : vector<1x1x32xf32> to vector<1x32xf32>
    %341 = vector.extract_strided_slice %332 {offsets = [1, 0, 0], sizes = [1, 1, 32], strides = [1, 1, 1]} : vector<3x1x32xf32> to vector<1x1x32xf32>
    %342 = vector.shape_cast %341 : vector<1x1x32xf32> to vector<1x32xf32>
    %343 = vector.extract_strided_slice %332 {offsets = [2, 0, 0], sizes = [1, 1, 32], strides = [1, 1, 1]} : vector<3x1x32xf32> to vector<1x1x32xf32>
    %344 = vector.shape_cast %343 : vector<1x1x32xf32> to vector<1x32xf32>
    %cst_92 = arith.constant 0.000000e+00 : f32
    %345 = vector.broadcast %cst_92 : f32 to vector<8x32xf32>
    %346 = vector.extract_strided_slice %314 {offsets = [0, 0], sizes = [8, 32], strides = [1, 1]} : vector<64x32xf32> to vector<8x32xf32>
    %347 = vector.extract_strided_slice %321 {offsets = [0, 0], sizes = [8, 32], strides = [1, 1]} : vector<64x32xf32> to vector<8x32xf32>
    %348 = vector.extract_strided_slice %328 {offsets = [0, 0], sizes = [8, 32], strides = [1, 1]} : vector<64x32xf32> to vector<8x32xf32>
    %cst_93 = arith.constant dense<0.000000e+00> : vector<8x32xf32>
    %349 = tpu.matmul %345, %334, %cst_93 {dimension_numbers = #tpu.dot_dimension_numbers<[1], [0], [0], [1], [0, 0, 1, 1], [], []>} : vector<8x32xf32>, vector<32x32xf32>, vector<8x32xf32> -> vector<8x32xf32>
    %350 = arith.addf %346, %349 : vector<8x32xf32>
    %351 = vector.broadcast %340 : vector<1x32xf32> to vector<8x32xf32>
    %352 = arith.addf %350, %351 : vector<8x32xf32>
    %353 = arith.negf %352 : vector<8x32xf32>
    %354 = math.exp %353 : vector<8x32xf32>
    %cst_94 = arith.constant 1.000000e+00 : f32
    %355 = vector.broadcast %cst_94 : f32 to vector<8x32xf32>
    %356 = arith.addf %355, %354 : vector<8x32xf32>
    %357 = arith.divf %355, %356 : vector<8x32xf32>
    %cst_95 = arith.constant dense<0.000000e+00> : vector<8x32xf32>
    %358 = tpu.matmul %345, %336, %cst_95 {dimension_numbers = #tpu.dot_dimension_numbers<[1], [0], [0], [1], [0, 0, 1, 1], [], []>} : vector<8x32xf32>, vector<32x32xf32>, vector<8x32xf32> -> vector<8x32xf32>
    %359 = arith.addf %347, %358 : vector<8x32xf32>
    %360 = vector.broadcast %342 : vector<1x32xf32> to vector<8x32xf32>
    %361 = arith.addf %359, %360 : vector<8x32xf32>
    %362 = arith.negf %361 : vector<8x32xf32>
    %363 = math.exp %362 : vector<8x32xf32>
    %cst_96 = arith.constant 1.000000e+00 : f32
    %364 = vector.broadcast %cst_96 : f32 to vector<8x32xf32>
    %365 = arith.addf %364, %363 : vector<8x32xf32>
    %366 = arith.divf %364, %365 : vector<8x32xf32>
    %cst_97 = arith.constant dense<0.000000e+00> : vector<8x32xf32>
    %367 = tpu.matmul %345, %338, %cst_97 {dimension_numbers = #tpu.dot_dimension_numbers<[1], [0], [0], [1], [0, 0, 1, 1], [], []>} : vector<8x32xf32>, vector<32x32xf32>, vector<8x32xf32> -> vector<8x32xf32>
    %368 = vector.broadcast %344 : vector<1x32xf32> to vector<8x32xf32>
    %369 = arith.addf %367, %368 : vector<8x32xf32>
    %370 = arith.mulf %357, %369 : vector<8x32xf32>
    %371 = arith.addf %348, %370 : vector<8x32xf32>
    %372 = math.tanh %371 : vector<8x32xf32>
    %cst_98 = arith.constant 1.000000e+00 : f32
    %373 = vector.broadcast %cst_98 : f32 to vector<8x32xf32>
    %374 = arith.subf %373, %366 : vector<8x32xf32>
    %375 = arith.mulf %374, %372 : vector<8x32xf32>
    %376 = arith.mulf %366, %345 : vector<8x32xf32>
    %377 = arith.addf %375, %376 : vector<8x32xf32>
    %378 = vector.extract_strided_slice %314 {offsets = [8, 0], sizes = [8, 32], strides = [1, 1]} : vector<64x32xf32> to vector<8x32xf32>
    %379 = vector.extract_strided_slice %321 {offsets = [8, 0], sizes = [8, 32], strides = [1, 1]} : vector<64x32xf32> to vector<8x32xf32>
    %380 = vector.extract_strided_slice %328 {offsets = [8, 0], sizes = [8, 32], strides = [1, 1]} : vector<64x32xf32> to vector<8x32xf32>
    %cst_99 = arith.constant dense<0.000000e+00> : vector<8x32xf32>
    %381 = tpu.matmul %377, %334, %cst_99 {dimension_numbers = #tpu.dot_dimension_numbers<[1], [0], [0], [1], [0, 0, 1, 1], [], []>} : vector<8x32xf32>, vector<32x32xf32>, vector<8x32xf32> -> vector<8x32xf32>
    %382 = arith.addf %378, %381 : vector<8x32xf32>
    %383 = vector.broadcast %340 : vector<1x32xf32> to vector<8x32xf32>
    %384 = arith.addf %382, %383 : vector<8x32xf32>
    %385 = arith.negf %384 : vector<8x32xf32>
    %386 = math.exp %385 : vector<8x32xf32>
    %cst_100 = arith.constant 1.000000e+00 : f32
    %387 = vector.broadcast %cst_100 : f32 to vector<8x32xf32>
    %388 = arith.addf %387, %386 : vector<8x32xf32>
    %389 = arith.divf %387, %388 : vector<8x32xf32>
    %cst_101 = arith.constant dense<0.000000e+00> : vector<8x32xf32>
    %390 = tpu.matmul %377, %336, %cst_101 {dimension_numbers = #tpu.dot_dimension_numbers<[1], [0], [0], [1], [0, 0, 1, 1], [], []>} : vector<8x32xf32>, vector<32x32xf32>, vector<8x32xf32> -> vector<8x32xf32>
    %391 = arith.addf %379, %390 : vector<8x32xf32>
    %392 = vector.broadcast %342 : vector<1x32xf32> to vector<8x32xf32>
    %393 = arith.addf %391, %392 : vector<8x32xf32>
    %394 = arith.negf %393 : vector<8x32xf32>
    %395 = math.exp %394 : vector<8x32xf32>
    %cst_102 = arith.constant 1.000000e+00 : f32
    %396 = vector.broadcast %cst_102 : f32 to vector<8x32xf32>
    %397 = arith.addf %396, %395 : vector<8x32xf32>
    %398 = arith.divf %396, %397 : vector<8x32xf32>
    %cst_103 = arith.constant dense<0.000000e+00> : vector<8x32xf32>
    %399 = tpu.matmul %377, %338, %cst_103 {dimension_numbers = #tpu.dot_dimension_numbers<[1], [0], [0], [1], [0, 0, 1, 1], [], []>} : vector<8x32xf32>, vector<32x32xf32>, vector<8x32xf32> -> vector<8x32xf32>
    %400 = vector.broadcast %344 : vector<1x32xf32> to vector<8x32xf32>
    %401 = arith.addf %399, %400 : vector<8x32xf32>
    %402 = arith.mulf %389, %401 : vector<8x32xf32>
    %403 = arith.addf %380, %402 : vector<8x32xf32>
    %404 = math.tanh %403 : vector<8x32xf32>
    %cst_104 = arith.constant 1.000000e+00 : f32
    %405 = vector.broadcast %cst_104 : f32 to vector<8x32xf32>
    %406 = arith.subf %405, %398 : vector<8x32xf32>
    %407 = arith.mulf %406, %404 : vector<8x32xf32>
    %408 = arith.mulf %398, %377 : vector<8x32xf32>
    %409 = arith.addf %407, %408 : vector<8x32xf32>
    %410 = vector.extract_strided_slice %314 {offsets = [16, 0], sizes = [8, 32], strides = [1, 1]} : vector<64x32xf32> to vector<8x32xf32>
    %411 = vector.extract_strided_slice %321 {offsets = [16, 0], sizes = [8, 32], strides = [1, 1]} : vector<64x32xf32> to vector<8x32xf32>
    %412 = vector.extract_strided_slice %328 {offsets = [16, 0], sizes = [8, 32], strides = [1, 1]} : vector<64x32xf32> to vector<8x32xf32>
    %cst_105 = arith.constant dense<0.000000e+00> : vector<8x32xf32>
    %413 = tpu.matmul %409, %334, %cst_105 {dimension_numbers = #tpu.dot_dimension_numbers<[1], [0], [0], [1], [0, 0, 1, 1], [], []>} : vector<8x32xf32>, vector<32x32xf32>, vector<8x32xf32> -> vector<8x32xf32>
    %414 = arith.addf %410, %413 : vector<8x32xf32>
    %415 = vector.broadcast %340 : vector<1x32xf32> to vector<8x32xf32>
    %416 = arith.addf %414, %415 : vector<8x32xf32>
    %417 = arith.negf %416 : vector<8x32xf32>
    %418 = math.exp %417 : vector<8x32xf32>
    %cst_106 = arith.constant 1.000000e+00 : f32
    %419 = vector.broadcast %cst_106 : f32 to vector<8x32xf32>
    %420 = arith.addf %419, %418 : vector<8x32xf32>
    %421 = arith.divf %419, %420 : vector<8x32xf32>
    %cst_107 = arith.constant dense<0.000000e+00> : vector<8x32xf32>
    %422 = tpu.matmul %409, %336, %cst_107 {dimension_numbers = #tpu.dot_dimension_numbers<[1], [0], [0], [1], [0, 0, 1, 1], [], []>} : vector<8x32xf32>, vector<32x32xf32>, vector<8x32xf32> -> vector<8x32xf32>
    %423 = arith.addf %411, %422 : vector<8x32xf32>
    %424 = vector.broadcast %342 : vector<1x32xf32> to vector<8x32xf32>
    %425 = arith.addf %423, %424 : vector<8x32xf32>
    %426 = arith.negf %425 : vector<8x32xf32>
    %427 = math.exp %426 : vector<8x32xf32>
    %cst_108 = arith.constant 1.000000e+00 : f32
    %428 = vector.broadcast %cst_108 : f32 to vector<8x32xf32>
    %429 = arith.addf %428, %427 : vector<8x32xf32>
    %430 = arith.divf %428, %429 : vector<8x32xf32>
    %cst_109 = arith.constant dense<0.000000e+00> : vector<8x32xf32>
    %431 = tpu.matmul %409, %338, %cst_109 {dimension_numbers = #tpu.dot_dimension_numbers<[1], [0], [0], [1], [0, 0, 1, 1], [], []>} : vector<8x32xf32>, vector<32x32xf32>, vector<8x32xf32> -> vector<8x32xf32>
    %432 = vector.broadcast %344 : vector<1x32xf32> to vector<8x32xf32>
    %433 = arith.addf %431, %432 : vector<8x32xf32>
    %434 = arith.mulf %421, %433 : vector<8x32xf32>
    %435 = arith.addf %412, %434 : vector<8x32xf32>
    %436 = math.tanh %435 : vector<8x32xf32>
    %cst_110 = arith.constant 1.000000e+00 : f32
    %437 = vector.broadcast %cst_110 : f32 to vector<8x32xf32>
    %438 = arith.subf %437, %430 : vector<8x32xf32>
    %439 = arith.mulf %438, %436 : vector<8x32xf32>
    %440 = arith.mulf %430, %409 : vector<8x32xf32>
    %441 = arith.addf %439, %440 : vector<8x32xf32>
    %442 = vector.extract_strided_slice %314 {offsets = [24, 0], sizes = [8, 32], strides = [1, 1]} : vector<64x32xf32> to vector<8x32xf32>
    %443 = vector.extract_strided_slice %321 {offsets = [24, 0], sizes = [8, 32], strides = [1, 1]} : vector<64x32xf32> to vector<8x32xf32>
    %444 = vector.extract_strided_slice %328 {offsets = [24, 0], sizes = [8, 32], strides = [1, 1]} : vector<64x32xf32> to vector<8x32xf32>
    %cst_111 = arith.constant dense<0.000000e+00> : vector<8x32xf32>
    %445 = tpu.matmul %441, %334, %cst_111 {dimension_numbers = #tpu.dot_dimension_numbers<[1], [0], [0], [1], [0, 0, 1, 1], [], []>} : vector<8x32xf32>, vector<32x32xf32>, vector<8x32xf32> -> vector<8x32xf32>
    %446 = arith.addf %442, %445 : vector<8x32xf32>
    %447 = vector.broadcast %340 : vector<1x32xf32> to vector<8x32xf32>
    %448 = arith.addf %446, %447 : vector<8x32xf32>
    %449 = arith.negf %448 : vector<8x32xf32>
    %450 = math.exp %449 : vector<8x32xf32>
    %cst_112 = arith.constant 1.000000e+00 : f32
    %451 = vector.broadcast %cst_112 : f32 to vector<8x32xf32>
    %452 = arith.addf %451, %450 : vector<8x32xf32>
    %453 = arith.divf %451, %452 : vector<8x32xf32>
    %cst_113 = arith.constant dense<0.000000e+00> : vector<8x32xf32>
    %454 = tpu.matmul %441, %336, %cst_113 {dimension_numbers = #tpu.dot_dimension_numbers<[1], [0], [0], [1], [0, 0, 1, 1], [], []>} : vector<8x32xf32>, vector<32x32xf32>, vector<8x32xf32> -> vector<8x32xf32>
    %455 = arith.addf %443, %454 : vector<8x32xf32>
    %456 = vector.broadcast %342 : vector<1x32xf32> to vector<8x32xf32>
    %457 = arith.addf %455, %456 : vector<8x32xf32>
    %458 = arith.negf %457 : vector<8x32xf32>
    %459 = math.exp %458 : vector<8x32xf32>
    %cst_114 = arith.constant 1.000000e+00 : f32
    %460 = vector.broadcast %cst_114 : f32 to vector<8x32xf32>
    %461 = arith.addf %460, %459 : vector<8x32xf32>
    %462 = arith.divf %460, %461 : vector<8x32xf32>
    %cst_115 = arith.constant dense<0.000000e+00> : vector<8x32xf32>
    %463 = tpu.matmul %441, %338, %cst_115 {dimension_numbers = #tpu.dot_dimension_numbers<[1], [0], [0], [1], [0, 0, 1, 1], [], []>} : vector<8x32xf32>, vector<32x32xf32>, vector<8x32xf32> -> vector<8x32xf32>
    %464 = vector.broadcast %344 : vector<1x32xf32> to vector<8x32xf32>
    %465 = arith.addf %463, %464 : vector<8x32xf32>
    %466 = arith.mulf %453, %465 : vector<8x32xf32>
    %467 = arith.addf %444, %466 : vector<8x32xf32>
    %468 = math.tanh %467 : vector<8x32xf32>
    %cst_116 = arith.constant 1.000000e+00 : f32
    %469 = vector.broadcast %cst_116 : f32 to vector<8x32xf32>
    %470 = arith.subf %469, %462 : vector<8x32xf32>
    %471 = arith.mulf %470, %468 : vector<8x32xf32>
    %472 = arith.mulf %462, %441 : vector<8x32xf32>
    %473 = arith.addf %471, %472 : vector<8x32xf32>
    %474 = vector.extract_strided_slice %314 {offsets = [32, 0], sizes = [8, 32], strides = [1, 1]} : vector<64x32xf32> to vector<8x32xf32>
    %475 = vector.extract_strided_slice %321 {offsets = [32, 0], sizes = [8, 32], strides = [1, 1]} : vector<64x32xf32> to vector<8x32xf32>
    %476 = vector.extract_strided_slice %328 {offsets = [32, 0], sizes = [8, 32], strides = [1, 1]} : vector<64x32xf32> to vector<8x32xf32>
    %cst_117 = arith.constant dense<0.000000e+00> : vector<8x32xf32>
    %477 = tpu.matmul %473, %334, %cst_117 {dimension_numbers = #tpu.dot_dimension_numbers<[1], [0], [0], [1], [0, 0, 1, 1], [], []>} : vector<8x32xf32>, vector<32x32xf32>, vector<8x32xf32> -> vector<8x32xf32>
    %478 = arith.addf %474, %477 : vector<8x32xf32>
    %479 = vector.broadcast %340 : vector<1x32xf32> to vector<8x32xf32>
    %480 = arith.addf %478, %479 : vector<8x32xf32>
    %481 = arith.negf %480 : vector<8x32xf32>
    %482 = math.exp %481 : vector<8x32xf32>
    %cst_118 = arith.constant 1.000000e+00 : f32
    %483 = vector.broadcast %cst_118 : f32 to vector<8x32xf32>
    %484 = arith.addf %483, %482 : vector<8x32xf32>
    %485 = arith.divf %483, %484 : vector<8x32xf32>
    %cst_119 = arith.constant dense<0.000000e+00> : vector<8x32xf32>
    %486 = tpu.matmul %473, %336, %cst_119 {dimension_numbers = #tpu.dot_dimension_numbers<[1], [0], [0], [1], [0, 0, 1, 1], [], []>} : vector<8x32xf32>, vector<32x32xf32>, vector<8x32xf32> -> vector<8x32xf32>
    %487 = arith.addf %475, %486 : vector<8x32xf32>
    %488 = vector.broadcast %342 : vector<1x32xf32> to vector<8x32xf32>
    %489 = arith.addf %487, %488 : vector<8x32xf32>
    %490 = arith.negf %489 : vector<8x32xf32>
    %491 = math.exp %490 : vector<8x32xf32>
    %cst_120 = arith.constant 1.000000e+00 : f32
    %492 = vector.broadcast %cst_120 : f32 to vector<8x32xf32>
    %493 = arith.addf %492, %491 : vector<8x32xf32>
    %494 = arith.divf %492, %493 : vector<8x32xf32>
    %cst_121 = arith.constant dense<0.000000e+00> : vector<8x32xf32>
    %495 = tpu.matmul %473, %338, %cst_121 {dimension_numbers = #tpu.dot_dimension_numbers<[1], [0], [0], [1], [0, 0, 1, 1], [], []>} : vector<8x32xf32>, vector<32x32xf32>, vector<8x32xf32> -> vector<8x32xf32>
    %496 = vector.broadcast %344 : vector<1x32xf32> to vector<8x32xf32>
    %497 = arith.addf %495, %496 : vector<8x32xf32>
    %498 = arith.mulf %485, %497 : vector<8x32xf32>
    %499 = arith.addf %476, %498 : vector<8x32xf32>
    %500 = math.tanh %499 : vector<8x32xf32>
    %cst_122 = arith.constant 1.000000e+00 : f32
    %501 = vector.broadcast %cst_122 : f32 to vector<8x32xf32>
    %502 = arith.subf %501, %494 : vector<8x32xf32>
    %503 = arith.mulf %502, %500 : vector<8x32xf32>
    %504 = arith.mulf %494, %473 : vector<8x32xf32>
    %505 = arith.addf %503, %504 : vector<8x32xf32>
    %506 = vector.extract_strided_slice %314 {offsets = [40, 0], sizes = [8, 32], strides = [1, 1]} : vector<64x32xf32> to vector<8x32xf32>
    %507 = vector.extract_strided_slice %321 {offsets = [40, 0], sizes = [8, 32], strides = [1, 1]} : vector<64x32xf32> to vector<8x32xf32>
    %508 = vector.extract_strided_slice %328 {offsets = [40, 0], sizes = [8, 32], strides = [1, 1]} : vector<64x32xf32> to vector<8x32xf32>
    %cst_123 = arith.constant dense<0.000000e+00> : vector<8x32xf32>
    %509 = tpu.matmul %505, %334, %cst_123 {dimension_numbers = #tpu.dot_dimension_numbers<[1], [0], [0], [1], [0, 0, 1, 1], [], []>} : vector<8x32xf32>, vector<32x32xf32>, vector<8x32xf32> -> vector<8x32xf32>
    %510 = arith.addf %506, %509 : vector<8x32xf32>
    %511 = vector.broadcast %340 : vector<1x32xf32> to vector<8x32xf32>
    %512 = arith.addf %510, %511 : vector<8x32xf32>
    %513 = arith.negf %512 : vector<8x32xf32>
    %514 = math.exp %513 : vector<8x32xf32>
    %cst_124 = arith.constant 1.000000e+00 : f32
    %515 = vector.broadcast %cst_124 : f32 to vector<8x32xf32>
    %516 = arith.addf %515, %514 : vector<8x32xf32>
    %517 = arith.divf %515, %516 : vector<8x32xf32>
    %cst_125 = arith.constant dense<0.000000e+00> : vector<8x32xf32>
    %518 = tpu.matmul %505, %336, %cst_125 {dimension_numbers = #tpu.dot_dimension_numbers<[1], [0], [0], [1], [0, 0, 1, 1], [], []>} : vector<8x32xf32>, vector<32x32xf32>, vector<8x32xf32> -> vector<8x32xf32>
    %519 = arith.addf %507, %518 : vector<8x32xf32>
    %520 = vector.broadcast %342 : vector<1x32xf32> to vector<8x32xf32>
    %521 = arith.addf %519, %520 : vector<8x32xf32>
    %522 = arith.negf %521 : vector<8x32xf32>
    %523 = math.exp %522 : vector<8x32xf32>
    %cst_126 = arith.constant 1.000000e+00 : f32
    %524 = vector.broadcast %cst_126 : f32 to vector<8x32xf32>
    %525 = arith.addf %524, %523 : vector<8x32xf32>
    %526 = arith.divf %524, %525 : vector<8x32xf32>
    %cst_127 = arith.constant dense<0.000000e+00> : vector<8x32xf32>
    %527 = tpu.matmul %505, %338, %cst_127 {dimension_numbers = #tpu.dot_dimension_numbers<[1], [0], [0], [1], [0, 0, 1, 1], [], []>} : vector<8x32xf32>, vector<32x32xf32>, vector<8x32xf32> -> vector<8x32xf32>
    %528 = vector.broadcast %344 : vector<1x32xf32> to vector<8x32xf32>
    %529 = arith.addf %527, %528 : vector<8x32xf32>
    %530 = arith.mulf %517, %529 : vector<8x32xf32>
    %531 = arith.addf %508, %530 : vector<8x32xf32>
    %532 = math.tanh %531 : vector<8x32xf32>
    %cst_128 = arith.constant 1.000000e+00 : f32
    %533 = vector.broadcast %cst_128 : f32 to vector<8x32xf32>
    %534 = arith.subf %533, %526 : vector<8x32xf32>
    %535 = arith.mulf %534, %532 : vector<8x32xf32>
    %536 = arith.mulf %526, %505 : vector<8x32xf32>
    %537 = arith.addf %535, %536 : vector<8x32xf32>
    %538 = vector.extract_strided_slice %314 {offsets = [48, 0], sizes = [8, 32], strides = [1, 1]} : vector<64x32xf32> to vector<8x32xf32>
    %539 = vector.extract_strided_slice %321 {offsets = [48, 0], sizes = [8, 32], strides = [1, 1]} : vector<64x32xf32> to vector<8x32xf32>
    %540 = vector.extract_strided_slice %328 {offsets = [48, 0], sizes = [8, 32], strides = [1, 1]} : vector<64x32xf32> to vector<8x32xf32>
    %cst_129 = arith.constant dense<0.000000e+00> : vector<8x32xf32>
    %541 = tpu.matmul %537, %334, %cst_129 {dimension_numbers = #tpu.dot_dimension_numbers<[1], [0], [0], [1], [0, 0, 1, 1], [], []>} : vector<8x32xf32>, vector<32x32xf32>, vector<8x32xf32> -> vector<8x32xf32>
    %542 = arith.addf %538, %541 : vector<8x32xf32>
    %543 = vector.broadcast %340 : vector<1x32xf32> to vector<8x32xf32>
    %544 = arith.addf %542, %543 : vector<8x32xf32>
    %545 = arith.negf %544 : vector<8x32xf32>
    %546 = math.exp %545 : vector<8x32xf32>
    %cst_130 = arith.constant 1.000000e+00 : f32
    %547 = vector.broadcast %cst_130 : f32 to vector<8x32xf32>
    %548 = arith.addf %547, %546 : vector<8x32xf32>
    %549 = arith.divf %547, %548 : vector<8x32xf32>
    %cst_131 = arith.constant dense<0.000000e+00> : vector<8x32xf32>
    %550 = tpu.matmul %537, %336, %cst_131 {dimension_numbers = #tpu.dot_dimension_numbers<[1], [0], [0], [1], [0, 0, 1, 1], [], []>} : vector<8x32xf32>, vector<32x32xf32>, vector<8x32xf32> -> vector<8x32xf32>
    %551 = arith.addf %539, %550 : vector<8x32xf32>
    %552 = vector.broadcast %342 : vector<1x32xf32> to vector<8x32xf32>
    %553 = arith.addf %551, %552 : vector<8x32xf32>
    %554 = arith.negf %553 : vector<8x32xf32>
    %555 = math.exp %554 : vector<8x32xf32>
    %cst_132 = arith.constant 1.000000e+00 : f32
    %556 = vector.broadcast %cst_132 : f32 to vector<8x32xf32>
    %557 = arith.addf %556, %555 : vector<8x32xf32>
    %558 = arith.divf %556, %557 : vector<8x32xf32>
    %cst_133 = arith.constant dense<0.000000e+00> : vector<8x32xf32>
    %559 = tpu.matmul %537, %338, %cst_133 {dimension_numbers = #tpu.dot_dimension_numbers<[1], [0], [0], [1], [0, 0, 1, 1], [], []>} : vector<8x32xf32>, vector<32x32xf32>, vector<8x32xf32> -> vector<8x32xf32>
    %560 = vector.broadcast %344 : vector<1x32xf32> to vector<8x32xf32>
    %561 = arith.addf %559, %560 : vector<8x32xf32>
    %562 = arith.mulf %549, %561 : vector<8x32xf32>
    %563 = arith.addf %540, %562 : vector<8x32xf32>
    %564 = math.tanh %563 : vector<8x32xf32>
    %cst_134 = arith.constant 1.000000e+00 : f32
    %565 = vector.broadcast %cst_134 : f32 to vector<8x32xf32>
    %566 = arith.subf %565, %558 : vector<8x32xf32>
    %567 = arith.mulf %566, %564 : vector<8x32xf32>
    %568 = arith.mulf %558, %537 : vector<8x32xf32>
    %569 = arith.addf %567, %568 : vector<8x32xf32>
    %570 = vector.extract_strided_slice %314 {offsets = [56, 0], sizes = [8, 32], strides = [1, 1]} : vector<64x32xf32> to vector<8x32xf32>
    %571 = vector.extract_strided_slice %321 {offsets = [56, 0], sizes = [8, 32], strides = [1, 1]} : vector<64x32xf32> to vector<8x32xf32>
    %572 = vector.extract_strided_slice %328 {offsets = [56, 0], sizes = [8, 32], strides = [1, 1]} : vector<64x32xf32> to vector<8x32xf32>
    %cst_135 = arith.constant dense<0.000000e+00> : vector<8x32xf32>
    %573 = tpu.matmul %569, %334, %cst_135 {dimension_numbers = #tpu.dot_dimension_numbers<[1], [0], [0], [1], [0, 0, 1, 1], [], []>} : vector<8x32xf32>, vector<32x32xf32>, vector<8x32xf32> -> vector<8x32xf32>
    %574 = arith.addf %570, %573 : vector<8x32xf32>
    %575 = vector.broadcast %340 : vector<1x32xf32> to vector<8x32xf32>
    %576 = arith.addf %574, %575 : vector<8x32xf32>
    %577 = arith.negf %576 : vector<8x32xf32>
    %578 = math.exp %577 : vector<8x32xf32>
    %cst_136 = arith.constant 1.000000e+00 : f32
    %579 = vector.broadcast %cst_136 : f32 to vector<8x32xf32>
    %580 = arith.addf %579, %578 : vector<8x32xf32>
    %581 = arith.divf %579, %580 : vector<8x32xf32>
    %cst_137 = arith.constant dense<0.000000e+00> : vector<8x32xf32>
    %582 = tpu.matmul %569, %336, %cst_137 {dimension_numbers = #tpu.dot_dimension_numbers<[1], [0], [0], [1], [0, 0, 1, 1], [], []>} : vector<8x32xf32>, vector<32x32xf32>, vector<8x32xf32> -> vector<8x32xf32>
    %583 = arith.addf %571, %582 : vector<8x32xf32>
    %584 = vector.broadcast %342 : vector<1x32xf32> to vector<8x32xf32>
    %585 = arith.addf %583, %584 : vector<8x32xf32>
    %586 = arith.negf %585 : vector<8x32xf32>
    %587 = math.exp %586 : vector<8x32xf32>
    %cst_138 = arith.constant 1.000000e+00 : f32
    %588 = vector.broadcast %cst_138 : f32 to vector<8x32xf32>
    %589 = arith.addf %588, %587 : vector<8x32xf32>
    %590 = arith.divf %588, %589 : vector<8x32xf32>
    %cst_139 = arith.constant dense<0.000000e+00> : vector<8x32xf32>
    %591 = tpu.matmul %569, %338, %cst_139 {dimension_numbers = #tpu.dot_dimension_numbers<[1], [0], [0], [1], [0, 0, 1, 1], [], []>} : vector<8x32xf32>, vector<32x32xf32>, vector<8x32xf32> -> vector<8x32xf32>
    %592 = vector.broadcast %344 : vector<1x32xf32> to vector<8x32xf32>
    %593 = arith.addf %591, %592 : vector<8x32xf32>
    %594 = arith.mulf %581, %593 : vector<8x32xf32>
    %595 = arith.addf %572, %594 : vector<8x32xf32>
    %596 = math.tanh %595 : vector<8x32xf32>
    %cst_140 = arith.constant 1.000000e+00 : f32
    %597 = vector.broadcast %cst_140 : f32 to vector<8x32xf32>
    %598 = arith.subf %597, %590 : vector<8x32xf32>
    %599 = arith.mulf %598, %596 : vector<8x32xf32>
    %600 = arith.mulf %590, %569 : vector<8x32xf32>
    %601 = arith.addf %599, %600 : vector<8x32xf32>
    %602 = tpu.concatenate %377, %409, %441, %473, %505, %537, %569, %601 in 0 : vector<8x32xf32>, vector<8x32xf32>, vector<8x32xf32>, vector<8x32xf32>, vector<8x32xf32>, vector<8x32xf32>, vector<8x32xf32>, vector<8x32xf32> -> vector<64x32xf32>
    %c0_141 = arith.constant 0 : index
    %c0_142 = arith.constant 0 : index
    %603 = vector.load %arg6[%c0_141, %c0_142] : memref<64x32xf32, #tpu.memory_space<vmem>>, vector<64x32xf32>
    tpu.vector_store %arg6[%c0_141, %c0_142], %602 {strides = array<i32>} : memref<64x32xf32, #tpu.memory_space<vmem>>, vector<64x32xf32>,
    %c1_143 = arith.constant 1 : index
    %c0_144 = arith.constant 0 : index
    %c0_145 = arith.constant 0 : index
    %604 = vector.load %arg7[%c1_143, %c0_144, %c0_145] : memref<2x8x32xf32, #tpu.memory_space<vmem>>, vector<1x8x32xf32>
    %605 = vector.shape_cast %604 : vector<1x8x32xf32> to vector<8x32xf32>
    %606 = vector.shape_cast %601 : vector<8x32xf32> to vector<1x8x32xf32>
    tpu.vector_store %arg7[%c1_143, %c0_144, %c0_145], %606 {strides = array<i32>} : memref<2x8x32xf32, #tpu.memory_space<vmem>>, vector<1x8x32xf32>,
    return
  }
}

</mosaic_0001>

<llo_original>
// kernel: tpu_custom_call.1
$region0: #{tpu_custom_call.1}
  #allocation0 [shape = 'u32[]', space=smem, size = 0x4, offset = 0x4, fixed_abs, tag = 'smem constant byte address 0x4 - core index']
  #allocation1 [shape = 'u32[72,128]{1,0:T(1,128)}', space=vmem, size = 0x9000, scoped, tag = 'internal scratch']
  %s0 = inlined_call_operand.vmem [shape: f32[64,48], index: 0, kind: input, shape index: {}]
  %s1 = inlined_call_operand.vmem [shape: f32[3,48,32], index: 1, kind: input, shape index: {}]
  %s2 = inlined_call_operand.hbm [shape: f32[1,3,32,32], index: 2, kind: input, shape index: {}]
  %s3 = inlined_call_operand.vmem [shape: f32[2,3,32,32], index: 3, kind: input, shape index: {}]
  %s4 = inlined_call_operand.vmem [shape: f32[2,3,1,32], index: 4, kind: input, shape index: {}]
  %s5 = inlined_call_operand.vmem [shape: f32[2,3,1,32], index: 5, kind: input, shape index: {}]
  %s6 = inlined_call_operand.vmem [shape: f32[64,32], index: 6, kind: output, shape index: {0}]
  %s7 = inlined_call_operand.hbm [shape: f32[2,8,32], index: 7, kind: output, shape index: {1}]
  %8 = xla_tuple %s6, %s7
  %s9 = sld [smem:[#allocation0]]
  $region46: #{tpu_custom_call.1} parent=0
    _
  %s11 = ssub.s32 1, %s9
  %s12 = scalar_select 0, %s11, %s9
  $region1: #{tpu_custom_call.1} parent=0
    #allocation2 [shape = 'u8[49152]{0}', space=vmem, size = 0xc000, scoped, tag = 'input window, operand 2, single buffered']
    #allocation3 [shape = 's32[1]{0}', space=sflag, size = 0x4, scoped, tag = 'scoped memory for tpu_custom_call.1']
    #allocation4 [shape = 's32[1]{0}', space=sflag, size = 0x4, scoped, tag = 'scoped memory for tpu_custom_call.1']
    #allocation5 [shape = 'u8[8192]{0}', space=vmem, size = 0x2000, scoped, tag = 'output window, operand 1, single buffered']
    %13 = vsyncpa [#allocation3], 0
    %14 = vsyncpa [#allocation4], 0
    // Predicated region
    $region2: #{tpu_custom_call.1} parent=1 // pred_check
      _
    $region3: #{tpu_custom_call.1} parent=1 // pred_check_branch
      %16 = sbr.rel (0) target = $region5
    $region4: #{tpu_custom_call.1} parent=1 // pred_region
      _
    $region5: #{tpu_custom_call.1} parent=1 // pred_fallthru
      _
    // Predicated region
    $region6: #{tpu_custom_call.1} parent=1 // pred_check
      _
    $region7: #{tpu_custom_call.1} parent=1 // pred_check_branch
      %18 = sbr.rel (0) target = $region9
    $region8: #{tpu_custom_call.1} parent=1 // pred_region
      _
    $region9: #{tpu_custom_call.1} parent=1 // pred_fallthru
      _
    // Predicated region
    $region10: #{tpu_custom_call.1} parent=1 // pred_check
      _
    $region11: #{tpu_custom_call.1} parent=1 // pred_check_branch
      %20 = sbr.rel (0) target = $region13
    $region12: #{tpu_custom_call.1} parent=1 // pred_region
      %22 = vsyncadd [#allocation3], 0
      %s23 = sshll.u32 %s2, 4
      %s24 = int_to_ptr.hbm [resolvable:$true] %s23
      %s25 = sshll.u32 [#allocation2], 4
      %s26 = int_to_ptr.vmem [resolvable:$true] %s25
      %31 = dma.hbm_to_vmem [thread:$0]  %s24, 1536, %s26, [#allocation3], 128, 128, 8
    $region13: #{tpu_custom_call.1} parent=1 // pred_fallthru
      _
    // Predicated region
    $region14: #{tpu_custom_call.1} parent=1 // pred_check
      _
    $region15: #{tpu_custom_call.1} parent=1 // pred_check_branch
      %33 = sbr.rel (0) target = $region17
    $region16: #{tpu_custom_call.1} parent=1 // pred_region
      _
    $region17: #{tpu_custom_call.1} parent=1 // pred_fallthru
      _
    // Predicated region
    $region18: #{tpu_custom_call.1} parent=1 // pred_check
      _
    $region19: #{tpu_custom_call.1} parent=1 // pred_check_branch
      %35 = sbr.rel (0) target = $region21
    $region20: #{tpu_custom_call.1} parent=1 // pred_region
      _
    $region21: #{tpu_custom_call.1} parent=1 // pred_fallthru
      _
    // Predicated region
    $region22: #{tpu_custom_call.1} parent=1 // pred_check
      _
    $region23: #{tpu_custom_call.1} parent=1 // pred_check_branch
      %37 = sbr.rel (0) target = $region25
    $region24: #{tpu_custom_call.1} parent=1 // pred_region
      _
    $region25: #{tpu_custom_call.1} parent=1 // pred_fallthru
      _
    // Predicated region
    $region26: #{tpu_custom_call.1} parent=1 // pred_check
      _
    $region27: #{tpu_custom_call.1} parent=1 // pred_check_branch
      %39 = sbr.rel (0) target = $region29
    $region28: #{tpu_custom_call.1} parent=1 // pred_region
      %41 = dma.done [#allocation3], 1536
    $region29: #{tpu_custom_call.1} parent=1 // pred_fallthru
      _
    %v42 = vld [vmem:[%s0] sm:$0xff]
    %v43 = vld [vmem:[%s0 + $0x8] sm:$0xff]
    %v44 = vld [vmem:[%s0 + $0x10] sm:$0xff]
    %v45 = vld [vmem:[%s0 + $0x18] sm:$0xff]
    %v46 = vld [vmem:[%s0 + $0x20] sm:$0xff]
    %v47 = vld [vmem:[%s0 + $0x28] sm:$0xff]
    %v48 = vld [vmem:[%s0 + $0x30] sm:$0xff]
    %v49 = vld [vmem:[%s0 + $0x38] sm:$0xff]
    %v50 = vld [vmem:[%s1] sm:$0xff]
    %v51 = vld [vmem:[%s1 + $0x8] sm:$0xff]
    %v52 = vld [vmem:[%s1 + $0x10] sm:$0xff]
    %v53 = vld [vmem:[%s1 + $0x18] sm:$0xff]
    %v54 = vld [vmem:[%s1 + $0x20] sm:$0xff]
    %v55 = vld [vmem:[%s1 + $0x28] sm:$0xff]
    %v56 = vld [vmem:[%s1 + $0x30] sm:$0xff]
    %v57 = vld [vmem:[%s1 + $0x38] sm:$0xff]
    %v58 = vld [vmem:[%s1 + $0x40] sm:$0xff]
    %v59 = vld [vmem:[%s1 + $0x48] sm:$0xff]
    %v60 = vld [vmem:[%s1 + $0x50] sm:$0xff]
    %v61 = vld [vmem:[%s1 + $0x58] sm:$0xff]
    %v62 = vld [vmem:[%s1 + $0x60] sm:$0xff]
    %v63 = vld [vmem:[%s1 + $0x68] sm:$0xff]
    %v64 = vld [vmem:[%s1 + $0x70] sm:$0xff]
    %v65 = vld [vmem:[%s1 + $0x78] sm:$0xff]
    %v66 = vld [vmem:[%s1 + $0x80] sm:$0xff]
    %v67 = vld [vmem:[%s1 + $0x88] sm:$0xff]
    %v68 = vld [vmem:[%s4] sm:$0x1]
    %v69 = vld [vmem:[%s4 + $0x1] sm:$0x1]
    %v70 = vld [vmem:[%s4 + $0x2] sm:$0x1]
    %v72 = vperm.slane %v68, 0
    %vm74 = vcmask 392192
    %v76 = vsel %vm74, %v42, 0
    %v79 = vsel %vm74, %v43, 0
    %v82 = vsel %vm74, %v44, 0
    %v85 = vsel %vm74, %v45, 0
    %v88 = vsel %vm74, %v46, 0
    %v91 = vsel %vm74, %v47, 0
    %v94 = vsel %vm74, %v48, 0
    %v97 = vsel %vm74, %v49, 0
    %99 = vmatpush.msra.mxu0 0.0
    %100 = vmatpush.msra.mxu0 0.0
    %101 = vmatpush.msra.mxu0 0.0
    %102 = vmatpush.msra.mxu0 0.0
    %103 = vmatpush.msra.mxu0 0.0
    %104 = vmatpush.msra.mxu0 0.0
    %105 = vmatpush.msra.mxu0 0.0
    %106 = vmatpush.msra.mxu0 0.0
    %107 = vmatpush.msra.mxu0 0.0
    %108 = vmatpush.msra.mxu0 0.0
    %109 = vmatpush.msra.mxu0 %v55
    %110 = vmatpush.msra.mxu0 %v54
    %111 = vmatpush.msra.mxu0 %v53
    %112 = vmatpush.msra.mxu0 %v52
    %113 = vmatpush.msra.mxu0 %v51
    %114 = vmatpush.msra.mxu0 %v50
    %115 = vmatmul.f32.gmra.mxu0 %v76
    %v116 = vpop.f32.mrf.mxu0
    %v117 = vadd.f32 %v72, %v116
    %118 = vmatmul.f32.gmra.mxu0 %v79
    %v119 = vpop.f32.mrf.mxu0
    %v120 = vadd.f32 %v72, %v119
    %121 = vmatmul.f32.gmra.mxu0 %v82
    %v122 = vpop.f32.mrf.mxu0
    %v123 = vadd.f32 %v72, %v122
    %124 = vmatmul.f32.gmra.mxu0 %v85
    %v125 = vpop.f32.mrf.mxu0
    %v126 = vadd.f32 %v72, %v125
    %127 = vmatmul.f32.gmra.mxu0 %v88
    %v128 = vpop.f32.mrf.mxu0
    %v129 = vadd.f32 %v72, %v128
    %130 = vmatmul.f32.gmra.mxu0 %v91
    %v131 = vpop.f32.mrf.mxu0
    %v132 = vadd.f32 %v72, %v131
    %133 = vmatmul.f32.gmra.mxu0 %v94
    %v134 = vpop.f32.mrf.mxu0
    %v135 = vadd.f32 %v72, %v134
    %136 = vmatmul.f32.gmra.mxu0 %v97
    %v137 = vpop.f32.mrf.mxu0
    %v138 = vadd.f32 %v72, %v137
    %139 = vdwg.mxu0
    %v141 = vperm.slane %v69, 0
    %143 = vmatpush.msra.mxu0 0.0
    %144 = vmatpush.msra.mxu0 0.0
    %145 = vmatpush.msra.mxu0 0.0
    %146 = vmatpush.msra.mxu0 0.0
    %147 = vmatpush.msra.mxu0 0.0
    %148 = vmatpush.msra.mxu0 0.0
    %149 = vmatpush.msra.mxu0 0.0
    %150 = vmatpush.msra.mxu0 0.0
    %151 = vmatpush.msra.mxu0 0.0
    %152 = vmatpush.msra.mxu0 0.0
    %153 = vmatpush.msra.mxu0 %v61
    %154 = vmatpush.msra.mxu0 %v60
    %155 = vmatpush.msra.mxu0 %v59
    %156 = vmatpush.msra.mxu0 %v58
    %157 = vmatpush.msra.mxu0 %v57
    %158 = vmatpush.msra.mxu0 %v56
    %159 = vmatmul.f32.gmra.mxu0 %v76
    %v160 = vpop.f32.mrf.mxu0
    %v161 = vadd.f32 %v141, %v160
    %162 = vmatmul.f32.gmra.mxu0 %v79
    %v163 = vpop.f32.mrf.mxu0
    %v164 = vadd.f32 %v141, %v163
    %165 = vmatmul.f32.gmra.mxu0 %v82
    %v166 = vpop.f32.mrf.mxu0
    %v167 = vadd.f32 %v141, %v166
    %168 = vmatmul.f32.gmra.mxu0 %v85
    %v169 = vpop.f32.mrf.mxu0
    %v170 = vadd.f32 %v141, %v169
    %171 = vmatmul.f32.gmra.mxu0 %v88
    %v172 = vpop.f32.mrf.mxu0
    %v173 = vadd.f32 %v141, %v172
    %174 = vmatmul.f32.gmra.mxu0 %v91
    %v175 = vpop.f32.mrf.mxu0
    %v176 = vadd.f32 %v141, %v175
    %177 = vmatmul.f32.gmra.mxu0 %v94
    %v178 = vpop.f32.mrf.mxu0
    %v179 = vadd.f32 %v141, %v178
    %180 = vmatmul.f32.gmra.mxu0 %v97
    %v181 = vpop.f32.mrf.mxu0
    %v182 = vadd.f32 %v141, %v181
    %183 = vdwg.mxu0
    %v185 = vperm.slane %v70, 0
    %187 = vmatpush.msra.mxu0 0.0
    %188 = vmatpush.msra.mxu0 0.0
    %189 = vmatpush.msra.mxu0 0.0
    %190 = vmatpush.msra.mxu0 0.0
    %191 = vmatpush.msra.mxu0 0.0
    %192 = vmatpush.msra.mxu0 0.0
    %193 = vmatpush.msra.mxu0 0.0
    %194 = vmatpush.msra.mxu0 0.0
    %195 = vmatpush.msra.mxu0 0.0
    %196 = vmatpush.msra.mxu0 0.0
    %197 = vmatpush.msra.mxu0 %v67
    %198 = vmatpush.msra.mxu0 %v66
    %199 = vmatpush.msra.mxu0 %v65
    %200 = vmatpush.msra.mxu0 %v64
    %201 = vmatpush.msra.mxu0 %v63
    %202 = vmatpush.msra.mxu0 %v62
    %203 = vmatmul.f32.gmra.mxu0 %v76
    %v204 = vpop.f32.mrf.mxu0
    %v205 = vadd.f32 %v185, %v204
    %206 = vmatmul.f32.gmra.mxu0 %v79
    %v207 = vpop.f32.mrf.mxu0
    %v208 = vadd.f32 %v185, %v207
    %209 = vmatmul.f32.gmra.mxu0 %v82
    %v210 = vpop.f32.mrf.mxu0
    %v211 = vadd.f32 %v185, %v210
    %212 = vmatmul.f32.gmra.mxu0 %v85
    %v213 = vpop.f32.mrf.mxu0
    %v214 = vadd.f32 %v185, %v213
    %215 = vmatmul.f32.gmra.mxu0 %v88
    %v216 = vpop.f32.mrf.mxu0
    %v217 = vadd.f32 %v185, %v216
    %218 = vmatmul.f32.gmra.mxu0 %v91
    %v219 = vpop.f32.mrf.mxu0
    %v220 = vadd.f32 %v185, %v219
    %221 = vmatmul.f32.gmra.mxu0 %v94
    %v222 = vpop.f32.mrf.mxu0
    %v223 = vadd.f32 %v185, %v222
    %224 = vmatmul.f32.gmra.mxu0 %v97
    %v225 = vpop.f32.mrf.mxu0
    %v226 = vadd.f32 %v185, %v225
    %227 = vdwg.mxu0
    %v228 = vld [vmem:[%s3] sm:$0xff]
    %v229 = vld [vmem:[%s3 + $0x8] sm:$0xff]
    %v230 = vld [vmem:[%s3 + $0x10] sm:$0xff]
    %v231 = vld [vmem:[%s3 + $0x18] sm:$0xff]
    %v232 = vld [vmem:[%s3 + $0x20] sm:$0xff]
    %v233 = vld [vmem:[%s3 + $0x28] sm:$0xff]
    %v234 = vld [vmem:[%s3 + $0x30] sm:$0xff]
    %v235 = vld [vmem:[%s3 + $0x38] sm:$0xff]
    %v236 = vld [vmem:[%s3 + $0x40] sm:$0xff]
    %v237 = vld [vmem:[%s3 + $0x48] sm:$0xff]
    %v238 = vld [vmem:[%s3 + $0x50] sm:$0xff]
    %v239 = vld [vmem:[%s3 + $0x58] sm:$0xff]
    %v240 = vld [vmem:[%s5] sm:$0x1]
    %v241 = vld [vmem:[%s5 + $0x1] sm:$0x1]
    %v242 = vld [vmem:[%s5 + $0x2] sm:$0x1]
    %vm243 = vcmask 261120
    %v245 = vsel %vm243, 0.0, 0
    %247 = vmatpush.msra.mxu0 0.0
    %248 = vmatpush.msra.mxu0 0.0
    %249 = vmatpush.msra.mxu0 0.0
    %250 = vmatpush.msra.mxu0 0.0
    %251 = vmatpush.msra.mxu0 0.0
    %252 = vmatpush.msra.mxu0 0.0
    %253 = vmatpush.msra.mxu0 0.0
    %254 = vmatpush.msra.mxu0 0.0
    %255 = vmatpush.msra.mxu0 0.0
    %256 = vmatpush.msra.mxu0 0.0
    %257 = vmatpush.msra.mxu0 0.0
    %258 = vmatpush.msra.mxu0 0.0
    %259 = vmatpush.msra.mxu0 %v231
    %260 = vmatpush.msra.mxu0 %v230
    %261 = vmatpush.msra.mxu0 %v229
    %262 = vmatpush.msra.mxu0 %v228
    %263 = vmatmul.f32.gmra.mxu0 %v245
    %v264 = vpop.f32.mrf.mxu0
    %v265 = vadd.f32 0.0, %v264
    %266 = vdwg.mxu0
    %v267 = vadd.f32 %v117, %v265
    %v269 = vperm.slane %v240, 0
    %v271 = vadd.f32 %v267, %v269
    %v272 = vxor.u32 %v271, 2147483648
    %v273 = vmul.f32 %v272, 1.442695
    %v274 = vpow.pop %v273
    %v275 = vadd.f32 %v274, 1.0
    %v276 = vrcp.pop %v275
    %v277 = vmul.f32 %v275, %v276
    %v278 = vsub.f32 1.0, %v277
    %v279 = vmul.f32 %v276, %v278
    %v280 = vadd.f32 %v276, %v279
    %vm281 = vweird.f32 %v275
    %vm282 = vweird.f32 %v276
    %vm283 = vmor %vm281, %vm282
    %v284 = vsel %vm283, %v276, %v280
    %v285 = vand.u32 2147483647, %v275
    %vm286 = vcmp.eq.f32.partialorder %v285, 8.507059e+37
    %v287 = vand.u32 %v275, 2147483648
    %v288 = vor.u32 1.1754944e-38, %v287
    %v289 = vsel %vm286, %v288, %v284
    %v290 = vmul.f32 1.0, %v289
    %291 = vmatpush.msra.mxu0 0.0
    %292 = vmatpush.msra.mxu0 0.0
    %293 = vmatpush.msra.mxu0 0.0
    %294 = vmatpush.msra.mxu0 0.0
    %295 = vmatpush.msra.mxu0 0.0
    %296 = vmatpush.msra.mxu0 0.0
    %297 = vmatpush.msra.mxu0 0.0
    %298 = vmatpush.msra.mxu0 0.0
    %299 = vmatpush.msra.mxu0 0.0
    %300 = vmatpush.msra.mxu0 0.0
    %301 = vmatpush.msra.mxu0 0.0
    %302 = vmatpush.msra.mxu0 0.0
    %303 = vmatpush.msra.mxu0 %v235
    %304 = vmatpush.msra.mxu0 %v234
    %305 = vmatpush.msra.mxu0 %v233
    %306 = vmatpush.msra.mxu0 %v232
    %307 = vmatmul.f32.gmra.mxu0 %v245
    %v308 = vpop.f32.mrf.mxu0
    %v309 = vadd.f32 0.0, %v308
    %310 = vdwg.mxu0
    %v311 = vadd.f32 %v161, %v309
    %v313 = vperm.slane %v241, 0
    %v315 = vadd.f32 %v311, %v313
    %v316 = vxor.u32 %v315, 2147483648
    %v317 = vmul.f32 %v316, 1.442695
    %v318 = vpow.pop %v317
    %v319 = vadd.f32 %v318, 1.0
    %v320 = vrcp.pop %v319
    %v321 = vmul.f32 %v319, %v320
    %v322 = vsub.f32 1.0, %v321
    %v323 = vmul.f32 %v320, %v322
    %v324 = vadd.f32 %v320, %v323
    %vm325 = vweird.f32 %v319
    %vm326 = vweird.f32 %v320
    %vm327 = vmor %vm325, %vm326
    %v328 = vsel %vm327, %v320, %v324
    %v329 = vand.u32 2147483647, %v319
    %vm330 = vcmp.eq.f32.partialorder %v329, 8.507059e+37
    %v331 = vand.u32 %v319, 2147483648
    %v332 = vor.u32 1.1754944e-38, %v331
    %v333 = vsel %vm330, %v332, %v328
    %v334 = vmul.f32 1.0, %v333
    %v336 = vperm.slane %v242, 0
    %338 = vmatpush.msra.mxu0 0.0
    %339 = vmatpush.msra.mxu0 0.0
    %340 = vmatpush.msra.mxu0 0.0
    %341 = vmatpush.msra.mxu0 0.0
    %342 = vmatpush.msra.mxu0 0.0
    %343 = vmatpush.msra.mxu0 0.0
    %344 = vmatpush.msra.mxu0 0.0
    %345 = vmatpush.msra.mxu0 0.0
    %346 = vmatpush.msra.mxu0 0.0
    %347 = vmatpush.msra.mxu0 0.0
    %348 = vmatpush.msra.mxu0 0.0
    %349 = vmatpush.msra.mxu0 0.0
    %350 = vmatpush.msra.mxu0 %v239
    %351 = vmatpush.msra.mxu0 %v238
    %352 = vmatpush.msra.mxu0 %v237
    %353 = vmatpush.msra.mxu0 %v236
    %354 = vmatmul.f32.gmra.mxu0 %v245
    %v355 = vpop.f32.mrf.mxu0
    %v356 = vadd.f32 %v336, %v355
    %357 = vdwg.mxu0
    %v358 = vmul.f32 %v290, %v356
    %v359 = vadd.f32 %v205, %v358
    %v360 = vtanh.pop %v359
    %v361 = vsub.f32 1.0, %v334
    %v362 = vmul.f32 %v361, %v360
    %v363 = vmul.f32 %v334, 0.0
    %v364 = vadd.f32 %v362, %v363
    %v366 = vsel %vm243, %v364, 0
    %368 = vmatpush.msra.mxu0 0.0
    %369 = vmatpush.msra.mxu0 0.0
    %370 = vmatpush.msra.mxu0 0.0
    %371 = vmatpush.msra.mxu0 0.0
    %372 = vmatpush.msra.mxu0 0.0
    %373 = vmatpush.msra.mxu0 0.0
    %374 = vmatpush.msra.mxu0 0.0
    %375 = vmatpush.msra.mxu0 0.0
    %376 = vmatpush.msra.mxu0 0.0
    %377 = vmatpush.msra.mxu0 0.0
    %378 = vmatpush.msra.mxu0 0.0
    %379 = vmatpush.msra.mxu0 0.0
    %380 = vmatpush.msra.mxu0 %v231
    %381 = vmatpush.msra.mxu0 %v230
    %382 = vmatpush.msra.mxu0 %v229
    %383 = vmatpush.msra.mxu0 %v228
    %384 = vmatmul.f32.gmra.mxu0 %v366
    %v385 = vpop.f32.mrf.mxu0
    %v386 = vadd.f32 0.0, %v385
    %387 = vdwg.mxu0
    %v388 = vadd.f32 %v120, %v386
    %v389 = vadd.f32 %v388, %v269
    %v390 = vxor.u32 %v389, 2147483648
    %v391 = vmul.f32 %v390, 1.442695
    %v392 = vpow.pop %v391
    %v393 = vadd.f32 %v392, 1.0
    %v394 = vrcp.pop %v393
    %v395 = vmul.f32 %v393, %v394
    %v396 = vsub.f32 1.0, %v395
    %v397 = vmul.f32 %v394, %v396
    %v398 = vadd.f32 %v394, %v397
    %vm399 = vweird.f32 %v393
    %vm400 = vweird.f32 %v394
    %vm401 = vmor %vm399, %vm400
    %v402 = vsel %vm401, %v394, %v398
    %v403 = vand.u32 2147483647, %v393
    %vm404 = vcmp.eq.f32.partialorder %v403, 8.507059e+37
    %v405 = vand.u32 %v393, 2147483648
    %v406 = vor.u32 1.1754944e-38, %v405
    %v407 = vsel %vm404, %v406, %v402
    %v408 = vmul.f32 1.0, %v407
    %409 = vmatpush.msra.mxu0 0.0
    %410 = vmatpush.msra.mxu0 0.0
    %411 = vmatpush.msra.mxu0 0.0
    %412 = vmatpush.msra.mxu0 0.0
    %413 = vmatpush.msra.mxu0 0.0
    %414 = vmatpush.msra.mxu0 0.0
    %415 = vmatpush.msra.mxu0 0.0
    %416 = vmatpush.msra.mxu0 0.0
    %417 = vmatpush.msra.mxu0 0.0
    %418 = vmatpush.msra.mxu0 0.0
    %419 = vmatpush.msra.mxu0 0.0
    %420 = vmatpush.msra.mxu0 0.0
    %421 = vmatpush.msra.mxu0 %v235
    %422 = vmatpush.msra.mxu0 %v234
    %423 = vmatpush.msra.mxu0 %v233
    %424 = vmatpush.msra.mxu0 %v232
    %425 = vmatmul.f32.gmra.mxu0 %v366
    %v426 = vpop.f32.mrf.mxu0
    %v427 = vadd.f32 0.0, %v426
    %428 = vdwg.mxu0
    %v429 = vadd.f32 %v164, %v427
    %v430 = vadd.f32 %v429, %v313
    %v431 = vxor.u32 %v430, 2147483648
    %v432 = vmul.f32 %v431, 1.442695
    %v433 = vpow.pop %v432
    %v434 = vadd.f32 %v433, 1.0
    %v435 = vrcp.pop %v434
    %v436 = vmul.f32 %v434, %v435
    %v437 = vsub.f32 1.0, %v436
    %v438 = vmul.f32 %v435, %v437
    %v439 = vadd.f32 %v435, %v438
    %vm440 = vweird.f32 %v434
    %vm441 = vweird.f32 %v435
    %vm442 = vmor %vm440, %vm441
    %v443 = vsel %vm442, %v435, %v439
    %v444 = vand.u32 2147483647, %v434
    %vm445 = vcmp.eq.f32.partialorder %v444, 8.507059e+37
    %v446 = vand.u32 %v434, 2147483648
    %v447 = vor.u32 1.1754944e-38, %v446
    %v448 = vsel %vm445, %v447, %v443
    %v449 = vmul.f32 1.0, %v448
    %450 = vmatpush.msra.mxu0 0.0
    %451 = vmatpush.msra.mxu0 0.0
    %452 = vmatpush.msra.mxu0 0.0
    %453 = vmatpush.msra.mxu0 0.0
    %454 = vmatpush.msra.mxu0 0.0
    %455 = vmatpush.msra.mxu0 0.0
    %456 = vmatpush.msra.mxu0 0.0
    %457 = vmatpush.msra.mxu0 0.0
    %458 = vmatpush.msra.mxu0 0.0
    %459 = vmatpush.msra.mxu0 0.0
    %460 = vmatpush.msra.mxu0 0.0
    %461 = vmatpush.msra.mxu0 0.0
    %462 = vmatpush.msra.mxu0 %v239
    %463 = vmatpush.msra.mxu0 %v238
    %464 = vmatpush.msra.mxu0 %v237
    %465 = vmatpush.msra.mxu0 %v236
    %466 = vmatmul.f32.gmra.mxu0 %v366
    %v467 = vpop.f32.mrf.mxu0
    %v468 = vadd.f32 %v336, %v467
    %469 = vdwg.mxu0
    %v470 = vmul.f32 %v408, %v468
    %v471 = vadd.f32 %v208, %v470
    %v472 = vtanh.pop %v471
    %v473 = vsub.f32 1.0, %v449
    %v474 = vmul.f32 %v473, %v472
    %v475 = vmul.f32 %v449, %v364
    %v476 = vadd.f32 %v474, %v475
    %v478 = vsel %vm243, %v476, 0
    %480 = vmatpush.msra.mxu0 0.0
    %481 = vmatpush.msra.mxu0 0.0
    %482 = vmatpush.msra.mxu0 0.0
    %483 = vmatpush.msra.mxu0 0.0
    %484 = vmatpush.msra.mxu0 0.0
    %485 = vmatpush.msra.mxu0 0.0
    %486 = vmatpush.msra.mxu0 0.0
    %487 = vmatpush.msra.mxu0 0.0
    %488 = vmatpush.msra.mxu0 0.0
    %489 = vmatpush.msra.mxu0 0.0
    %490 = vmatpush.msra.mxu0 0.0
    %491 = vmatpush.msra.mxu0 0.0
    %492 = vmatpush.msra.mxu0 %v231
    %493 = vmatpush.msra.mxu0 %v230
    %494 = vmatpush.msra.mxu0 %v229
    %495 = vmatpush.msra.mxu0 %v228
    %496 = vmatmul.f32.gmra.mxu0 %v478
    %v497 = vpop.f32.mrf.mxu0
    %v498 = vadd.f32 0.0, %v497
    %499 = vdwg.mxu0
    %v500 = vadd.f32 %v123, %v498
    %v501 = vadd.f32 %v500, %v269
    %v502 = vxor.u32 %v501, 2147483648
    %v503 = vmul.f32 %v502, 1.442695
    %v504 = vpow.pop %v503
    %v505 = vadd.f32 %v504, 1.0
    %v506 = vrcp.pop %v505
    %v507 = vmul.f32 %v505, %v506
    %v508 = vsub.f32 1.0, %v507
    %v509 = vmul.f32 %v506, %v508
    %v510 = vadd.f32 %v506, %v509
    %vm511 = vweird.f32 %v505
    %vm512 = vweird.f32 %v506
    %vm513 = vmor %vm511, %vm512
    %v514 = vsel %vm513, %v506, %v510
    %v515 = vand.u32 2147483647, %v505
    %vm516 = vcmp.eq.f32.partialorder %v515, 8.507059e+37
    %v517 = vand.u32 %v505, 2147483648
    %v518 = vor.u32 1.1754944e-38, %v517
    %v519 = vsel %vm516, %v518, %v514
    %v520 = vmul.f32 1.0, %v519
    %521 = vmatpush.msra.mxu0 0.0
    %522 = vmatpush.msra.mxu0 0.0
    %523 = vmatpush.msra.mxu0 0.0
    %524 = vmatpush.msra.mxu0 0.0
    %525 = vmatpush.msra.mxu0 0.0
    %526 = vmatpush.msra.mxu0 0.0
    %527 = vmatpush.msra.mxu0 0.0
    %528 = vmatpush.msra.mxu0 0.0
    %529 = vmatpush.msra.mxu0 0.0
    %530 = vmatpush.msra.mxu0 0.0
    %531 = vmatpush.msra.mxu0 0.0
    %532 = vmatpush.msra.mxu0 0.0
    %533 = vmatpush.msra.mxu0 %v235
    %534 = vmatpush.msra.mxu0 %v234
    %535 = vmatpush.msra.mxu0 %v233
    %536 = vmatpush.msra.mxu0 %v232
    %537 = vmatmul.f32.gmra.mxu0 %v478
    %v538 = vpop.f32.mrf.mxu0
    %v539 = vadd.f32 0.0, %v538
    %540 = vdwg.mxu0
    %v541 = vadd.f32 %v167, %v539
    %v542 = vadd.f32 %v541, %v313
    %v543 = vxor.u32 %v542, 2147483648
    %v544 = vmul.f32 %v543, 1.442695
    %v545 = vpow.pop %v544
    %v546 = vadd.f32 %v545, 1.0
    %v547 = vrcp.pop %v546
    %v548 = vmul.f32 %v546, %v547
    %v549 = vsub.f32 1.0, %v548
    %v550 = vmul.f32 %v547, %v549
    %v551 = vadd.f32 %v547, %v550
    %vm552 = vweird.f32 %v546
    %vm553 = vweird.f32 %v547
    %vm554 = vmor %vm552, %vm553
    %v555 = vsel %vm554, %v547, %v551
    %v556 = vand.u32 2147483647, %v546
    %vm557 = vcmp.eq.f32.partialorder %v556, 8.507059e+37
    %v558 = vand.u32 %v546, 2147483648
    %v559 = vor.u32 1.1754944e-38, %v558
    %v560 = vsel %vm557, %v559, %v555
    %v561 = vmul.f32 1.0, %v560
    %562 = vmatpush.msra.mxu0 0.0
    %563 = vmatpush.msra.mxu0 0.0
    %564 = vmatpush.msra.mxu0 0.0
    %565 = vmatpush.msra.mxu0 0.0
    %566 = vmatpush.msra.mxu0 0.0
    %567 = vmatpush.msra.mxu0 0.0
    %568 = vmatpush.msra.mxu0 0.0
    %569 = vmatpush.msra.mxu0 0.0
    %570 = vmatpush.msra.mxu0 0.0
    %571 = vmatpush.msra.mxu0 0.0
    %572 = vmatpush.msra.mxu0 0.0
    %573 = vmatpush.msra.mxu0 0.0
    %574 = vmatpush.msra.mxu0 %v239
    %575 = vmatpush.msra.mxu0 %v238
    %576 = vmatpush.msra.mxu0 %v237
    %577 = vmatpush.msra.mxu0 %v236
    %578 = vmatmul.f32.gmra.mxu0 %v478
    %v579 = vpop.f32.mrf.mxu0
    %v580 = vadd.f32 %v336, %v579
    %581 = vdwg.mxu0
    %v582 = vmul.f32 %v520, %v580
    %v583 = vadd.f32 %v211, %v582
    %v584 = vtanh.pop %v583
    %v585 = vsub.f32 1.0, %v561
    %v586 = vmul.f32 %v585, %v584
    %v587 = vmul.f32 %v561, %v476
    %v588 = vadd.f32 %v586, %v587
    %v590 = vsel %vm243, %v588, 0
    %592 = vmatpush.msra.mxu0 0.0
    %593 = vmatpush.msra.mxu0 0.0
    %594 = vmatpush.msra.mxu0 0.0
    %595 = vmatpush.msra.mxu0 0.0
    %596 = vmatpush.msra.mxu0 0.0
    %597 = vmatpush.msra.mxu0 0.0
    %598 = vmatpush.msra.mxu0 0.0
    %599 = vmatpush.msra.mxu0 0.0
    %600 = vmatpush.msra.mxu0 0.0
    %601 = vmatpush.msra.mxu0 0.0
    %602 = vmatpush.msra.mxu0 0.0
    %603 = vmatpush.msra.mxu0 0.0
    %604 = vmatpush.msra.mxu0 %v231
    %605 = vmatpush.msra.mxu0 %v230
    %606 = vmatpush.msra.mxu0 %v229
    %607 = vmatpush.msra.mxu0 %v228
    %608 = vmatmul.f32.gmra.mxu0 %v590
    %v609 = vpop.f32.mrf.mxu0
    %v610 = vadd.f32 0.0, %v609
    %611 = vdwg.mxu0
    %v612 = vadd.f32 %v126, %v610
    %v613 = vadd.f32 %v612, %v269
    %v614 = vxor.u32 %v613, 2147483648
    %v615 = vmul.f32 %v614, 1.442695
    %v616 = vpow.pop %v615
    %v617 = vadd.f32 %v616, 1.0
    %v618 = vrcp.pop %v617
    %v619 = vmul.f32 %v617, %v618
    %v620 = vsub.f32 1.0, %v619
    %v621 = vmul.f32 %v618, %v620
    %v622 = vadd.f32 %v618, %v621
    %vm623 = vweird.f32 %v617
    %vm624 = vweird.f32 %v618
    %vm625 = vmor %vm623, %vm624
    %v626 = vsel %vm625, %v618, %v622
    %v627 = vand.u32 2147483647, %v617
    %vm628 = vcmp.eq.f32.partialorder %v627, 8.507059e+37
    %v629 = vand.u32 %v617, 2147483648
    %v630 = vor.u32 1.1754944e-38, %v629
    %v631 = vsel %vm628, %v630, %v626
    %v632 = vmul.f32 1.0, %v631
    %633 = vmatpush.msra.mxu0 0.0
    %634 = vmatpush.msra.mxu0 0.0
    %635 = vmatpush.msra.mxu0 0.0
    %636 = vmatpush.msra.mxu0 0.0
    %637 = vmatpush.msra.mxu0 0.0
    %638 = vmatpush.msra.mxu0 0.0
    %639 = vmatpush.msra.mxu0 0.0
    %640 = vmatpush.msra.mxu0 0.0
    %641 = vmatpush.msra.mxu0 0.0
    %642 = vmatpush.msra.mxu0 0.0
    %643 = vmatpush.msra.mxu0 0.0
    %644 = vmatpush.msra.mxu0 0.0
    %645 = vmatpush.msra.mxu0 %v235
    %646 = vmatpush.msra.mxu0 %v234
    %647 = vmatpush.msra.mxu0 %v233
    %648 = vmatpush.msra.mxu0 %v232
    %649 = vmatmul.f32.gmra.mxu0 %v590
    %v650 = vpop.f32.mrf.mxu0
    %v651 = vadd.f32 0.0, %v650
    %652 = vdwg.mxu0
    %v653 = vadd.f32 %v170, %v651
    %v654 = vadd.f32 %v653, %v313
    %v655 = vxor.u32 %v654, 2147483648
    %v656 = vmul.f32 %v655, 1.442695
    %v657 = vpow.pop %v656
    %v658 = vadd.f32 %v657, 1.0
    %v659 = vrcp.pop %v658
    %v660 = vmul.f32 %v658, %v659
    %v661 = vsub.f32 1.0, %v660
    %v662 = vmul.f32 %v659, %v661
    %v663 = vadd.f32 %v659, %v662
    %vm664 = vweird.f32 %v658
    %vm665 = vweird.f32 %v659
    %vm666 = vmor %vm664, %vm665
    %v667 = vsel %vm666, %v659, %v663
    %v668 = vand.u32 2147483647, %v658
    %vm669 = vcmp.eq.f32.partialorder %v668, 8.507059e+37
    %v670 = vand.u32 %v658, 2147483648
    %v671 = vor.u32 1.1754944e-38, %v670
    %v672 = vsel %vm669, %v671, %v667
    %v673 = vmul.f32 1.0, %v672
    %674 = vmatpush.msra.mxu0 0.0
    %675 = vmatpush.msra.mxu0 0.0
    %676 = vmatpush.msra.mxu0 0.0
    %677 = vmatpush.msra.mxu0 0.0
    %678 = vmatpush.msra.mxu0 0.0
    %679 = vmatpush.msra.mxu0 0.0
    %680 = vmatpush.msra.mxu0 0.0
    %681 = vmatpush.msra.mxu0 0.0
    %682 = vmatpush.msra.mxu0 0.0
    %683 = vmatpush.msra.mxu0 0.0
    %684 = vmatpush.msra.mxu0 0.0
    %685 = vmatpush.msra.mxu0 0.0
    %686 = vmatpush.msra.mxu0 %v239
    %687 = vmatpush.msra.mxu0 %v238
    %688 = vmatpush.msra.mxu0 %v237
    %689 = vmatpush.msra.mxu0 %v236
    %690 = vmatmul.f32.gmra.mxu0 %v590
    %v691 = vpop.f32.mrf.mxu0
    %v692 = vadd.f32 %v336, %v691
    %693 = vdwg.mxu0
    %v694 = vmul.f32 %v632, %v692
    %v695 = vadd.f32 %v214, %v694
    %v696 = vtanh.pop %v695
    %v697 = vsub.f32 1.0, %v673
    %v698 = vmul.f32 %v697, %v696
    %v699 = vmul.f32 %v673, %v588
    %v700 = vadd.f32 %v698, %v699
    %v702 = vsel %vm243, %v700, 0
    %704 = vmatpush.msra.mxu0 0.0
    %705 = vmatpush.msra.mxu0 0.0
    %706 = vmatpush.msra.mxu0 0.0
    %707 = vmatpush.msra.mxu0 0.0
    %708 = vmatpush.msra.mxu0 0.0
    %709 = vmatpush.msra.mxu0 0.0
    %710 = vmatpush.msra.mxu0 0.0
    %711 = vmatpush.msra.mxu0 0.0
    %712 = vmatpush.msra.mxu0 0.0
    %713 = vmatpush.msra.mxu0 0.0
    %714 = vmatpush.msra.mxu0 0.0
    %715 = vmatpush.msra.mxu0 0.0
    %716 = vmatpush.msra.mxu0 %v231
    %717 = vmatpush.msra.mxu0 %v230
    %718 = vmatpush.msra.mxu0 %v229
    %719 = vmatpush.msra.mxu0 %v228
    %720 = vmatmul.f32.gmra.mxu0 %v702
    %v721 = vpop.f32.mrf.mxu0
    %v722 = vadd.f32 0.0, %v721
    %723 = vdwg.mxu0
    %v724 = vadd.f32 %v129, %v722
    %v725 = vadd.f32 %v724, %v269
    %v726 = vxor.u32 %v725, 2147483648
    %v727 = vmul.f32 %v726, 1.442695
    %v728 = vpow.pop %v727
    %v729 = vadd.f32 %v728, 1.0
    %v730 = vrcp.pop %v729
    %v731 = vmul.f32 %v729, %v730
    %v732 = vsub.f32 1.0, %v731
    %v733 = vmul.f32 %v730, %v732
    %v734 = vadd.f32 %v730, %v733
    %vm735 = vweird.f32 %v729
    %vm736 = vweird.f32 %v730
    %vm737 = vmor %vm735, %vm736
    %v738 = vsel %vm737, %v730, %v734
    %v739 = vand.u32 2147483647, %v729
    %vm740 = vcmp.eq.f32.partialorder %v739, 8.507059e+37
    %v741 = vand.u32 %v729, 2147483648
    %v742 = vor.u32 1.1754944e-38, %v741
    %v743 = vsel %vm740, %v742, %v738
    %v744 = vmul.f32 1.0, %v743
    %745 = vmatpush.msra.mxu0 0.0
    %746 = vmatpush.msra.mxu0 0.0
    %747 = vmatpush.msra.mxu0 0.0
    %748 = vmatpush.msra.mxu0 0.0
    %749 = vmatpush.msra.mxu0 0.0
    %750 = vmatpush.msra.mxu0 0.0
    %751 = vmatpush.msra.mxu0 0.0
    %752 = vmatpush.msra.mxu0 0.0
    %753 = vmatpush.msra.mxu0 0.0
    %754 = vmatpush.msra.mxu0 0.0
    %755 = vmatpush.msra.mxu0 0.0
    %756 = vmatpush.msra.mxu0 0.0
    %757 = vmatpush.msra.mxu0 %v235
    %758 = vmatpush.msra.mxu0 %v234
    %759 = vmatpush.msra.mxu0 %v233
    %760 = vmatpush.msra.mxu0 %v232
    %761 = vmatmul.f32.gmra.mxu0 %v702
    %v762 = vpop.f32.mrf.mxu0
    %v763 = vadd.f32 0.0, %v762
    %764 = vdwg.mxu0
    %v765 = vadd.f32 %v173, %v763
    %v766 = vadd.f32 %v765, %v313
    %v767 = vxor.u32 %v766, 2147483648
    %v768 = vmul.f32 %v767, 1.442695
    %v769 = vpow.pop %v768
    %v770 = vadd.f32 %v769, 1.0
    %v771 = vrcp.pop %v770
    %v772 = vmul.f32 %v770, %v771
    %v773 = vsub.f32 1.0, %v772
    %v774 = vmul.f32 %v771, %v773
    %v775 = vadd.f32 %v771, %v774
    %vm776 = vweird.f32 %v770
    %vm777 = vweird.f32 %v771
    %vm778 = vmor %vm776, %vm777
    %v779 = vsel %vm778, %v771, %v775
    %v780 = vand.u32 2147483647, %v770
    %vm781 = vcmp.eq.f32.partialorder %v780, 8.507059e+37
    %v782 = vand.u32 %v770, 2147483648
    %v783 = vor.u32 1.1754944e-38, %v782
    %v784 = vsel %vm781, %v783, %v779
    %v785 = vmul.f32 1.0, %v784
    %786 = vmatpush.msra.mxu0 0.0
    %787 = vmatpush.msra.mxu0 0.0
    %788 = vmatpush.msra.mxu0 0.0
    %789 = vmatpush.msra.mxu0 0.0
    %790 = vmatpush.msra.mxu0 0.0
    %791 = vmatpush.msra.mxu0 0.0
    %792 = vmatpush.msra.mxu0 0.0
    %793 = vmatpush.msra.mxu0 0.0
    %794 = vmatpush.msra.mxu0 0.0
    %795 = vmatpush.msra.mxu0 0.0
    %796 = vmatpush.msra.mxu0 0.0
    %797 = vmatpush.msra.mxu0 0.0
    %798 = vmatpush.msra.mxu0 %v239
    %799 = vmatpush.msra.mxu0 %v238
    %800 = vmatpush.msra.mxu0 %v237
    %801 = vmatpush.msra.mxu0 %v236
    %802 = vmatmul.f32.gmra.mxu0 %v702
    %v803 = vpop.f32.mrf.mxu0
    %v804 = vadd.f32 %v336, %v803
    %805 = vdwg.mxu0
    %v806 = vmul.f32 %v744, %v804
    %v807 = vadd.f32 %v217, %v806
    %v808 = vtanh.pop %v807
    %v809 = vsub.f32 1.0, %v785
    %v810 = vmul.f32 %v809, %v808
    %v811 = vmul.f32 %v785, %v700
    %v812 = vadd.f32 %v810, %v811
    %v814 = vsel %vm243, %v812, 0
    %816 = vmatpush.msra.mxu0 0.0
    %817 = vmatpush.msra.mxu0 0.0
    %818 = vmatpush.msra.mxu0 0.0
    %819 = vmatpush.msra.mxu0 0.0
    %820 = vmatpush.msra.mxu0 0.0
    %821 = vmatpush.msra.mxu0 0.0
    %822 = vmatpush.msra.mxu0 0.0
    %823 = vmatpush.msra.mxu0 0.0
    %824 = vmatpush.msra.mxu0 0.0
    %825 = vmatpush.msra.mxu0 0.0
    %826 = vmatpush.msra.mxu0 0.0
    %827 = vmatpush.msra.mxu0 0.0
    %828 = vmatpush.msra.mxu0 %v231
    %829 = vmatpush.msra.mxu0 %v230
    %830 = vmatpush.msra.mxu0 %v229
    %831 = vmatpush.msra.mxu0 %v228
    %832 = vmatmul.f32.gmra.mxu0 %v814
    %v833 = vpop.f32.mrf.mxu0
    %v834 = vadd.f32 0.0, %v833
    %835 = vdwg.mxu0
    %v836 = vadd.f32 %v132, %v834
    %v837 = vadd.f32 %v836, %v269
    %v838 = vxor.u32 %v837, 2147483648
    %v839 = vmul.f32 %v838, 1.442695
    %v840 = vpow.pop %v839
    %v841 = vadd.f32 %v840, 1.0
    %v842 = vrcp.pop %v841
    %v843 = vmul.f32 %v841, %v842
    %v844 = vsub.f32 1.0, %v843
    %v845 = vmul.f32 %v842, %v844
    %v846 = vadd.f32 %v842, %v845
    %vm847 = vweird.f32 %v841
    %vm848 = vweird.f32 %v842
    %vm849 = vmor %vm847, %vm848
    %v850 = vsel %vm849, %v842, %v846
    %v851 = vand.u32 2147483647, %v841
    %vm852 = vcmp.eq.f32.partialorder %v851, 8.507059e+37
    %v853 = vand.u32 %v841, 2147483648
    %v854 = vor.u32 1.1754944e-38, %v853
    %v855 = vsel %vm852, %v854, %v850
    %v856 = vmul.f32 1.0, %v855
    %857 = vmatpush.msra.mxu0 0.0
    %858 = vmatpush.msra.mxu0 0.0
    %859 = vmatpush.msra.mxu0 0.0
    %860 = vmatpush.msra.mxu0 0.0
    %861 = vmatpush.msra.mxu0 0.0
    %862 = vmatpush.msra.mxu0 0.0
    %863 = vmatpush.msra.mxu0 0.0
    %864 = vmatpush.msra.mxu0 0.0
    %865 = vmatpush.msra.mxu0 0.0
    %866 = vmatpush.msra.mxu0 0.0
    %867 = vmatpush.msra.mxu0 0.0
    %868 = vmatpush.msra.mxu0 0.0
    %869 = vmatpush.msra.mxu0 %v235
    %870 = vmatpush.msra.mxu0 %v234
    %871 = vmatpush.msra.mxu0 %v233
    %872 = vmatpush.msra.mxu0 %v232
    %873 = vmatmul.f32.gmra.mxu0 %v814
    %v874 = vpop.f32.mrf.mxu0
    %v875 = vadd.f32 0.0, %v874
    %876 = vdwg.mxu0
    %v877 = vadd.f32 %v176, %v875
    %v878 = vadd.f32 %v877, %v313
    %v879 = vxor.u32 %v878, 2147483648
    %v880 = vmul.f32 %v879, 1.442695
    %v881 = vpow.pop %v880
    %v882 = vadd.f32 %v881, 1.0
    %v883 = vrcp.pop %v882
    %v884 = vmul.f32 %v882, %v883
    %v885 = vsub.f32 1.0, %v884
    %v886 = vmul.f32 %v883, %v885
    %v887 = vadd.f32 %v883, %v886
    %vm888 = vweird.f32 %v882
    %vm889 = vweird.f32 %v883
    %vm890 = vmor %vm888, %vm889
    %v891 = vsel %vm890, %v883, %v887
    %v892 = vand.u32 2147483647, %v882
    %vm893 = vcmp.eq.f32.partialorder %v892, 8.507059e+37
    %v894 = vand.u32 %v882, 2147483648
    %v895 = vor.u32 1.1754944e-38, %v894
    %v896 = vsel %vm893, %v895, %v891
    %v897 = vmul.f32 1.0, %v896
    %898 = vmatpush.msra.mxu0 0.0
    %899 = vmatpush.msra.mxu0 0.0
    %900 = vmatpush.msra.mxu0 0.0
    %901 = vmatpush.msra.mxu0 0.0
    %902 = vmatpush.msra.mxu0 0.0
    %903 = vmatpush.msra.mxu0 0.0
    %904 = vmatpush.msra.mxu0 0.0
    %905 = vmatpush.msra.mxu0 0.0
    %906 = vmatpush.msra.mxu0 0.0
    %907 = vmatpush.msra.mxu0 0.0
    %908 = vmatpush.msra.mxu0 0.0
    %909 = vmatpush.msra.mxu0 0.0
    %910 = vmatpush.msra.mxu0 %v239
    %911 = vmatpush.msra.mxu0 %v238
    %912 = vmatpush.msra.mxu0 %v237
    %913 = vmatpush.msra.mxu0 %v236
    %914 = vmatmul.f32.gmra.mxu0 %v814
    %v915 = vpop.f32.mrf.mxu0
    %v916 = vadd.f32 %v336, %v915
    %917 = vdwg.mxu0
    %v918 = vmul.f32 %v856, %v916
    %v919 = vadd.f32 %v220, %v918
    %v920 = vtanh.pop %v919
    %v921 = vsub.f32 1.0, %v897
    %v922 = vmul.f32 %v921, %v920
    %v923 = vmul.f32 %v897, %v812
    %v924 = vadd.f32 %v922, %v923
    %v926 = vsel %vm243, %v924, 0
    %928 = vmatpush.msra.mxu0 0.0
    %929 = vmatpush.msra.mxu0 0.0
    %930 = vmatpush.msra.mxu0 0.0
    %931 = vmatpush.msra.mxu0 0.0
    %932 = vmatpush.msra.mxu0 0.0
    %933 = vmatpush.msra.mxu0 0.0
    %934 = vmatpush.msra.mxu0 0.0
    %935 = vmatpush.msra.mxu0 0.0
    %936 = vmatpush.msra.mxu0 0.0
    %937 = vmatpush.msra.mxu0 0.0
    %938 = vmatpush.msra.mxu0 0.0
    %939 = vmatpush.msra.mxu0 0.0
    %940 = vmatpush.msra.mxu0 %v231
    %941 = vmatpush.msra.mxu0 %v230
    %942 = vmatpush.msra.mxu0 %v229
    %943 = vmatpush.msra.mxu0 %v228
    %944 = vmatmul.f32.gmra.mxu0 %v926
    %v945 = vpop.f32.mrf.mxu0
    %v946 = vadd.f32 0.0, %v945
    %947 = vdwg.mxu0
    %v948 = vadd.f32 %v135, %v946
    %v949 = vadd.f32 %v948, %v269
    %v950 = vxor.u32 %v949, 2147483648
    %v951 = vmul.f32 %v950, 1.442695
    %v952 = vpow.pop %v951
    %v953 = vadd.f32 %v952, 1.0
    %v954 = vrcp.pop %v953
    %v955 = vmul.f32 %v953, %v954
    %v956 = vsub.f32 1.0, %v955
    %v957 = vmul.f32 %v954, %v956
    %v958 = vadd.f32 %v954, %v957
    %vm959 = vweird.f32 %v953
    %vm960 = vweird.f32 %v954
    %vm961 = vmor %vm959, %vm960
    %v962 = vsel %vm961, %v954, %v958
    %v963 = vand.u32 2147483647, %v953
    %vm964 = vcmp.eq.f32.partialorder %v963, 8.507059e+37
    %v965 = vand.u32 %v953, 2147483648
    %v966 = vor.u32 1.1754944e-38, %v965
    %v967 = vsel %vm964, %v966, %v962
    %v968 = vmul.f32 1.0, %v967
    %969 = vmatpush.msra.mxu0 0.0
    %970 = vmatpush.msra.mxu0 0.0
    %971 = vmatpush.msra.mxu0 0.0
    %972 = vmatpush.msra.mxu0 0.0
    %973 = vmatpush.msra.mxu0 0.0
    %974 = vmatpush.msra.mxu0 0.0
    %975 = vmatpush.msra.mxu0 0.0
    %976 = vmatpush.msra.mxu0 0.0
    %977 = vmatpush.msra.mxu0 0.0
    %978 = vmatpush.msra.mxu0 0.0
    %979 = vmatpush.msra.mxu0 0.0
    %980 = vmatpush.msra.mxu0 0.0
    %981 = vmatpush.msra.mxu0 %v235
    %982 = vmatpush.msra.mxu0 %v234
    %983 = vmatpush.msra.mxu0 %v233
    %984 = vmatpush.msra.mxu0 %v232
    %985 = vmatmul.f32.gmra.mxu0 %v926
    %v986 = vpop.f32.mrf.mxu0
    %v987 = vadd.f32 0.0, %v986
    %988 = vdwg.mxu0
    %v989 = vadd.f32 %v179, %v987
    %v990 = vadd.f32 %v989, %v313
    %v991 = vxor.u32 %v990, 2147483648
    %v992 = vmul.f32 %v991, 1.442695
    %v993 = vpow.pop %v992
    %v994 = vadd.f32 %v993, 1.0
    %v995 = vrcp.pop %v994
    %v996 = vmul.f32 %v994, %v995
    %v997 = vsub.f32 1.0, %v996
    %v998 = vmul.f32 %v995, %v997
    %v999 = vadd.f32 %v995, %v998
    %vm1000 = vweird.f32 %v994
    %vm1001 = vweird.f32 %v995
    %vm1002 = vmor %vm1000, %vm1001
    %v1003 = vsel %vm1002, %v995, %v999
    %v1004 = vand.u32 2147483647, %v994
    %vm1005 = vcmp.eq.f32.partialorder %v1004, 8.507059e+37
    %v1006 = vand.u32 %v994, 2147483648
    %v1007 = vor.u32 1.1754944e-38, %v1006
    %v1008 = vsel %vm1005, %v1007, %v1003
    %v1009 = vmul.f32 1.0, %v1008
    %1010 = vmatpush.msra.mxu0 0.0
    %1011 = vmatpush.msra.mxu0 0.0
    %1012 = vmatpush.msra.mxu0 0.0
    %1013 = vmatpush.msra.mxu0 0.0
    %1014 = vmatpush.msra.mxu0 0.0
    %1015 = vmatpush.msra.mxu0 0.0
    %1016 = vmatpush.msra.mxu0 0.0
    %1017 = vmatpush.msra.mxu0 0.0
    %1018 = vmatpush.msra.mxu0 0.0
    %1019 = vmatpush.msra.mxu0 0.0
    %1020 = vmatpush.msra.mxu0 0.0
    %1021 = vmatpush.msra.mxu0 0.0
    %1022 = vmatpush.msra.mxu0 %v239
    %1023 = vmatpush.msra.mxu0 %v238
    %1024 = vmatpush.msra.mxu0 %v237
    %1025 = vmatpush.msra.mxu0 %v236
    %1026 = vmatmul.f32.gmra.mxu0 %v926
    %v1027 = vpop.f32.mrf.mxu0
    %v1028 = vadd.f32 %v336, %v1027
    %1029 = vdwg.mxu0
    %v1030 = vmul.f32 %v968, %v1028
    %v1031 = vadd.f32 %v223, %v1030
    %v1032 = vtanh.pop %v1031
    %v1033 = vsub.f32 1.0, %v1009
    %v1034 = vmul.f32 %v1033, %v1032
    %v1035 = vmul.f32 %v1009, %v924
    %v1036 = vadd.f32 %v1034, %v1035
    %v1038 = vsel %vm243, %v1036, 0
    %1040 = vmatpush.msra.mxu0 0.0
    %1041 = vmatpush.msra.mxu0 0.0
    %1042 = vmatpush.msra.mxu0 0.0
    %1043 = vmatpush.msra.mxu0 0.0
    %1044 = vmatpush.msra.mxu0 0.0
    %1045 = vmatpush.msra.mxu0 0.0
    %1046 = vmatpush.msra.mxu0 0.0
    %1047 = vmatpush.msra.mxu0 0.0
    %1048 = vmatpush.msra.mxu0 0.0
    %1049 = vmatpush.msra.mxu0 0.0
    %1050 = vmatpush.msra.mxu0 0.0
    %1051 = vmatpush.msra.mxu0 0.0
    %1052 = vmatpush.msra.mxu0 %v231
    %1053 = vmatpush.msra.mxu0 %v230
    %1054 = vmatpush.msra.mxu0 %v229
    %1055 = vmatpush.msra.mxu0 %v228
    %1056 = vmatmul.f32.gmra.mxu0 %v1038
    %v1057 = vpop.f32.mrf.mxu0
    %v1058 = vadd.f32 0.0, %v1057
    %1059 = vdwg.mxu0
    %v1060 = vadd.f32 %v138, %v1058
    %v1061 = vadd.f32 %v1060, %v269
    %v1062 = vxor.u32 %v1061, 2147483648
    %v1063 = vmul.f32 %v1062, 1.442695
    %v1064 = vpow.pop %v1063
    %v1065 = vadd.f32 %v1064, 1.0
    %v1066 = vrcp.pop %v1065
    %v1067 = vmul.f32 %v1065, %v1066
    %v1068 = vsub.f32 1.0, %v1067
    %v1069 = vmul.f32 %v1066, %v1068
    %v1070 = vadd.f32 %v1066, %v1069
    %vm1071 = vweird.f32 %v1065
    %vm1072 = vweird.f32 %v1066
    %vm1073 = vmor %vm1071, %vm1072
    %v1074 = vsel %vm1073, %v1066, %v1070
    %v1075 = vand.u32 2147483647, %v1065
    %vm1076 = vcmp.eq.f32.partialorder %v1075, 8.507059e+37
    %v1077 = vand.u32 %v1065, 2147483648
    %v1078 = vor.u32 1.1754944e-38, %v1077
    %v1079 = vsel %vm1076, %v1078, %v1074
    %v1080 = vmul.f32 1.0, %v1079
    %1081 = vmatpush.msra.mxu0 0.0
    %1082 = vmatpush.msra.mxu0 0.0
    %1083 = vmatpush.msra.mxu0 0.0
    %1084 = vmatpush.msra.mxu0 0.0
    %1085 = vmatpush.msra.mxu0 0.0
    %1086 = vmatpush.msra.mxu0 0.0
    %1087 = vmatpush.msra.mxu0 0.0
    %1088 = vmatpush.msra.mxu0 0.0
    %1089 = vmatpush.msra.mxu0 0.0
    %1090 = vmatpush.msra.mxu0 0.0
    %1091 = vmatpush.msra.mxu0 0.0
    %1092 = vmatpush.msra.mxu0 0.0
    %1093 = vmatpush.msra.mxu0 %v235
    %1094 = vmatpush.msra.mxu0 %v234
    %1095 = vmatpush.msra.mxu0 %v233
    %1096 = vmatpush.msra.mxu0 %v232
    %1097 = vmatmul.f32.gmra.mxu0 %v1038
    %v1098 = vpop.f32.mrf.mxu0
    %v1099 = vadd.f32 0.0, %v1098
    %1100 = vdwg.mxu0
    %v1101 = vadd.f32 %v182, %v1099
    %v1102 = vadd.f32 %v1101, %v313
    %v1103 = vxor.u32 %v1102, 2147483648
    %v1104 = vmul.f32 %v1103, 1.442695
    %v1105 = vpow.pop %v1104
    %v1106 = vadd.f32 %v1105, 1.0
    %v1107 = vrcp.pop %v1106
    %v1108 = vmul.f32 %v1106, %v1107
    %v1109 = vsub.f32 1.0, %v1108
    %v1110 = vmul.f32 %v1107, %v1109
    %v1111 = vadd.f32 %v1107, %v1110
    %vm1112 = vweird.f32 %v1106
    %vm1113 = vweird.f32 %v1107
    %vm1114 = vmor %vm1112, %vm1113
    %v1115 = vsel %vm1114, %v1107, %v1111
    %v1116 = vand.u32 2147483647, %v1106
    %vm1117 = vcmp.eq.f32.partialorder %v1116, 8.507059e+37
    %v1118 = vand.u32 %v1106, 2147483648
    %v1119 = vor.u32 1.1754944e-38, %v1118
    %v1120 = vsel %vm1117, %v1119, %v1115
    %v1121 = vmul.f32 1.0, %v1120
    %1122 = vmatpush.msra.mxu0 0.0
    %1123 = vmatpush.msra.mxu0 0.0
    %1124 = vmatpush.msra.mxu0 0.0
    %1125 = vmatpush.msra.mxu0 0.0
    %1126 = vmatpush.msra.mxu0 0.0
    %1127 = vmatpush.msra.mxu0 0.0
    %1128 = vmatpush.msra.mxu0 0.0
    %1129 = vmatpush.msra.mxu0 0.0
    %1130 = vmatpush.msra.mxu0 0.0
    %1131 = vmatpush.msra.mxu0 0.0
    %1132 = vmatpush.msra.mxu0 0.0
    %1133 = vmatpush.msra.mxu0 0.0
    %1134 = vmatpush.msra.mxu0 %v239
    %1135 = vmatpush.msra.mxu0 %v238
    %1136 = vmatpush.msra.mxu0 %v237
    %1137 = vmatpush.msra.mxu0 %v236
    %1138 = vmatmul.f32.gmra.mxu0 %v1038
    %v1139 = vpop.f32.mrf.mxu0
    %v1140 = vadd.f32 %v336, %v1139
    %1141 = vdwg.mxu0
    %v1142 = vmul.f32 %v1080, %v1140
    %v1143 = vadd.f32 %v226, %v1142
    %v1144 = vtanh.pop %v1143
    %v1145 = vsub.f32 1.0, %v1121
    %v1146 = vmul.f32 %v1145, %v1144
    %v1147 = vmul.f32 %v1121, %v1036
    %v1148 = vadd.f32 %v1146, %v1147
    %1149 = vst.msk [vmem:[%s6] sm:$0xff] %vm243, %v364
    %1150 = vst.msk [vmem:[%s6 + $0x8] sm:$0xff] %vm243, %v476
    %1151 = vst.msk [vmem:[%s6 + $0x10] sm:$0xff] %vm243, %v588
    %1152 = vst.msk [vmem:[%s6 + $0x18] sm:$0xff] %vm243, %v700
    %1153 = vst.msk [vmem:[%s6 + $0x20] sm:$0xff] %vm243, %v812
    %1154 = vst.msk [vmem:[%s6 + $0x28] sm:$0xff] %vm243, %v924
    %1155 = vst.msk [vmem:[%s6 + $0x30] sm:$0xff] %vm243, %v1036
    %1156 = vst.msk [vmem:[%s6 + $0x38] sm:$0xff] %vm243, %v1148
    %1157 = vst.msk [vmem:[#allocation5] sm:$0xff] %vm243, %v1148
    %v1158 = vld [vmem:[%s6] sm:$0xff]
    %v1159 = vld [vmem:[%s6 + $0x8] sm:$0xff]
    %v1160 = vld [vmem:[%s6 + $0x10] sm:$0xff]
    %v1161 = vld [vmem:[%s6 + $0x18] sm:$0xff]
    %v1162 = vld [vmem:[%s6 + $0x20] sm:$0xff]
    %v1163 = vld [vmem:[%s6 + $0x28] sm:$0xff]
    %v1164 = vld [vmem:[%s6 + $0x30] sm:$0xff]
    %v1165 = vld [vmem:[%s6 + $0x38] sm:$0xff]
    %v1166 = vld [vmem:[#allocation2] sm:$0xff]
    %v1167 = vld [vmem:[#allocation2 + $0x8] sm:$0xff]
    %v1168 = vld [vmem:[#allocation2 + $0x10] sm:$0xff]
    %v1169 = vld [vmem:[#allocation2 + $0x18] sm:$0xff]
    %v1170 = vld [vmem:[#allocation2 + $0x20] sm:$0xff]
    %v1171 = vld [vmem:[#allocation2 + $0x28] sm:$0xff]
    %v1172 = vld [vmem:[#allocation2 + $0x30] sm:$0xff]
    %v1173 = vld [vmem:[#allocation2 + $0x38] sm:$0xff]
    %v1174 = vld [vmem:[#allocation2 + $0x40] sm:$0xff]
    %v1175 = vld [vmem:[#allocation2 + $0x48] sm:$0xff]
    %v1176 = vld [vmem:[#allocation2 + $0x50] sm:$0xff]
    %v1177 = vld [vmem:[#allocation2 + $0x58] sm:$0xff]
    %s1178 = scalar_lea.vmem %s4, 3
    %v1179 = vld [vmem:[%s1178] sm:$0x1]
    %v1180 = vld [vmem:[%s1178 + $0x1] sm:$0x1]
    %v1181 = vld [vmem:[%s1178 + $0x2] sm:$0x1]
    %v1183 = vperm.slane %v1179, 0
    %v1186 = vsel %vm243, %v1158, 0
    %v1189 = vsel %vm243, %v1159, 0
    %v1192 = vsel %vm243, %v1160, 0
    %v1195 = vsel %vm243, %v1161, 0
    %v1198 = vsel %vm243, %v1162, 0
    %v1201 = vsel %vm243, %v1163, 0
    %v1204 = vsel %vm243, %v1164, 0
    %v1207 = vsel %vm243, %v1165, 0
    %1209 = vmatpush.msra.mxu0 0.0
    %1210 = vmatpush.msra.mxu0 0.0
    %1211 = vmatpush.msra.mxu0 0.0
    %1212 = vmatpush.msra.mxu0 0.0
    %1213 = vmatpush.msra.mxu0 0.0
    %1214 = vmatpush.msra.mxu0 0.0
    %1215 = vmatpush.msra.mxu0 0.0
    %1216 = vmatpush.msra.mxu0 0.0
    %1217 = vmatpush.msra.mxu0 0.0
    %1218 = vmatpush.msra.mxu0 0.0
    %1219 = vmatpush.msra.mxu0 0.0
    %1220 = vmatpush.msra.mxu0 0.0
    %1221 = vmatpush.msra.mxu0 %v1169
    %1222 = vmatpush.msra.mxu0 %v1168
    %1223 = vmatpush.msra.mxu0 %v1167
    %1224 = vmatpush.msra.mxu0 %v1166
    %1225 = vmatmul.f32.gmra.mxu0 %v1186
    %v1226 = vpop.f32.mrf.mxu0
    %v1227 = vadd.f32 %v1183, %v1226
    %1228 = vmatmul.f32.gmra.mxu0 %v1189
    %v1229 = vpop.f32.mrf.mxu0
    %v1230 = vadd.f32 %v1183, %v1229
    %1231 = vmatmul.f32.gmra.mxu0 %v1192
    %v1232 = vpop.f32.mrf.mxu0
    %v1233 = vadd.f32 %v1183, %v1232
    %1234 = vmatmul.f32.gmra.mxu0 %v1195
    %v1235 = vpop.f32.mrf.mxu0
    %v1236 = vadd.f32 %v1183, %v1235
    %1237 = vmatmul.f32.gmra.mxu0 %v1198
    %v1238 = vpop.f32.mrf.mxu0
    %v1239 = vadd.f32 %v1183, %v1238
    %1240 = vmatmul.f32.gmra.mxu0 %v1201
    %v1241 = vpop.f32.mrf.mxu0
    %v1242 = vadd.f32 %v1183, %v1241
    %1243 = vmatmul.f32.gmra.mxu0 %v1204
    %v1244 = vpop.f32.mrf.mxu0
    %v1245 = vadd.f32 %v1183, %v1244
    %1246 = vmatmul.f32.gmra.mxu0 %v1207
    %v1247 = vpop.f32.mrf.mxu0
    %v1248 = vadd.f32 %v1183, %v1247
    %1249 = vdwg.mxu0
    %v1251 = vperm.slane %v1180, 0
    %1253 = vmatpush.msra.mxu0 0.0
    %1254 = vmatpush.msra.mxu0 0.0
    %1255 = vmatpush.msra.mxu0 0.0
    %1256 = vmatpush.msra.mxu0 0.0
    %1257 = vmatpush.msra.mxu0 0.0
    %1258 = vmatpush.msra.mxu0 0.0
    %1259 = vmatpush.msra.mxu0 0.0
    %1260 = vmatpush.msra.mxu0 0.0
    %1261 = vmatpush.msra.mxu0 0.0
    %1262 = vmatpush.msra.mxu0 0.0
    %1263 = vmatpush.msra.mxu0 0.0
    %1264 = vmatpush.msra.mxu0 0.0
    %1265 = vmatpush.msra.mxu0 %v1173
    %1266 = vmatpush.msra.mxu0 %v1172
    %1267 = vmatpush.msra.mxu0 %v1171
    %1268 = vmatpush.msra.mxu0 %v1170
    %1269 = vmatmul.f32.gmra.mxu0 %v1186
    %v1270 = vpop.f32.mrf.mxu0
    %v1271 = vadd.f32 %v1251, %v1270
    %1272 = vmatmul.f32.gmra.mxu0 %v1189
    %v1273 = vpop.f32.mrf.mxu0
    %v1274 = vadd.f32 %v1251, %v1273
    %1275 = vmatmul.f32.gmra.mxu0 %v1192
    %v1276 = vpop.f32.mrf.mxu0
    %v1277 = vadd.f32 %v1251, %v1276
    %1278 = vmatmul.f32.gmra.mxu0 %v1195
    %v1279 = vpop.f32.mrf.mxu0
    %v1280 = vadd.f32 %v1251, %v1279
    %1281 = vmatmul.f32.gmra.mxu0 %v1198
    %v1282 = vpop.f32.mrf.mxu0
    %v1283 = vadd.f32 %v1251, %v1282
    %1284 = vmatmul.f32.gmra.mxu0 %v1201
    %v1285 = vpop.f32.mrf.mxu0
    %v1286 = vadd.f32 %v1251, %v1285
    %1287 = vmatmul.f32.gmra.mxu0 %v1204
    %v1288 = vpop.f32.mrf.mxu0
    %v1289 = vadd.f32 %v1251, %v1288
    %1290 = vmatmul.f32.gmra.mxu0 %v1207
    %v1291 = vpop.f32.mrf.mxu0
    %v1292 = vadd.f32 %v1251, %v1291
    %1293 = vdwg.mxu0
    %v1295 = vperm.slane %v1181, 0
    %1297 = vmatpush.msra.mxu0 0.0
    %1298 = vmatpush.msra.mxu0 0.0
    %1299 = vmatpush.msra.mxu0 0.0
    %1300 = vmatpush.msra.mxu0 0.0
    %1301 = vmatpush.msra.mxu0 0.0
    %1302 = vmatpush.msra.mxu0 0.0
    %1303 = vmatpush.msra.mxu0 0.0
    %1304 = vmatpush.msra.mxu0 0.0
    %1305 = vmatpush.msra.mxu0 0.0
    %1306 = vmatpush.msra.mxu0 0.0
    %1307 = vmatpush.msra.mxu0 0.0
    %1308 = vmatpush.msra.mxu0 0.0
    %1309 = vmatpush.msra.mxu0 %v1177
    %1310 = vmatpush.msra.mxu0 %v1176
    %1311 = vmatpush.msra.mxu0 %v1175
    %1312 = vmatpush.msra.mxu0 %v1174
    %1313 = vmatmul.f32.gmra.mxu0 %v1186
    %v1314 = vpop.f32.mrf.mxu0
    %v1315 = vadd.f32 %v1295, %v1314
    %1316 = vmatmul.f32.gmra.mxu0 %v1189
    %v1317 = vpop.f32.mrf.mxu0
    %v1318 = vadd.f32 %v1295, %v1317
    %1319 = vmatmul.f32.gmra.mxu0 %v1192
    %v1320 = vpop.f32.mrf.mxu0
    %v1321 = vadd.f32 %v1295, %v1320
    %1322 = vmatmul.f32.gmra.mxu0 %v1195
    %v1323 = vpop.f32.mrf.mxu0
    %v1324 = vadd.f32 %v1295, %v1323
    %1325 = vmatmul.f32.gmra.mxu0 %v1198
    %v1326 = vpop.f32.mrf.mxu0
    %v1327 = vadd.f32 %v1295, %v1326
    %1328 = vmatmul.f32.gmra.mxu0 %v1201
    %v1329 = vpop.f32.mrf.mxu0
    %v1330 = vadd.f32 %v1295, %v1329
    %1331 = vmatmul.f32.gmra.mxu0 %v1204
    %v1332 = vpop.f32.mrf.mxu0
    %v1333 = vadd.f32 %v1295, %v1332
    %1334 = vmatmul.f32.gmra.mxu0 %v1207
    %v1335 = vpop.f32.mrf.mxu0
    %v1336 = vadd.f32 %v1295, %v1335
    %1337 = vdwg.mxu0
    %s1338 = scalar_lea.vmem %s3, 96
    %v1339 = vld [vmem:[%s1338] sm:$0xff]
    %v1340 = vld [vmem:[%s1338 + $0x8] sm:$0xff]
    %v1341 = vld [vmem:[%s1338 + $0x10] sm:$0xff]
    %v1342 = vld [vmem:[%s1338 + $0x18] sm:$0xff]
    %v1343 = vld [vmem:[%s1338 + $0x20] sm:$0xff]
    %v1344 = vld [vmem:[%s1338 + $0x28] sm:$0xff]
    %v1345 = vld [vmem:[%s1338 + $0x30] sm:$0xff]
    %v1346 = vld [vmem:[%s1338 + $0x38] sm:$0xff]
    %v1347 = vld [vmem:[%s1338 + $0x40] sm:$0xff]
    %v1348 = vld [vmem:[%s1338 + $0x48] sm:$0xff]
    %v1349 = vld [vmem:[%s1338 + $0x50] sm:$0xff]
    %v1350 = vld [vmem:[%s1338 + $0x58] sm:$0xff]
    %s1351 = scalar_lea.vmem %s5, 3
    %v1352 = vld [vmem:[%s1351] sm:$0x1]
    %v1353 = vld [vmem:[%s1351 + $0x1] sm:$0x1]
    %v1354 = vld [vmem:[%s1351 + $0x2] sm:$0x1]
    %1355 = vmatpush.msra.mxu0 0.0
    %1356 = vmatpush.msra.mxu0 0.0
    %1357 = vmatpush.msra.mxu0 0.0
    %1358 = vmatpush.msra.mxu0 0.0
    %1359 = vmatpush.msra.mxu0 0.0
    %1360 = vmatpush.msra.mxu0 0.0
    %1361 = vmatpush.msra.mxu0 0.0
    %1362 = vmatpush.msra.mxu0 0.0
    %1363 = vmatpush.msra.mxu0 0.0
    %1364 = vmatpush.msra.mxu0 0.0
    %1365 = vmatpush.msra.mxu0 0.0
    %1366 = vmatpush.msra.mxu0 0.0
    %1367 = vmatpush.msra.mxu0 %v1342
    %1368 = vmatpush.msra.mxu0 %v1341
    %1369 = vmatpush.msra.mxu0 %v1340
    %1370 = vmatpush.msra.mxu0 %v1339
    %1371 = vmatmul.f32.gmra.mxu0 %v245
    %v1372 = vpop.f32.mrf.mxu0
    %v1373 = vadd.f32 0.0, %v1372
    %1374 = vdwg.mxu0
    %v1375 = vadd.f32 %v1227, %v1373
    %v1377 = vperm.slane %v1352, 0
    %v1379 = vadd.f32 %v1375, %v1377
    %v1380 = vxor.u32 %v1379, 2147483648
    %v1381 = vmul.f32 %v1380, 1.442695
    %v1382 = vpow.pop %v1381
    %v1383 = vadd.f32 %v1382, 1.0
    %v1384 = vrcp.pop %v1383
    %v1385 = vmul.f32 %v1383, %v1384
    %v1386 = vsub.f32 1.0, %v1385
    %v1387 = vmul.f32 %v1384, %v1386
    %v1388 = vadd.f32 %v1384, %v1387
    %vm1389 = vweird.f32 %v1383
    %vm1390 = vweird.f32 %v1384
    %vm1391 = vmor %vm1389, %vm1390
    %v1392 = vsel %vm1391, %v1384, %v1388
    %v1393 = vand.u32 2147483647, %v1383
    %vm1394 = vcmp.eq.f32.partialorder %v1393, 8.507059e+37
    %v1395 = vand.u32 %v1383, 2147483648
    %v1396 = vor.u32 1.1754944e-38, %v1395
    %v1397 = vsel %vm1394, %v1396, %v1392
    %v1398 = vmul.f32 1.0, %v1397
    %1399 = vmatpush.msra.mxu0 0.0
    %1400 = vmatpush.msra.mxu0 0.0
    %1401 = vmatpush.msra.mxu0 0.0
    %1402 = vmatpush.msra.mxu0 0.0
    %1403 = vmatpush.msra.mxu0 0.0
    %1404 = vmatpush.msra.mxu0 0.0
    %1405 = vmatpush.msra.mxu0 0.0
    %1406 = vmatpush.msra.mxu0 0.0
    %1407 = vmatpush.msra.mxu0 0.0
    %1408 = vmatpush.msra.mxu0 0.0
    %1409 = vmatpush.msra.mxu0 0.0
    %1410 = vmatpush.msra.mxu0 0.0
    %1411 = vmatpush.msra.mxu0 %v1346
    %1412 = vmatpush.msra.mxu0 %v1345
    %1413 = vmatpush.msra.mxu0 %v1344
    %1414 = vmatpush.msra.mxu0 %v1343
    %1415 = vmatmul.f32.gmra.mxu0 %v245
    %v1416 = vpop.f32.mrf.mxu0
    %v1417 = vadd.f32 0.0, %v1416
    %1418 = vdwg.mxu0
    %v1419 = vadd.f32 %v1271, %v1417
    %v1421 = vperm.slane %v1353, 0
    %v1423 = vadd.f32 %v1419, %v1421
    %v1424 = vxor.u32 %v1423, 2147483648
    %v1425 = vmul.f32 %v1424, 1.442695
    %v1426 = vpow.pop %v1425
    %v1427 = vadd.f32 %v1426, 1.0
    %v1428 = vrcp.pop %v1427
    %v1429 = vmul.f32 %v1427, %v1428
    %v1430 = vsub.f32 1.0, %v1429
    %v1431 = vmul.f32 %v1428, %v1430
    %v1432 = vadd.f32 %v1428, %v1431
    %vm1433 = vweird.f32 %v1427
    %vm1434 = vweird.f32 %v1428
    %vm1435 = vmor %vm1433, %vm1434
    %v1436 = vsel %vm1435, %v1428, %v1432
    %v1437 = vand.u32 2147483647, %v1427
    %vm1438 = vcmp.eq.f32.partialorder %v1437, 8.507059e+37
    %v1439 = vand.u32 %v1427, 2147483648
    %v1440 = vor.u32 1.1754944e-38, %v1439
    %v1441 = vsel %vm1438, %v1440, %v1436
    %v1442 = vmul.f32 1.0, %v1441
    %v1444 = vperm.slane %v1354, 0
    %1446 = vmatpush.msra.mxu0 0.0
    %1447 = vmatpush.msra.mxu0 0.0
    %1448 = vmatpush.msra.mxu0 0.0
    %1449 = vmatpush.msra.mxu0 0.0
    %1450 = vmatpush.msra.mxu0 0.0
    %1451 = vmatpush.msra.mxu0 0.0
    %1452 = vmatpush.msra.mxu0 0.0
    %1453 = vmatpush.msra.mxu0 0.0
    %1454 = vmatpush.msra.mxu0 0.0
    %1455 = vmatpush.msra.mxu0 0.0
    %1456 = vmatpush.msra.mxu0 0.0
    %1457 = vmatpush.msra.mxu0 0.0
    %1458 = vmatpush.msra.mxu0 %v1350
    %1459 = vmatpush.msra.mxu0 %v1349
    %1460 = vmatpush.msra.mxu0 %v1348
    %1461 = vmatpush.msra.mxu0 %v1347
    %1462 = vmatmul.f32.gmra.mxu0 %v245
    %v1463 = vpop.f32.mrf.mxu0
    %v1464 = vadd.f32 %v1444, %v1463
    %1465 = vdwg.mxu0
    %v1466 = vmul.f32 %v1398, %v1464
    %v1467 = vadd.f32 %v1315, %v1466
    %v1468 = vtanh.pop %v1467
    %v1469 = vsub.f32 1.0, %v1442
    %v1470 = vmul.f32 %v1469, %v1468
    %v1471 = vmul.f32 %v1442, 0.0
    %v1472 = vadd.f32 %v1470, %v1471
    %v1474 = vsel %vm243, %v1472, 0
    %1476 = vmatpush.msra.mxu0 0.0
    %1477 = vmatpush.msra.mxu0 0.0
    %1478 = vmatpush.msra.mxu0 0.0
    %1479 = vmatpush.msra.mxu0 0.0
    %1480 = vmatpush.msra.mxu0 0.0
    %1481 = vmatpush.msra.mxu0 0.0
    %1482 = vmatpush.msra.mxu0 0.0
    %1483 = vmatpush.msra.mxu0 0.0
    %1484 = vmatpush.msra.mxu0 0.0
    %1485 = vmatpush.msra.mxu0 0.0
    %1486 = vmatpush.msra.mxu0 0.0
    %1487 = vmatpush.msra.mxu0 0.0
    %1488 = vmatpush.msra.mxu0 %v1342
    %1489 = vmatpush.msra.mxu0 %v1341
    %1490 = vmatpush.msra.mxu0 %v1340
    %1491 = vmatpush.msra.mxu0 %v1339
    %1492 = vmatmul.f32.gmra.mxu0 %v1474
    %v1493 = vpop.f32.mrf.mxu0
    %v1494 = vadd.f32 0.0, %v1493
    %1495 = vdwg.mxu0
    %v1496 = vadd.f32 %v1230, %v1494
    %v1497 = vadd.f32 %v1496, %v1377
    %v1498 = vxor.u32 %v1497, 2147483648
    %v1499 = vmul.f32 %v1498, 1.442695
    %v1500 = vpow.pop %v1499
    %v1501 = vadd.f32 %v1500, 1.0
    %v1502 = vrcp.pop %v1501
    %v1503 = vmul.f32 %v1501, %v1502
    %v1504 = vsub.f32 1.0, %v1503
    %v1505 = vmul.f32 %v1502, %v1504
    %v1506 = vadd.f32 %v1502, %v1505
    %vm1507 = vweird.f32 %v1501
    %vm1508 = vweird.f32 %v1502
    %vm1509 = vmor %vm1507, %vm1508
    %v1510 = vsel %vm1509, %v1502, %v1506
    %v1511 = vand.u32 2147483647, %v1501
    %vm1512 = vcmp.eq.f32.partialorder %v1511, 8.507059e+37
    %v1513 = vand.u32 %v1501, 2147483648
    %v1514 = vor.u32 1.1754944e-38, %v1513
    %v1515 = vsel %vm1512, %v1514, %v1510
    %v1516 = vmul.f32 1.0, %v1515
    %1517 = vmatpush.msra.mxu0 0.0
    %1518 = vmatpush.msra.mxu0 0.0
    %1519 = vmatpush.msra.mxu0 0.0
    %1520 = vmatpush.msra.mxu0 0.0
    %1521 = vmatpush.msra.mxu0 0.0
    %1522 = vmatpush.msra.mxu0 0.0
    %1523 = vmatpush.msra.mxu0 0.0
    %1524 = vmatpush.msra.mxu0 0.0
    %1525 = vmatpush.msra.mxu0 0.0
    %1526 = vmatpush.msra.mxu0 0.0
    %1527 = vmatpush.msra.mxu0 0.0
    %1528 = vmatpush.msra.mxu0 0.0
    %1529 = vmatpush.msra.mxu0 %v1346
    %1530 = vmatpush.msra.mxu0 %v1345
    %1531 = vmatpush.msra.mxu0 %v1344
    %1532 = vmatpush.msra.mxu0 %v1343
    %1533 = vmatmul.f32.gmra.mxu0 %v1474
    %v1534 = vpop.f32.mrf.mxu0
    %v1535 = vadd.f32 0.0, %v1534
    %1536 = vdwg.mxu0
    %v1537 = vadd.f32 %v1274, %v1535
    %v1538 = vadd.f32 %v1537, %v1421
    %v1539 = vxor.u32 %v1538, 2147483648
    %v1540 = vmul.f32 %v1539, 1.442695
    %v1541 = vpow.pop %v1540
    %v1542 = vadd.f32 %v1541, 1.0
    %v1543 = vrcp.pop %v1542
    %v1544 = vmul.f32 %v1542, %v1543
    %v1545 = vsub.f32 1.0, %v1544
    %v1546 = vmul.f32 %v1543, %v1545
    %v1547 = vadd.f32 %v1543, %v1546
    %vm1548 = vweird.f32 %v1542
    %vm1549 = vweird.f32 %v1543
    %vm1550 = vmor %vm1548, %vm1549
    %v1551 = vsel %vm1550, %v1543, %v1547
    %v1552 = vand.u32 2147483647, %v1542
    %vm1553 = vcmp.eq.f32.partialorder %v1552, 8.507059e+37
    %v1554 = vand.u32 %v1542, 2147483648
    %v1555 = vor.u32 1.1754944e-38, %v1554
    %v1556 = vsel %vm1553, %v1555, %v1551
    %v1557 = vmul.f32 1.0, %v1556
    %1558 = vmatpush.msra.mxu0 0.0
    %1559 = vmatpush.msra.mxu0 0.0
    %1560 = vmatpush.msra.mxu0 0.0
    %1561 = vmatpush.msra.mxu0 0.0
    %1562 = vmatpush.msra.mxu0 0.0
    %1563 = vmatpush.msra.mxu0 0.0
    %1564 = vmatpush.msra.mxu0 0.0
    %1565 = vmatpush.msra.mxu0 0.0
    %1566 = vmatpush.msra.mxu0 0.0
    %1567 = vmatpush.msra.mxu0 0.0
    %1568 = vmatpush.msra.mxu0 0.0
    %1569 = vmatpush.msra.mxu0 0.0
    %1570 = vmatpush.msra.mxu0 %v1350
    %1571 = vmatpush.msra.mxu0 %v1349
    %1572 = vmatpush.msra.mxu0 %v1348
    %1573 = vmatpush.msra.mxu0 %v1347
    %1574 = vmatmul.f32.gmra.mxu0 %v1474
    %v1575 = vpop.f32.mrf.mxu0
    %v1576 = vadd.f32 %v1444, %v1575
    %1577 = vdwg.mxu0
    %v1578 = vmul.f32 %v1516, %v1576
    %v1579 = vadd.f32 %v1318, %v1578
    %v1580 = vtanh.pop %v1579
    %v1581 = vsub.f32 1.0, %v1557
    %v1582 = vmul.f32 %v1581, %v1580
    %v1583 = vmul.f32 %v1557, %v1472
    %v1584 = vadd.f32 %v1582, %v1583
    %v1586 = vsel %vm243, %v1584, 0
    %1588 = vmatpush.msra.mxu0 0.0
    %1589 = vmatpush.msra.mxu0 0.0
    %1590 = vmatpush.msra.mxu0 0.0
    %1591 = vmatpush.msra.mxu0 0.0
    %1592 = vmatpush.msra.mxu0 0.0
    %1593 = vmatpush.msra.mxu0 0.0
    %1594 = vmatpush.msra.mxu0 0.0
    %1595 = vmatpush.msra.mxu0 0.0
    %1596 = vmatpush.msra.mxu0 0.0
    %1597 = vmatpush.msra.mxu0 0.0
    %1598 = vmatpush.msra.mxu0 0.0
    %1599 = vmatpush.msra.mxu0 0.0
    %1600 = vmatpush.msra.mxu0 %v1342
    %1601 = vmatpush.msra.mxu0 %v1341
    %1602 = vmatpush.msra.mxu0 %v1340
    %1603 = vmatpush.msra.mxu0 %v1339
    %1604 = vmatmul.f32.gmra.mxu0 %v1586
    %v1605 = vpop.f32.mrf.mxu0
    %v1606 = vadd.f32 0.0, %v1605
    %1607 = vdwg.mxu0
    %v1608 = vadd.f32 %v1233, %v1606
    %v1609 = vadd.f32 %v1608, %v1377
    %v1610 = vxor.u32 %v1609, 2147483648
    %v1611 = vmul.f32 %v1610, 1.442695
    %v1612 = vpow.pop %v1611
    %v1613 = vadd.f32 %v1612, 1.0
    %v1614 = vrcp.pop %v1613
    %v1615 = vmul.f32 %v1613, %v1614
    %v1616 = vsub.f32 1.0, %v1615
    %v1617 = vmul.f32 %v1614, %v1616
    %v1618 = vadd.f32 %v1614, %v1617
    %vm1619 = vweird.f32 %v1613
    %vm1620 = vweird.f32 %v1614
    %vm1621 = vmor %vm1619, %vm1620
    %v1622 = vsel %vm1621, %v1614, %v1618
    %v1623 = vand.u32 2147483647, %v1613
    %vm1624 = vcmp.eq.f32.partialorder %v1623, 8.507059e+37
    %v1625 = vand.u32 %v1613, 2147483648
    %v1626 = vor.u32 1.1754944e-38, %v1625
    %v1627 = vsel %vm1624, %v1626, %v1622
    %v1628 = vmul.f32 1.0, %v1627
    %1629 = vmatpush.msra.mxu0 0.0
    %1630 = vmatpush.msra.mxu0 0.0
    %1631 = vmatpush.msra.mxu0 0.0
    %1632 = vmatpush.msra.mxu0 0.0
    %1633 = vmatpush.msra.mxu0 0.0
    %1634 = vmatpush.msra.mxu0 0.0
    %1635 = vmatpush.msra.mxu0 0.0
    %1636 = vmatpush.msra.mxu0 0.0
    %1637 = vmatpush.msra.mxu0 0.0
    %1638 = vmatpush.msra.mxu0 0.0
    %1639 = vmatpush.msra.mxu0 0.0
    %1640 = vmatpush.msra.mxu0 0.0
    %1641 = vmatpush.msra.mxu0 %v1346
    %1642 = vmatpush.msra.mxu0 %v1345
    %1643 = vmatpush.msra.mxu0 %v1344
    %1644 = vmatpush.msra.mxu0 %v1343
    %1645 = vmatmul.f32.gmra.mxu0 %v1586
    %v1646 = vpop.f32.mrf.mxu0
    %v1647 = vadd.f32 0.0, %v1646
    %1648 = vdwg.mxu0
    %v1649 = vadd.f32 %v1277, %v1647
    %v1650 = vadd.f32 %v1649, %v1421
    %v1651 = vxor.u32 %v1650, 2147483648
    %v1652 = vmul.f32 %v1651, 1.442695
    %v1653 = vpow.pop %v1652
    %v1654 = vadd.f32 %v1653, 1.0
    %v1655 = vrcp.pop %v1654
    %v1656 = vmul.f32 %v1654, %v1655
    %v1657 = vsub.f32 1.0, %v1656
    %v1658 = vmul.f32 %v1655, %v1657
    %v1659 = vadd.f32 %v1655, %v1658
    %vm1660 = vweird.f32 %v1654
    %vm1661 = vweird.f32 %v1655
    %vm1662 = vmor %vm1660, %vm1661
    %v1663 = vsel %vm1662, %v1655, %v1659
    %v1664 = vand.u32 2147483647, %v1654
    %vm1665 = vcmp.eq.f32.partialorder %v1664, 8.507059e+37
    %v1666 = vand.u32 %v1654, 2147483648
    %v1667 = vor.u32 1.1754944e-38, %v1666
    %v1668 = vsel %vm1665, %v1667, %v1663
    %v1669 = vmul.f32 1.0, %v1668
    %1670 = vmatpush.msra.mxu0 0.0
    %1671 = vmatpush.msra.mxu0 0.0
    %1672 = vmatpush.msra.mxu0 0.0
    %1673 = vmatpush.msra.mxu0 0.0
    %1674 = vmatpush.msra.mxu0 0.0
    %1675 = vmatpush.msra.mxu0 0.0
    %1676 = vmatpush.msra.mxu0 0.0
    %1677 = vmatpush.msra.mxu0 0.0
    %1678 = vmatpush.msra.mxu0 0.0
    %1679 = vmatpush.msra.mxu0 0.0
    %1680 = vmatpush.msra.mxu0 0.0
    %1681 = vmatpush.msra.mxu0 0.0
    %1682 = vmatpush.msra.mxu0 %v1350
    %1683 = vmatpush.msra.mxu0 %v1349
    %1684 = vmatpush.msra.mxu0 %v1348
    %1685 = vmatpush.msra.mxu0 %v1347
    %1686 = vmatmul.f32.gmra.mxu0 %v1586
    %v1687 = vpop.f32.mrf.mxu0
    %v1688 = vadd.f32 %v1444, %v1687
    %1689 = vdwg.mxu0
    %v1690 = vmul.f32 %v1628, %v1688
    %v1691 = vadd.f32 %v1321, %v1690
    %v1692 = vtanh.pop %v1691
    %v1693 = vsub.f32 1.0, %v1669
    %v1694 = vmul.f32 %v1693, %v1692
    %v1695 = vmul.f32 %v1669, %v1584
    %v1696 = vadd.f32 %v1694, %v1695
    %v1698 = vsel %vm243, %v1696, 0
    %1700 = vmatpush.msra.mxu0 0.0
    %1701 = vmatpush.msra.mxu0 0.0
    %1702 = vmatpush.msra.mxu0 0.0
    %1703 = vmatpush.msra.mxu0 0.0
    %1704 = vmatpush.msra.mxu0 0.0
    %1705 = vmatpush.msra.mxu0 0.0
    %1706 = vmatpush.msra.mxu0 0.0
    %1707 = vmatpush.msra.mxu0 0.0
    %1708 = vmatpush.msra.mxu0 0.0
    %1709 = vmatpush.msra.mxu0 0.0
    %1710 = vmatpush.msra.mxu0 0.0
    %1711 = vmatpush.msra.mxu0 0.0
    %1712 = vmatpush.msra.mxu0 %v1342
    %1713 = vmatpush.msra.mxu0 %v1341
    %1714 = vmatpush.msra.mxu0 %v1340
    %1715 = vmatpush.msra.mxu0 %v1339
    %1716 = vmatmul.f32.gmra.mxu0 %v1698
    %v1717 = vpop.f32.mrf.mxu0
    %v1718 = vadd.f32 0.0, %v1717
    %1719 = vdwg.mxu0
    %v1720 = vadd.f32 %v1236, %v1718
    %v1721 = vadd.f32 %v1720, %v1377
    %v1722 = vxor.u32 %v1721, 2147483648
    %v1723 = vmul.f32 %v1722, 1.442695
    %v1724 = vpow.pop %v1723
    %v1725 = vadd.f32 %v1724, 1.0
    %v1726 = vrcp.pop %v1725
    %v1727 = vmul.f32 %v1725, %v1726
    %v1728 = vsub.f32 1.0, %v1727
    %v1729 = vmul.f32 %v1726, %v1728
    %v1730 = vadd.f32 %v1726, %v1729
    %vm1731 = vweird.f32 %v1725
    %vm1732 = vweird.f32 %v1726
    %vm1733 = vmor %vm1731, %vm1732
    %v1734 = vsel %vm1733, %v1726, %v1730
    %v1735 = vand.u32 2147483647, %v1725
    %vm1736 = vcmp.eq.f32.partialorder %v1735, 8.507059e+37
    %v1737 = vand.u32 %v1725, 2147483648
    %v1738 = vor.u32 1.1754944e-38, %v1737
    %v1739 = vsel %vm1736, %v1738, %v1734
    %v1740 = vmul.f32 1.0, %v1739
    %1741 = vmatpush.msra.mxu0 0.0
    %1742 = vmatpush.msra.mxu0 0.0
    %1743 = vmatpush.msra.mxu0 0.0
    %1744 = vmatpush.msra.mxu0 0.0
    %1745 = vmatpush.msra.mxu0 0.0
    %1746 = vmatpush.msra.mxu0 0.0
    %1747 = vmatpush.msra.mxu0 0.0
    %1748 = vmatpush.msra.mxu0 0.0
    %1749 = vmatpush.msra.mxu0 0.0
    %1750 = vmatpush.msra.mxu0 0.0
    %1751 = vmatpush.msra.mxu0 0.0
    %1752 = vmatpush.msra.mxu0 0.0
    %1753 = vmatpush.msra.mxu0 %v1346
    %1754 = vmatpush.msra.mxu0 %v1345
    %1755 = vmatpush.msra.mxu0 %v1344
    %1756 = vmatpush.msra.mxu0 %v1343
    %1757 = vmatmul.f32.gmra.mxu0 %v1698
    %v1758 = vpop.f32.mrf.mxu0
    %v1759 = vadd.f32 0.0, %v1758
    %1760 = vdwg.mxu0
    %v1761 = vadd.f32 %v1280, %v1759
    %v1762 = vadd.f32 %v1761, %v1421
    %v1763 = vxor.u32 %v1762, 2147483648
    %v1764 = vmul.f32 %v1763, 1.442695
    %v1765 = vpow.pop %v1764
    %v1766 = vadd.f32 %v1765, 1.0
    %v1767 = vrcp.pop %v1766
    %v1768 = vmul.f32 %v1766, %v1767
    %v1769 = vsub.f32 1.0, %v1768
    %v1770 = vmul.f32 %v1767, %v1769
    %v1771 = vadd.f32 %v1767, %v1770
    %vm1772 = vweird.f32 %v1766
    %vm1773 = vweird.f32 %v1767
    %vm1774 = vmor %vm1772, %vm1773
    %v1775 = vsel %vm1774, %v1767, %v1771
    %v1776 = vand.u32 2147483647, %v1766
    %vm1777 = vcmp.eq.f32.partialorder %v1776, 8.507059e+37
    %v1778 = vand.u32 %v1766, 2147483648
    %v1779 = vor.u32 1.1754944e-38, %v1778
    %v1780 = vsel %vm1777, %v1779, %v1775
    %v1781 = vmul.f32 1.0, %v1780
    %1782 = vmatpush.msra.mxu0 0.0
    %1783 = vmatpush.msra.mxu0 0.0
    %1784 = vmatpush.msra.mxu0 0.0
    %1785 = vmatpush.msra.mxu0 0.0
    %1786 = vmatpush.msra.mxu0 0.0
    %1787 = vmatpush.msra.mxu0 0.0
    %1788 = vmatpush.msra.mxu0 0.0
    %1789 = vmatpush.msra.mxu0 0.0
    %1790 = vmatpush.msra.mxu0 0.0
    %1791 = vmatpush.msra.mxu0 0.0
    %1792 = vmatpush.msra.mxu0 0.0
    %1793 = vmatpush.msra.mxu0 0.0
    %1794 = vmatpush.msra.mxu0 %v1350
    %1795 = vmatpush.msra.mxu0 %v1349
    %1796 = vmatpush.msra.mxu0 %v1348
    %1797 = vmatpush.msra.mxu0 %v1347
    %1798 = vmatmul.f32.gmra.mxu0 %v1698
    %v1799 = vpop.f32.mrf.mxu0
    %v1800 = vadd.f32 %v1444, %v1799
    %1801 = vdwg.mxu0
    %v1802 = vmul.f32 %v1740, %v1800
    %v1803 = vadd.f32 %v1324, %v1802
    %v1804 = vtanh.pop %v1803
    %v1805 = vsub.f32 1.0, %v1781
    %v1806 = vmul.f32 %v1805, %v1804
    %v1807 = vmul.f32 %v1781, %v1696
    %v1808 = vadd.f32 %v1806, %v1807
    %v1810 = vsel %vm243, %v1808, 0
    %1812 = vmatpush.msra.mxu0 0.0
    %1813 = vmatpush.msra.mxu0 0.0
    %1814 = vmatpush.msra.mxu0 0.0
    %1815 = vmatpush.msra.mxu0 0.0
    %1816 = vmatpush.msra.mxu0 0.0
    %1817 = vmatpush.msra.mxu0 0.0
    %1818 = vmatpush.msra.mxu0 0.0
    %1819 = vmatpush.msra.mxu0 0.0
    %1820 = vmatpush.msra.mxu0 0.0
    %1821 = vmatpush.msra.mxu0 0.0
    %1822 = vmatpush.msra.mxu0 0.0
    %1823 = vmatpush.msra.mxu0 0.0
    %1824 = vmatpush.msra.mxu0 %v1342
    %1825 = vmatpush.msra.mxu0 %v1341
    %1826 = vmatpush.msra.mxu0 %v1340
    %1827 = vmatpush.msra.mxu0 %v1339
    %1828 = vmatmul.f32.gmra.mxu0 %v1810
    %v1829 = vpop.f32.mrf.mxu0
    %v1830 = vadd.f32 0.0, %v1829
    %1831 = vdwg.mxu0
    %v1832 = vadd.f32 %v1239, %v1830
    %v1833 = vadd.f32 %v1832, %v1377
    %v1834 = vxor.u32 %v1833, 2147483648
    %v1835 = vmul.f32 %v1834, 1.442695
    %v1836 = vpow.pop %v1835
    %v1837 = vadd.f32 %v1836, 1.0
    %v1838 = vrcp.pop %v1837
    %v1839 = vmul.f32 %v1837, %v1838
    %v1840 = vsub.f32 1.0, %v1839
    %v1841 = vmul.f32 %v1838, %v1840
    %v1842 = vadd.f32 %v1838, %v1841
    %vm1843 = vweird.f32 %v1837
    %vm1844 = vweird.f32 %v1838
    %vm1845 = vmor %vm1843, %vm1844
    %v1846 = vsel %vm1845, %v1838, %v1842
    %v1847 = vand.u32 2147483647, %v1837
    %vm1848 = vcmp.eq.f32.partialorder %v1847, 8.507059e+37
    %v1849 = vand.u32 %v1837, 2147483648
    %v1850 = vor.u32 1.1754944e-38, %v1849
    %v1851 = vsel %vm1848, %v1850, %v1846
    %v1852 = vmul.f32 1.0, %v1851
    %1853 = vmatpush.msra.mxu0 0.0
    %1854 = vmatpush.msra.mxu0 0.0
    %1855 = vmatpush.msra.mxu0 0.0
    %1856 = vmatpush.msra.mxu0 0.0
    %1857 = vmatpush.msra.mxu0 0.0
    %1858 = vmatpush.msra.mxu0 0.0
    %1859 = vmatpush.msra.mxu0 0.0
    %1860 = vmatpush.msra.mxu0 0.0
    %1861 = vmatpush.msra.mxu0 0.0
    %1862 = vmatpush.msra.mxu0 0.0
    %1863 = vmatpush.msra.mxu0 0.0
    %1864 = vmatpush.msra.mxu0 0.0
    %1865 = vmatpush.msra.mxu0 %v1346
    %1866 = vmatpush.msra.mxu0 %v1345
    %1867 = vmatpush.msra.mxu0 %v1344
    %1868 = vmatpush.msra.mxu0 %v1343
    %1869 = vmatmul.f32.gmra.mxu0 %v1810
    %v1870 = vpop.f32.mrf.mxu0
    %v1871 = vadd.f32 0.0, %v1870
    %1872 = vdwg.mxu0
    %v1873 = vadd.f32 %v1283, %v1871
    %v1874 = vadd.f32 %v1873, %v1421
    %v1875 = vxor.u32 %v1874, 2147483648
    %v1876 = vmul.f32 %v1875, 1.442695
    %v1877 = vpow.pop %v1876
    %v1878 = vadd.f32 %v1877, 1.0
    %v1879 = vrcp.pop %v1878
    %v1880 = vmul.f32 %v1878, %v1879
    %v1881 = vsub.f32 1.0, %v1880
    %v1882 = vmul.f32 %v1879, %v1881
    %v1883 = vadd.f32 %v1879, %v1882
    %vm1884 = vweird.f32 %v1878
    %vm1885 = vweird.f32 %v1879
    %vm1886 = vmor %vm1884, %vm1885
    %v1887 = vsel %vm1886, %v1879, %v1883
    %v1888 = vand.u32 2147483647, %v1878
    %vm1889 = vcmp.eq.f32.partialorder %v1888, 8.507059e+37
    %v1890 = vand.u32 %v1878, 2147483648
    %v1891 = vor.u32 1.1754944e-38, %v1890
    %v1892 = vsel %vm1889, %v1891, %v1887
    %v1893 = vmul.f32 1.0, %v1892
    %1894 = vmatpush.msra.mxu0 0.0
    %1895 = vmatpush.msra.mxu0 0.0
    %1896 = vmatpush.msra.mxu0 0.0
    %1897 = vmatpush.msra.mxu0 0.0
    %1898 = vmatpush.msra.mxu0 0.0
    %1899 = vmatpush.msra.mxu0 0.0
    %1900 = vmatpush.msra.mxu0 0.0
    %1901 = vmatpush.msra.mxu0 0.0
    %1902 = vmatpush.msra.mxu0 0.0
    %1903 = vmatpush.msra.mxu0 0.0
    %1904 = vmatpush.msra.mxu0 0.0
    %1905 = vmatpush.msra.mxu0 0.0
    %1906 = vmatpush.msra.mxu0 %v1350
    %1907 = vmatpush.msra.mxu0 %v1349
    %1908 = vmatpush.msra.mxu0 %v1348
    %1909 = vmatpush.msra.mxu0 %v1347
    %1910 = vmatmul.f32.gmra.mxu0 %v1810
    %v1911 = vpop.f32.mrf.mxu0
    %v1912 = vadd.f32 %v1444, %v1911
    %1913 = vdwg.mxu0
    %v1914 = vmul.f32 %v1852, %v1912
    %v1915 = vadd.f32 %v1327, %v1914
    %v1916 = vtanh.pop %v1915
    %v1917 = vsub.f32 1.0, %v1893
    %v1918 = vmul.f32 %v1917, %v1916
    %v1919 = vmul.f32 %v1893, %v1808
    %v1920 = vadd.f32 %v1918, %v1919
    %v1922 = vsel %vm243, %v1920, 0
    %1924 = vmatpush.msra.mxu0 0.0
    %1925 = vmatpush.msra.mxu0 0.0
    %1926 = vmatpush.msra.mxu0 0.0
    %1927 = vmatpush.msra.mxu0 0.0
    %1928 = vmatpush.msra.mxu0 0.0
    %1929 = vmatpush.msra.mxu0 0.0
    %1930 = vmatpush.msra.mxu0 0.0
    %1931 = vmatpush.msra.mxu0 0.0
    %1932 = vmatpush.msra.mxu0 0.0
    %1933 = vmatpush.msra.mxu0 0.0
    %1934 = vmatpush.msra.mxu0 0.0
    %1935 = vmatpush.msra.mxu0 0.0
    %1936 = vmatpush.msra.mxu0 %v1342
    %1937 = vmatpush.msra.mxu0 %v1341
    %1938 = vmatpush.msra.mxu0 %v1340
    %1939 = vmatpush.msra.mxu0 %v1339
    %1940 = vmatmul.f32.gmra.mxu0 %v1922
    %v1941 = vpop.f32.mrf.mxu0
    %v1942 = vadd.f32 0.0, %v1941
    %1943 = vdwg.mxu0
    %v1944 = vadd.f32 %v1242, %v1942
    %v1945 = vadd.f32 %v1944, %v1377
    %v1946 = vxor.u32 %v1945, 2147483648
    %v1947 = vmul.f32 %v1946, 1.442695
    %v1948 = vpow.pop %v1947
    %v1949 = vadd.f32 %v1948, 1.0
    %v1950 = vrcp.pop %v1949
    %v1951 = vmul.f32 %v1949, %v1950
    %v1952 = vsub.f32 1.0, %v1951
    %v1953 = vmul.f32 %v1950, %v1952
    %v1954 = vadd.f32 %v1950, %v1953
    %vm1955 = vweird.f32 %v1949
    %vm1956 = vweird.f32 %v1950
    %vm1957 = vmor %vm1955, %vm1956
    %v1958 = vsel %vm1957, %v1950, %v1954
    %v1959 = vand.u32 2147483647, %v1949
    %vm1960 = vcmp.eq.f32.partialorder %v1959, 8.507059e+37
    %v1961 = vand.u32 %v1949, 2147483648
    %v1962 = vor.u32 1.1754944e-38, %v1961
    %v1963 = vsel %vm1960, %v1962, %v1958
    %v1964 = vmul.f32 1.0, %v1963
    %1965 = vmatpush.msra.mxu0 0.0
    %1966 = vmatpush.msra.mxu0 0.0
    %1967 = vmatpush.msra.mxu0 0.0
    %1968 = vmatpush.msra.mxu0 0.0
    %1969 = vmatpush.msra.mxu0 0.0
    %1970 = vmatpush.msra.mxu0 0.0
    %1971 = vmatpush.msra.mxu0 0.0
    %1972 = vmatpush.msra.mxu0 0.0
    %1973 = vmatpush.msra.mxu0 0.0
    %1974 = vmatpush.msra.mxu0 0.0
    %1975 = vmatpush.msra.mxu0 0.0
    %1976 = vmatpush.msra.mxu0 0.0
    %1977 = vmatpush.msra.mxu0 %v1346
    %1978 = vmatpush.msra.mxu0 %v1345
    %1979 = vmatpush.msra.mxu0 %v1344
    %1980 = vmatpush.msra.mxu0 %v1343
    %1981 = vmatmul.f32.gmra.mxu0 %v1922
    %v1982 = vpop.f32.mrf.mxu0
    %v1983 = vadd.f32 0.0, %v1982
    %1984 = vdwg.mxu0
    %v1985 = vadd.f32 %v1286, %v1983
    %v1986 = vadd.f32 %v1985, %v1421
    %v1987 = vxor.u32 %v1986, 2147483648
    %v1988 = vmul.f32 %v1987, 1.442695
    %v1989 = vpow.pop %v1988
    %v1990 = vadd.f32 %v1989, 1.0
    %v1991 = vrcp.pop %v1990
    %v1992 = vmul.f32 %v1990, %v1991
    %v1993 = vsub.f32 1.0, %v1992
    %v1994 = vmul.f32 %v1991, %v1993
    %v1995 = vadd.f32 %v1991, %v1994
    %vm1996 = vweird.f32 %v1990
    %vm1997 = vweird.f32 %v1991
    %vm1998 = vmor %vm1996, %vm1997
    %v1999 = vsel %vm1998, %v1991, %v1995
    %v2000 = vand.u32 2147483647, %v1990
    %vm2001 = vcmp.eq.f32.partialorder %v2000, 8.507059e+37
    %v2002 = vand.u32 %v1990, 2147483648
    %v2003 = vor.u32 1.1754944e-38, %v2002
    %v2004 = vsel %vm2001, %v2003, %v1999
    %v2005 = vmul.f32 1.0, %v2004
    %2006 = vmatpush.msra.mxu0 0.0
    %2007 = vmatpush.msra.mxu0 0.0
    %2008 = vmatpush.msra.mxu0 0.0
    %2009 = vmatpush.msra.mxu0 0.0
    %2010 = vmatpush.msra.mxu0 0.0
    %2011 = vmatpush.msra.mxu0 0.0
    %2012 = vmatpush.msra.mxu0 0.0
    %2013 = vmatpush.msra.mxu0 0.0
    %2014 = vmatpush.msra.mxu0 0.0
    %2015 = vmatpush.msra.mxu0 0.0
    %2016 = vmatpush.msra.mxu0 0.0
    %2017 = vmatpush.msra.mxu0 0.0
    %2018 = vmatpush.msra.mxu0 %v1350
    %2019 = vmatpush.msra.mxu0 %v1349
    %2020 = vmatpush.msra.mxu0 %v1348
    %2021 = vmatpush.msra.mxu0 %v1347
    %2022 = vmatmul.f32.gmra.mxu0 %v1922
    %v2023 = vpop.f32.mrf.mxu0
    %v2024 = vadd.f32 %v1444, %v2023
    %2025 = vdwg.mxu0
    %v2026 = vmul.f32 %v1964, %v2024
    %v2027 = vadd.f32 %v1330, %v2026
    %v2028 = vtanh.pop %v2027
    %v2029 = vsub.f32 1.0, %v2005
    %v2030 = vmul.f32 %v2029, %v2028
    %v2031 = vmul.f32 %v2005, %v1920
    %v2032 = vadd.f32 %v2030, %v2031
    %v2034 = vsel %vm243, %v2032, 0
    %2036 = vmatpush.msra.mxu0 0.0
    %2037 = vmatpush.msra.mxu0 0.0
    %2038 = vmatpush.msra.mxu0 0.0
    %2039 = vmatpush.msra.mxu0 0.0
    %2040 = vmatpush.msra.mxu0 0.0
    %2041 = vmatpush.msra.mxu0 0.0
    %2042 = vmatpush.msra.mxu0 0.0
    %2043 = vmatpush.msra.mxu0 0.0
    %2044 = vmatpush.msra.mxu0 0.0
    %2045 = vmatpush.msra.mxu0 0.0
    %2046 = vmatpush.msra.mxu0 0.0
    %2047 = vmatpush.msra.mxu0 0.0
    %2048 = vmatpush.msra.mxu0 %v1342
    %2049 = vmatpush.msra.mxu0 %v1341
    %2050 = vmatpush.msra.mxu0 %v1340
    %2051 = vmatpush.msra.mxu0 %v1339
    %2052 = vmatmul.f32.gmra.mxu0 %v2034
    %v2053 = vpop.f32.mrf.mxu0
    %v2054 = vadd.f32 0.0, %v2053
    %2055 = vdwg.mxu0
    %v2056 = vadd.f32 %v1245, %v2054
    %v2057 = vadd.f32 %v2056, %v1377
    %v2058 = vxor.u32 %v2057, 2147483648
    %v2059 = vmul.f32 %v2058, 1.442695
    %v2060 = vpow.pop %v2059
    %v2061 = vadd.f32 %v2060, 1.0
    %v2062 = vrcp.pop %v2061
    %v2063 = vmul.f32 %v2061, %v2062
    %v2064 = vsub.f32 1.0, %v2063
    %v2065 = vmul.f32 %v2062, %v2064
    %v2066 = vadd.f32 %v2062, %v2065
    %vm2067 = vweird.f32 %v2061
    %vm2068 = vweird.f32 %v2062
    %vm2069 = vmor %vm2067, %vm2068
    %v2070 = vsel %vm2069, %v2062, %v2066
    %v2071 = vand.u32 2147483647, %v2061
    %vm2072 = vcmp.eq.f32.partialorder %v2071, 8.507059e+37
    %v2073 = vand.u32 %v2061, 2147483648
    %v2074 = vor.u32 1.1754944e-38, %v2073
    %v2075 = vsel %vm2072, %v2074, %v2070
    %v2076 = vmul.f32 1.0, %v2075
    %2077 = vmatpush.msra.mxu0 0.0
    %2078 = vmatpush.msra.mxu0 0.0
    %2079 = vmatpush.msra.mxu0 0.0
    %2080 = vmatpush.msra.mxu0 0.0
    %2081 = vmatpush.msra.mxu0 0.0
    %2082 = vmatpush.msra.mxu0 0.0
    %2083 = vmatpush.msra.mxu0 0.0
    %2084 = vmatpush.msra.mxu0 0.0
    %2085 = vmatpush.msra.mxu0 0.0
    %2086 = vmatpush.msra.mxu0 0.0
    %2087 = vmatpush.msra.mxu0 0.0
    %2088 = vmatpush.msra.mxu0 0.0
    %2089 = vmatpush.msra.mxu0 %v1346
    %2090 = vmatpush.msra.mxu0 %v1345
    %2091 = vmatpush.msra.mxu0 %v1344
    %2092 = vmatpush.msra.mxu0 %v1343
    %2093 = vmatmul.f32.gmra.mxu0 %v2034
    %v2094 = vpop.f32.mrf.mxu0
    %v2095 = vadd.f32 0.0, %v2094
    %2096 = vdwg.mxu0
    %v2097 = vadd.f32 %v1289, %v2095
    %v2098 = vadd.f32 %v2097, %v1421
    %v2099 = vxor.u32 %v2098, 2147483648
    %v2100 = vmul.f32 %v2099, 1.442695
    %v2101 = vpow.pop %v2100
    %v2102 = vadd.f32 %v2101, 1.0
    %v2103 = vrcp.pop %v2102
    %v2104 = vmul.f32 %v2102, %v2103
    %v2105 = vsub.f32 1.0, %v2104
    %v2106 = vmul.f32 %v2103, %v2105
    %v2107 = vadd.f32 %v2103, %v2106
    %vm2108 = vweird.f32 %v2102
    %vm2109 = vweird.f32 %v2103
    %vm2110 = vmor %vm2108, %vm2109
    %v2111 = vsel %vm2110, %v2103, %v2107
    %v2112 = vand.u32 2147483647, %v2102
    %vm2113 = vcmp.eq.f32.partialorder %v2112, 8.507059e+37
    %v2114 = vand.u32 %v2102, 2147483648
    %v2115 = vor.u32 1.1754944e-38, %v2114
    %v2116 = vsel %vm2113, %v2115, %v2111
    %v2117 = vmul.f32 1.0, %v2116
    %2118 = vmatpush.msra.mxu0 0.0
    %2119 = vmatpush.msra.mxu0 0.0
    %2120 = vmatpush.msra.mxu0 0.0
    %2121 = vmatpush.msra.mxu0 0.0
    %2122 = vmatpush.msra.mxu0 0.0
    %2123 = vmatpush.msra.mxu0 0.0
    %2124 = vmatpush.msra.mxu0 0.0
    %2125 = vmatpush.msra.mxu0 0.0
    %2126 = vmatpush.msra.mxu0 0.0
    %2127 = vmatpush.msra.mxu0 0.0
    %2128 = vmatpush.msra.mxu0 0.0
    %2129 = vmatpush.msra.mxu0 0.0
    %2130 = vmatpush.msra.mxu0 %v1350
    %2131 = vmatpush.msra.mxu0 %v1349
    %2132 = vmatpush.msra.mxu0 %v1348
    %2133 = vmatpush.msra.mxu0 %v1347
    %2134 = vmatmul.f32.gmra.mxu0 %v2034
    %v2135 = vpop.f32.mrf.mxu0
    %v2136 = vadd.f32 %v1444, %v2135
    %2137 = vdwg.mxu0
    %v2138 = vmul.f32 %v2076, %v2136
    %v2139 = vadd.f32 %v1333, %v2138
    %v2140 = vtanh.pop %v2139
    %v2141 = vsub.f32 1.0, %v2117
    %v2142 = vmul.f32 %v2141, %v2140
    %v2143 = vmul.f32 %v2117, %v2032
    %v2144 = vadd.f32 %v2142, %v2143
    %v2146 = vsel %vm243, %v2144, 0
    %2148 = vmatpush.msra.mxu0 0.0
    %2149 = vmatpush.msra.mxu0 0.0
    %2150 = vmatpush.msra.mxu0 0.0
    %2151 = vmatpush.msra.mxu0 0.0
    %2152 = vmatpush.msra.mxu0 0.0
    %2153 = vmatpush.msra.mxu0 0.0
    %2154 = vmatpush.msra.mxu0 0.0
    %2155 = vmatpush.msra.mxu0 0.0
    %2156 = vmatpush.msra.mxu0 0.0
    %2157 = vmatpush.msra.mxu0 0.0
    %2158 = vmatpush.msra.mxu0 0.0
    %2159 = vmatpush.msra.mxu0 0.0
    %2160 = vmatpush.msra.mxu0 %v1342
    %2161 = vmatpush.msra.mxu0 %v1341
    %2162 = vmatpush.msra.mxu0 %v1340
    %2163 = vmatpush.msra.mxu0 %v1339
    %2164 = vmatmul.f32.gmra.mxu0 %v2146
    %v2165 = vpop.f32.mrf.mxu0
    %v2166 = vadd.f32 0.0, %v2165
    %2167 = vdwg.mxu0
    %v2168 = vadd.f32 %v1248, %v2166
    %v2169 = vadd.f32 %v2168, %v1377
    %v2170 = vxor.u32 %v2169, 2147483648
    %v2171 = vmul.f32 %v2170, 1.442695
    %v2172 = vpow.pop %v2171
    %v2173 = vadd.f32 %v2172, 1.0
    %v2174 = vrcp.pop %v2173
    %v2175 = vmul.f32 %v2173, %v2174
    %v2176 = vsub.f32 1.0, %v2175
    %v2177 = vmul.f32 %v2174, %v2176
    %v2178 = vadd.f32 %v2174, %v2177
    %vm2179 = vweird.f32 %v2173
    %vm2180 = vweird.f32 %v2174
    %vm2181 = vmor %vm2179, %vm2180
    %v2182 = vsel %vm2181, %v2174, %v2178
    %v2183 = vand.u32 2147483647, %v2173
    %vm2184 = vcmp.eq.f32.partialorder %v2183, 8.507059e+37
    %v2185 = vand.u32 %v2173, 2147483648
    %v2186 = vor.u32 1.1754944e-38, %v2185
    %v2187 = vsel %vm2184, %v2186, %v2182
    %v2188 = vmul.f32 1.0, %v2187
    %2189 = vmatpush.msra.mxu0 0.0
    %2190 = vmatpush.msra.mxu0 0.0
    %2191 = vmatpush.msra.mxu0 0.0
    %2192 = vmatpush.msra.mxu0 0.0
    %2193 = vmatpush.msra.mxu0 0.0
    %2194 = vmatpush.msra.mxu0 0.0
    %2195 = vmatpush.msra.mxu0 0.0
    %2196 = vmatpush.msra.mxu0 0.0
    %2197 = vmatpush.msra.mxu0 0.0
    %2198 = vmatpush.msra.mxu0 0.0
    %2199 = vmatpush.msra.mxu0 0.0
    %2200 = vmatpush.msra.mxu0 0.0
    %2201 = vmatpush.msra.mxu0 %v1346
    %2202 = vmatpush.msra.mxu0 %v1345
    %2203 = vmatpush.msra.mxu0 %v1344
    %2204 = vmatpush.msra.mxu0 %v1343
    %2205 = vmatmul.f32.gmra.mxu0 %v2146
    %v2206 = vpop.f32.mrf.mxu0
    %v2207 = vadd.f32 0.0, %v2206
    %2208 = vdwg.mxu0
    %v2209 = vadd.f32 %v1292, %v2207
    %v2210 = vadd.f32 %v2209, %v1421
    %v2211 = vxor.u32 %v2210, 2147483648
    %v2212 = vmul.f32 %v2211, 1.442695
    %v2213 = vpow.pop %v2212
    %v2214 = vadd.f32 %v2213, 1.0
    %v2215 = vrcp.pop %v2214
    %v2216 = vmul.f32 %v2214, %v2215
    %v2217 = vsub.f32 1.0, %v2216
    %v2218 = vmul.f32 %v2215, %v2217
    %v2219 = vadd.f32 %v2215, %v2218
    %vm2220 = vweird.f32 %v2214
    %vm2221 = vweird.f32 %v2215
    %vm2222 = vmor %vm2220, %vm2221
    %v2223 = vsel %vm2222, %v2215, %v2219
    %v2224 = vand.u32 2147483647, %v2214
    %vm2225 = vcmp.eq.f32.partialorder %v2224, 8.507059e+37
    %v2226 = vand.u32 %v2214, 2147483648
    %v2227 = vor.u32 1.1754944e-38, %v2226
    %v2228 = vsel %vm2225, %v2227, %v2223
    %v2229 = vmul.f32 1.0, %v2228
    %2230 = vmatpush.msra.mxu0 0.0
    %2231 = vmatpush.msra.mxu0 0.0
    %2232 = vmatpush.msra.mxu0 0.0
    %2233 = vmatpush.msra.mxu0 0.0
    %2234 = vmatpush.msra.mxu0 0.0
    %2235 = vmatpush.msra.mxu0 0.0
    %2236 = vmatpush.msra.mxu0 0.0
    %2237 = vmatpush.msra.mxu0 0.0
    %2238 = vmatpush.msra.mxu0 0.0
    %2239 = vmatpush.msra.mxu0 0.0
    %2240 = vmatpush.msra.mxu0 0.0
    %2241 = vmatpush.msra.mxu0 0.0
    %2242 = vmatpush.msra.mxu0 %v1350
    %2243 = vmatpush.msra.mxu0 %v1349
    %2244 = vmatpush.msra.mxu0 %v1348
    %2245 = vmatpush.msra.mxu0 %v1347
    %2246 = vmatmul.f32.gmra.mxu0 %v2146
    %v2247 = vpop.f32.mrf.mxu0
    %v2248 = vadd.f32 %v1444, %v2247
    %2249 = vdwg.mxu0
    %v2250 = vmul.f32 %v2188, %v2248
    %v2251 = vadd.f32 %v1336, %v2250
    %v2252 = vtanh.pop %v2251
    %v2253 = vsub.f32 1.0, %v2229
    %v2254 = vmul.f32 %v2253, %v2252
    %v2255 = vmul.f32 %v2229, %v2144
    %v2256 = vadd.f32 %v2254, %v2255
    %2257 = vst.msk [vmem:[%s6] sm:$0xff] %vm243, %v1472
    %2258 = vst.msk [vmem:[%s6 + $0x8] sm:$0xff] %vm243, %v1584
    %2259 = vst.msk [vmem:[%s6 + $0x10] sm:$0xff] %vm243, %v1696
    %2260 = vst.msk [vmem:[%s6 + $0x18] sm:$0xff] %vm243, %v1808
    %2261 = vst.msk [vmem:[%s6 + $0x20] sm:$0xff] %vm243, %v1920
    %2262 = vst.msk [vmem:[%s6 + $0x28] sm:$0xff] %vm243, %v2032
    %2263 = vst.msk [vmem:[%s6 + $0x30] sm:$0xff] %vm243, %v2144
    %2264 = vst.msk [vmem:[%s6 + $0x38] sm:$0xff] %vm243, %v2256
    %s2265 = scalar_lea.vmem [#allocation5], 8
    %2266 = vst.msk [vmem:[%s2265] sm:$0xff] %vm243, %v2256
    // Predicated region
    $region30: #{tpu_custom_call.1} parent=1 // pred_check
      _
    $region31: #{tpu_custom_call.1} parent=1 // pred_check_branch
      %2268 = sbr.rel (0) target = $region33
    $region32: #{tpu_custom_call.1} parent=1 // pred_region
      _
    $region33: #{tpu_custom_call.1} parent=1 // pred_fallthru
      _
    // Predicated region
    $region34: #{tpu_custom_call.1} parent=1 // pred_check
      _
    $region35: #{tpu_custom_call.1} parent=1 // pred_check_branch
      %2270 = sbr.rel (0) target = $region37
    $region36: #{tpu_custom_call.1} parent=1 // pred_region
      %2272 = vsyncadd [#allocation4], 0
      %s2273 = sshll.u32 [#allocation5], 4
      %s2274 = int_to_ptr.vmem [resolvable:$true] %s2273
      %s2275 = sshll.u32 %s7, 4
      %s2276 = int_to_ptr.hbm [resolvable:$true] %s2275
      %2281 = dma.vmem_to_hbm [thread:$0]  %s2274, 256, %s2276, [#allocation4], 128, 128, 8
    $region37: #{tpu_custom_call.1} parent=1 // pred_fallthru
      _
    // Predicated region
    $region38: #{tpu_custom_call.1} parent=1 // pred_check
      _
    $region39: #{tpu_custom_call.1} parent=1 // pred_check_branch
      %2283 = sbr.rel (0) target = $region41
    $region40: #{tpu_custom_call.1} parent=1 // pred_region
      _
    $region41: #{tpu_custom_call.1} parent=1 // pred_fallthru
      _
    // Predicated region
    $region42: #{tpu_custom_call.1} parent=1 // pred_check
      _
    $region43: #{tpu_custom_call.1} parent=1 // pred_check_branch
      %2285 = sbr.rel (0) target = $region45
    $region44: #{tpu_custom_call.1} parent=1 // pred_region
      %2287 = dma.done [#allocation4], 256
    $region45: #{tpu_custom_call.1} parent=1 // pred_fallthru
      _
    %2288 = vsyncpa [#allocation3], 1
    %2289 = vsyncpa [#allocation4], 1

</llo_original>
